<compile_context>
chip_gen: v5e
topology: v5e:2x2
jax: 0.10.0
libtpu: 0.0.40
codegen_flags: <defaults>
</compile_context>

<pallas_src>
import functools

import jax
import jax.numpy as jnp
import numpy as np
from jax.experimental import pallas as pl
from jax.experimental.pallas import tpu as pltpu

HIGHEST = jax.lax.Precision.HIGHEST


# ----------------------------- Pallas kernel --------------------------------
def _skip_upsample_kernel(x_ref, base_ref, woff_ref, wfin_ref, out_ref, *, H, W):
    """One grid step = one batch element; all scale^2 subpixel slots handled in-body.

    x_ref    : (1, C, HW)        low-res features, channel-major, spatially flattened
    base_ref : (2, HW)           f32 base pixel coords: row0 = j (width), row1 = i (height)
    woff_ref : (r2, 2, C, C+1)   offset-conv rows per (slot, axis, channel); pre-scaled by
                                 0.25, last column = 0.25*bias + init_pos
    wfin_ref : (Cin, C)          final 1x1 conv weight (no bias)
    out_ref  : (1, r2, Cin, HW)  upsample+conv result (skip add happens outside the kernel)
    """
    C = x_ref.shape[1]
    HW = x_ref.shape[2]
    r2 = out_ref.shape[1]

    x = x_ref[0]                           # (C, HW)
    wfin = wfin_ref[...]                   # (Cin, C)
    base_x = base_ref[0:1, :]              # (1, HW)
    base_y = base_ref[1:2, :]

    for s in range(r2):                    # subpixel slots, unrolled in the body
        # ---- DySample offset 1x1 conv for this slot: exact f32 VPU broadcast-FMA
        # (K = C = 10 is far too small to be worth an MXU push/pop).
        wox = woff_ref[s, 0]               # (C, C+1) x(width)-offset rows per channel
        woy = woff_ref[s, 1]               # (C, C+1) y(height)-offset rows per channel
        offx = jnp.broadcast_to(wox[:, C:C + 1], (C, HW))   # bias (incl. init_pos)
        offy = jnp.broadcast_to(woy[:, C:C + 1], (C, HW))
        for c in range(C):
            xc = x[c:c + 1, :]             # (1, HW) sublane-broadcast row
            offx = offx + wox[:, c:c + 1] * xc
            offy = offy + woy[:, c:c + 1] * xc

        # ---- grid_sample(align_corners=False, padding_mode='border'):
        # unnormalized sample coord == (j + off_x, i + off_y), clamped to the image.
        ix = jnp.clip(base_x + offx, 0.0, float(W - 1))      # (C, HW)
        iy = jnp.clip(base_y + offy, 0.0, float(H - 1))
        x0f = jnp.floor(ix)
        y0f = jnp.floor(iy)
        wx1 = ix - x0f
        wy1 = iy - y0f
        wx0 = 1.0 - wx1
        wy0 = 1.0 - wy1
        x0 = x0f.astype(jnp.int32)
        y0 = y0f.astype(jnp.int32)
        x1 = jnp.minimum(x0 + 1, W - 1)
        y1 = jnp.minimum(y0 + 1, H - 1)

        # ---- bilinear sample of the RAW channels: 4 lane gathers (one per corner),
        # each corner's contribution accumulated immediately (bounded vreg live ranges).
        up = jnp.take_along_axis(x, y0 * W + x0, axis=1) * (wy0 * wx0)
        up = up + jnp.take_along_axis(x, y0 * W + x1, axis=1) * (wy0 * wx1)
        up = up + jnp.take_along_axis(x, y1 * W + x0, axis=1) * (wy1 * wx0)
        up = up + jnp.take_along_axis(x, y1 * W + x1, axis=1) * (wy1 * wx1)   # (C, HW)

        # ---- final 1x1 conv: ONE full-K (Cin x C) contraction per slot, exact f32 FMA.
        o = wfin[:, 0:1] * up[0:1, :]
        for c in range(1, C):
            o = o + wfin[:, c:c + 1] * up[c:c + 1, :]         # (Cin, HW)
        out_ref[0, s] = o.astype(out_ref.dtype)


# ------------------------------ wrapper --------------------------------------
@functools.partial(jax.jit, static_argnames=("scale", "groups"))
def skip_upsample(x, y, w_off, b_off, init_pos, w_fin, *, scale=2, groups=5):
    B, C, H, W = x.shape
    Cin = w_fin.shape[0]
    HW = H * W
    r2 = scale * scale
    Cg = C // groups

    # ---------------- host-side (XLA) layout / constant folding ----------------
    x_flat = x.reshape(B, C, HW)
    # Expand offset-conv params to per-(slot, axis, channel) rows and fold constants:
    # original offset channel k = a*G*r2 + g*r2 + s ; channel c uses its group g(c) = c//Cg.
    g_of_c = jnp.arange(C, dtype=jnp.int32) // Cg
    k = (jnp.arange(2, dtype=jnp.int32)[None, :, None] * (groups * r2)
         + g_of_c[None, None, :] * r2
         + jnp.arange(r2, dtype=jnp.int32)[:, None, None])           # (r2, 2, C)
    w_rows = 0.25 * w_off[k]                                         # (r2, 2, C, C)
    b_rows = (0.25 * b_off + init_pos)[k][..., None]                 # (r2, 2, C, 1)
    woff_exp = jnp.concatenate([w_rows, b_rows], axis=-1)            # (r2, 2, C, C+1)
    # Base low-res pixel coordinates (j, i) of the flattened spatial axis.
    p = jnp.arange(HW, dtype=jnp.int32)
    base = jnp.stack([(p % W).astype(jnp.float32),
                      (p // W).astype(jnp.float32)])                 # (2, HW)

    kernel = functools.partial(_skip_upsample_kernel, H=H, W=W)
    # TODO(synk): for large H*W, add a lane-dense (>=512 lanes) HW-tile grid axis for the
    # output/offsets while keeping the (C, HW) gather source fully VMEM-resident (no halo),
    # and re-derive the resident-x / tile VMEM budget for v7x's 64 MiB.
    out_sub = pl.pallas_call(
        kernel,
        out_shape=jax.ShapeDtypeStruct((B, r2, Cin, HW), jnp.float32),
        grid=(B,),
        in_specs=[
            pl.BlockSpec((1, C, HW), lambda b: (b, 0, 0)),
            pl.BlockSpec((2, HW), lambda b: (0, 0)),
            pl.BlockSpec((r2, 2, C, C + 1), lambda b: (0, 0, 0, 0)),
            pl.BlockSpec((Cin, C), lambda b: (0, 0)),
        ],
        out_specs=pl.BlockSpec((1, r2, Cin, HW), lambda b: (b, 0, 0, 0)),
        compiler_params=pltpu.CompilerParams(
            dimension_semantics=("parallel",)),
    )(x_flat, base, woff_exp, w_fin)

    # pixel-shuffle the subpixel layout back to NCHW and add the skip (fused by XLA).
    out = (out_sub.reshape(B, scale, scale, Cin, H, W)
                  .transpose(0, 3, 4, 1, 5, 2)
                  .reshape(B, Cin, scale * H, scale * W))
    return out + y


# -------------------- parameters (deterministic, synthetic) ------------------
def make_init_pos(scale, groups):
    # replicates DySample._init_pos (torch.meshgrid default 'ij' indexing)
    h = (jnp.arange(scale, dtype=jnp.float32) - (scale - 1) / 2) / scale
    g0, g1 = jnp.meshgrid(h, h, indexing="ij")
    t = jnp.stack([g0, g1]).transpose(0, 2, 1)        # (2, scale, scale)
    r = jnp.tile(t, (1, groups, 1))                   # (2, scale*groups, scale)
    return r.reshape(-1)                              # (2*groups*scale^2,)


# --------------------------- pure-JAX reference -------------------------------
def _pixel_shuffle(x, r):
    B, C, H, W = x.shape
    return (x.reshape(B, C // (r * r), r, r, H, W)
             .transpose(0, 1, 4, 2, 5, 3)
             .reshape(B, C // (r * r), H * r, W * r))


def _grid_sample_bilinear_border(x, grid):
    # F.grid_sample(mode='bilinear', align_corners=False, padding_mode='border')
    N, C, H, W = x.shape
    gx, gy = grid[..., 0], grid[..., 1]
    ix = jnp.clip(((gx + 1.0) * W - 1.0) / 2.0, 0.0, W - 1.0)
    iy = jnp.clip(((gy + 1.0) * H - 1.0) / 2.0, 0.0, H - 1.0)
    x0 = jnp.floor(ix)
    y0 = jnp.floor(iy)
    wx1 = ix - x0
    wy1 = iy - y0
    x0i = x0.astype(jnp.int32)
    y0i = y0.astype(jnp.int32)
    x1i = jnp.minimum(x0i + 1, W - 1)
    y1i = jnp.minimum(y0i + 1, H - 1)
    flat = x.reshape(N, C, H * W)

    def gather(yi, xi):
        idx = (yi * W + xi).reshape(N, -1)
        g = jax.vmap(lambda f, i: f[:, i])(flat, idx)
        return g.reshape(N, C, *yi.shape[1:])

    v00, v01 = gather(y0i, x0i), gather(y0i, x1i)
    v10, v11 = gather(y1i, x0i), gather(y1i, x1i)
    w00 = ((1 - wy1) * (1 - wx1))[:, None]
    w01 = ((1 - wy1) * wx1)[:, None]
    w10 = (wy1 * (1 - wx1))[:, None]
    w11 = (wy1 * wx1)[:, None]
    return v00 * w00 + v01 * w01 + v10 * w10 + v11 * w11


def skip_upsample_ref(x, y, w_off, b_off, init_pos, w_fin, *, scale=2, groups=5):
    B, C, H, W = x.shape
    off = jnp.einsum("oc,bchw->bohw", w_off, x, precision=HIGHEST) \
          + b_off[None, :, None, None]
    offset = off * 0.25 + init_pos[None, :, None, None]
    offset = offset.reshape(B, 2, -1, H, W)
    coords_w = jnp.arange(W, dtype=x.dtype) + 0.5
    coords_h = jnp.arange(H, dtype=x.dtype) + 0.5
    cw, ch = jnp.meshgrid(coords_w, coords_h, indexing="ij")  # (W, H)
    coords = jnp.stack([cw, ch]).transpose(0, 2, 1)           # (2, H, W)
    coords = coords[None, :, None]                            # (1, 2, 1, H, W)
    normalizer = jnp.array([W, H], dtype=x.dtype).reshape(1, 2, 1, 1, 1)
    coords = 2.0 * (coords + offset) / normalizer - 1.0
    coords = _pixel_shuffle(coords.reshape(B, -1, H, W), scale)
    coords = (coords.reshape(B, 2, -1, scale * H, scale * W)
                    .transpose(0, 2, 3, 4, 1)
                    .reshape(B * groups, scale * H, scale * W, 2))
    xs = x.reshape(B * groups, -1, H, W)
    up = _grid_sample_bilinear_border(xs, coords).reshape(B, C, scale * H, scale * W)
    out = jnp.einsum("oc,bchw->bohw", w_fin, up, precision=HIGHEST)
    return out + y


# ---------------------------------- main --------------------------------------
if __name__ == "__main__":
    in_channels = 8      # SkipUpSample(in_channels=8, s_factor=2)
    s_factor = 2
    scale = 2
    groups = 5           # DySample default; (in_channels + s_factor) % groups == 0
    B, H, W = 2, 16, 8   # H*W = 128 -> lane-dense blocks and single-span lane gathers
    C = in_channels + s_factor
    Coff = 2 * groups * scale * scale

    key = jax.random.PRNGKey(0)
    kx, ky, koff, kfin = jax.random.split(key, 4)
    x = jax.random.normal(kx, (B, C, H, W), dtype=jnp.float32)
    y = jax.random.normal(ky, (B, in_channels, scale * H, scale * W), dtype=jnp.float32)

    # DySample.offset: Conv2d(C, Coff, 1) with normal_init(std=0.001), bias=0
    w_off = 0.001 * jax.random.normal(koff, (Coff, C), dtype=jnp.float32)
    b_off = jnp.zeros((Coff,), dtype=jnp.float32)
    init_pos = make_init_pos(scale, groups)
    # final Conv2d(C, in_channels, 1, bias=False), synthetic deterministic init
    bound = 1.0 / float(np.sqrt(C))
    w_fin = jax.random.uniform(kfin, (in_channels, C), dtype=jnp.float32,
                               minval=-bound, maxval=bound)

    out = skip_upsample(x, y, w_off, b_off, init_pos, w_fin,
                        scale=scale, groups=groups)
    out = jax.block_until_ready(out)

    ref = skip_upsample_ref(x, y, w_off, b_off, init_pos, w_fin,
                            scale=scale, groups=groups)
    np.testing.assert_allclose(np.asarray(out), np.asarray(ref),
                               rtol=1e-4, atol=1e-4)
    print("KERNEL_OK")
</pallas_src>

<mosaic_0001>
module attributes {stable_mosaic.version = 11 : i64} {
  func.func @_skip_upsample_kernel(%arg0: i32, %arg1: memref<1x10x128xf32, #tpu.memory_space<vmem>>, %arg2: memref<2x128xf32, #tpu.memory_space<vmem>>, %arg3: memref<4x2x10x11xf32, #tpu.memory_space<vmem>>, %arg4: memref<8x10xf32, #tpu.memory_space<vmem>>, %arg5: memref<1x4x8x128xf32, #tpu.memory_space<vmem>>) attributes {dimension_semantics = [#tpu.dimension_semantics<parallel>], iteration_bounds = array<i64: 2>, scalar_prefetch = 0 : i64, scratch_operands = 0 : i64, tpu.core_type = #tpu.core_type<tc>, window_params = [{transform_indices = @transform_0, window_bounds = array<i64: 1, 10, 128>}, {pipeline_mode = #tpu.pipeline_mode<synchronous>, transform_indices = @transform_1, window_bounds = array<i64: 2, 128>}, {pipeline_mode = #tpu.pipeline_mode<synchronous>, transform_indices = @transform_2, window_bounds = array<i64: 4, 2, 10, 11>}, {pipeline_mode = #tpu.pipeline_mode<synchronous>, transform_indices = @transform_3, window_bounds = array<i64: 8, 10>}, {transform_indices = @transform_4, window_bounds = array<i64: 1, 4, 8, 128>}]} {
    %c0 = arith.constant 0 : index
    %c0_0 = arith.constant 0 : index
    %c0_1 = arith.constant 0 : index
    %0 = vector.load %arg1[%c0, %c0_0, %c0_1] : memref<1x10x128xf32, #tpu.memory_space<vmem>>, vector<1x10x128xf32>
    %1 = vector.shape_cast %0 : vector<1x10x128xf32> to vector<10x128xf32>
    %c0_2 = arith.constant 0 : index
    %c0_3 = arith.constant 0 : index
    %2 = vector.load %arg4[%c0_2, %c0_3] : memref<8x10xf32, #tpu.memory_space<vmem>>, vector<8x10xf32>
    %c0_4 = arith.constant 0 : index
    %c0_5 = arith.constant 0 : index
    %3 = vector.load %arg2[%c0_4, %c0_5] : memref<2x128xf32, #tpu.memory_space<vmem>>, vector<1x128xf32>
    %c1 = arith.constant 1 : index
    %c0_6 = arith.constant 0 : index
    %4 = vector.load %arg2[%c1, %c0_6] : memref<2x128xf32, #tpu.memory_space<vmem>>, vector<1x128xf32>
    %c0_7 = arith.constant 0 : index
    %c0_8 = arith.constant 0 : index
    %c0_9 = arith.constant 0 : index
    %c0_10 = arith.constant 0 : index
    %5 = vector.load %arg3[%c0_7, %c0_8, %c0_9, %c0_10] : memref<4x2x10x11xf32, #tpu.memory_space<vmem>>, vector<1x1x10x11xf32>
    %6 = vector.shape_cast %5 : vector<1x1x10x11xf32> to vector<10x11xf32>
    %c0_11 = arith.constant 0 : index
    %c1_12 = arith.constant 1 : index
    %c0_13 = arith.constant 0 : index
    %c0_14 = arith.constant 0 : index
    %7 = vector.load %arg3[%c0_11, %c1_12, %c0_13, %c0_14] : memref<4x2x10x11xf32, #tpu.memory_space<vmem>>, vector<1x1x10x11xf32>
    %8 = vector.shape_cast %7 : vector<1x1x10x11xf32> to vector<10x11xf32>
    %9 = vector.extract_strided_slice %6 {offsets = [0, 10], sizes = [10, 1], strides = [1, 1]} : vector<10x11xf32> to vector<10x1xf32>
    %10 = vector.shape_cast %9 : vector<10x1xf32> to vector<10x1xf32>
    %11 = vector.broadcast %10 : vector<10x1xf32> to vector<10x128xf32>
    %12 = vector.extract_strided_slice %8 {offsets = [0, 10], sizes = [10, 1], strides = [1, 1]} : vector<10x11xf32> to vector<10x1xf32>
    %13 = vector.shape_cast %12 : vector<10x1xf32> to vector<10x1xf32>
    %14 = vector.broadcast %13 : vector<10x1xf32> to vector<10x128xf32>
    %15 = vector.extract_strided_slice %1 {offsets = [0, 0], sizes = [1, 128], strides = [1, 1]} : vector<10x128xf32> to vector<1x128xf32>
    %16 = vector.extract_strided_slice %6 {offsets = [0, 0], sizes = [10, 1], strides = [1, 1]} : vector<10x11xf32> to vector<10x1xf32>
    %17 = vector.broadcast %16 : vector<10x1xf32> to vector<10x128xf32>
    %18 = vector.broadcast %15 : vector<1x128xf32> to vector<10x128xf32>
    %19 = arith.mulf %17, %18 : vector<10x128xf32>
    %20 = arith.addf %11, %19 : vector<10x128xf32>
    %21 = vector.extract_strided_slice %8 {offsets = [0, 0], sizes = [10, 1], strides = [1, 1]} : vector<10x11xf32> to vector<10x1xf32>
    %22 = vector.broadcast %21 : vector<10x1xf32> to vector<10x128xf32>
    %23 = vector.broadcast %15 : vector<1x128xf32> to vector<10x128xf32>
    %24 = arith.mulf %22, %23 : vector<10x128xf32>
    %25 = arith.addf %14, %24 : vector<10x128xf32>
    %26 = vector.extract_strided_slice %1 {offsets = [1, 0], sizes = [1, 128], strides = [1, 1]} : vector<10x128xf32> to vector<1x128xf32>
    %27 = vector.extract_strided_slice %6 {offsets = [0, 1], sizes = [10, 1], strides = [1, 1]} : vector<10x11xf32> to vector<10x1xf32>
    %28 = vector.broadcast %27 : vector<10x1xf32> to vector<10x128xf32>
    %29 = vector.broadcast %26 : vector<1x128xf32> to vector<10x128xf32>
    %30 = arith.mulf %28, %29 : vector<10x128xf32>
    %31 = arith.addf %20, %30 : vector<10x128xf32>
    %32 = vector.extract_strided_slice %8 {offsets = [0, 1], sizes = [10, 1], strides = [1, 1]} : vector<10x11xf32> to vector<10x1xf32>
    %33 = vector.broadcast %32 : vector<10x1xf32> to vector<10x128xf32>
    %34 = vector.broadcast %26 : vector<1x128xf32> to vector<10x128xf32>
    %35 = arith.mulf %33, %34 : vector<10x128xf32>
    %36 = arith.addf %25, %35 : vector<10x128xf32>
    %37 = vector.extract_strided_slice %1 {offsets = [2, 0], sizes = [1, 128], strides = [1, 1]} : vector<10x128xf32> to vector<1x128xf32>
    %38 = vector.extract_strided_slice %6 {offsets = [0, 2], sizes = [10, 1], strides = [1, 1]} : vector<10x11xf32> to vector<10x1xf32>
    %39 = vector.broadcast %38 : vector<10x1xf32> to vector<10x128xf32>
    %40 = vector.broadcast %37 : vector<1x128xf32> to vector<10x128xf32>
    %41 = arith.mulf %39, %40 : vector<10x128xf32>
    %42 = arith.addf %31, %41 : vector<10x128xf32>
    %43 = vector.extract_strided_slice %8 {offsets = [0, 2], sizes = [10, 1], strides = [1, 1]} : vector<10x11xf32> to vector<10x1xf32>
    %44 = vector.broadcast %43 : vector<10x1xf32> to vector<10x128xf32>
    %45 = vector.broadcast %37 : vector<1x128xf32> to vector<10x128xf32>
    %46 = arith.mulf %44, %45 : vector<10x128xf32>
    %47 = arith.addf %36, %46 : vector<10x128xf32>
    %48 = vector.extract_strided_slice %1 {offsets = [3, 0], sizes = [1, 128], strides = [1, 1]} : vector<10x128xf32> to vector<1x128xf32>
    %49 = vector.extract_strided_slice %6 {offsets = [0, 3], sizes = [10, 1], strides = [1, 1]} : vector<10x11xf32> to vector<10x1xf32>
    %50 = vector.broadcast %49 : vector<10x1xf32> to vector<10x128xf32>
    %51 = vector.broadcast %48 : vector<1x128xf32> to vector<10x128xf32>
    %52 = arith.mulf %50, %51 : vector<10x128xf32>
    %53 = arith.addf %42, %52 : vector<10x128xf32>
    %54 = vector.extract_strided_slice %8 {offsets = [0, 3], sizes = [10, 1], strides = [1, 1]} : vector<10x11xf32> to vector<10x1xf32>
    %55 = vector.broadcast %54 : vector<10x1xf32> to vector<10x128xf32>
    %56 = vector.broadcast %48 : vector<1x128xf32> to vector<10x128xf32>
    %57 = arith.mulf %55, %56 : vector<10x128xf32>
    %58 = arith.addf %47, %57 : vector<10x128xf32>
    %59 = vector.extract_strided_slice %1 {offsets = [4, 0], sizes = [1, 128], strides = [1, 1]} : vector<10x128xf32> to vector<1x128xf32>
    %60 = vector.extract_strided_slice %6 {offsets = [0, 4], sizes = [10, 1], strides = [1, 1]} : vector<10x11xf32> to vector<10x1xf32>
    %61 = vector.broadcast %60 : vector<10x1xf32> to vector<10x128xf32>
    %62 = vector.broadcast %59 : vector<1x128xf32> to vector<10x128xf32>
    %63 = arith.mulf %61, %62 : vector<10x128xf32>
    %64 = arith.addf %53, %63 : vector<10x128xf32>
    %65 = vector.extract_strided_slice %8 {offsets = [0, 4], sizes = [10, 1], strides = [1, 1]} : vector<10x11xf32> to vector<10x1xf32>
    %66 = vector.broadcast %65 : vector<10x1xf32> to vector<10x128xf32>
    %67 = vector.broadcast %59 : vector<1x128xf32> to vector<10x128xf32>
    %68 = arith.mulf %66, %67 : vector<10x128xf32>
    %69 = arith.addf %58, %68 : vector<10x128xf32>
    %70 = vector.extract_strided_slice %1 {offsets = [5, 0], sizes = [1, 128], strides = [1, 1]} : vector<10x128xf32> to vector<1x128xf32>
    %71 = vector.extract_strided_slice %6 {offsets = [0, 5], sizes = [10, 1], strides = [1, 1]} : vector<10x11xf32> to vector<10x1xf32>
    %72 = vector.broadcast %71 : vector<10x1xf32> to vector<10x128xf32>
    %73 = vector.broadcast %70 : vector<1x128xf32> to vector<10x128xf32>
    %74 = arith.mulf %72, %73 : vector<10x128xf32>
    %75 = arith.addf %64, %74 : vector<10x128xf32>
    %76 = vector.extract_strided_slice %8 {offsets = [0, 5], sizes = [10, 1], strides = [1, 1]} : vector<10x11xf32> to vector<10x1xf32>
    %77 = vector.broadcast %76 : vector<10x1xf32> to vector<10x128xf32>
    %78 = vector.broadcast %70 : vector<1x128xf32> to vector<10x128xf32>
    %79 = arith.mulf %77, %78 : vector<10x128xf32>
    %80 = arith.addf %69, %79 : vector<10x128xf32>
    %81 = vector.extract_strided_slice %1 {offsets = [6, 0], sizes = [1, 128], strides = [1, 1]} : vector<10x128xf32> to vector<1x128xf32>
    %82 = vector.extract_strided_slice %6 {offsets = [0, 6], sizes = [10, 1], strides = [1, 1]} : vector<10x11xf32> to vector<10x1xf32>
    %83 = vector.broadcast %82 : vector<10x1xf32> to vector<10x128xf32>
    %84 = vector.broadcast %81 : vector<1x128xf32> to vector<10x128xf32>
    %85 = arith.mulf %83, %84 : vector<10x128xf32>
    %86 = arith.addf %75, %85 : vector<10x128xf32>
    %87 = vector.extract_strided_slice %8 {offsets = [0, 6], sizes = [10, 1], strides = [1, 1]} : vector<10x11xf32> to vector<10x1xf32>
    %88 = vector.broadcast %87 : vector<10x1xf32> to vector<10x128xf32>
    %89 = vector.broadcast %81 : vector<1x128xf32> to vector<10x128xf32>
    %90 = arith.mulf %88, %89 : vector<10x128xf32>
    %91 = arith.addf %80, %90 : vector<10x128xf32>
    %92 = vector.extract_strided_slice %1 {offsets = [7, 0], sizes = [1, 128], strides = [1, 1]} : vector<10x128xf32> to vector<1x128xf32>
    %93 = vector.extract_strided_slice %6 {offsets = [0, 7], sizes = [10, 1], strides = [1, 1]} : vector<10x11xf32> to vector<10x1xf32>
    %94 = vector.broadcast %93 : vector<10x1xf32> to vector<10x128xf32>
    %95 = vector.broadcast %92 : vector<1x128xf32> to vector<10x128xf32>
    %96 = arith.mulf %94, %95 : vector<10x128xf32>
    %97 = arith.addf %86, %96 : vector<10x128xf32>
    %98 = vector.extract_strided_slice %8 {offsets = [0, 7], sizes = [10, 1], strides = [1, 1]} : vector<10x11xf32> to vector<10x1xf32>
    %99 = vector.broadcast %98 : vector<10x1xf32> to vector<10x128xf32>
    %100 = vector.broadcast %92 : vector<1x128xf32> to vector<10x128xf32>
    %101 = arith.mulf %99, %100 : vector<10x128xf32>
    %102 = arith.addf %91, %101 : vector<10x128xf32>
    %103 = vector.extract_strided_slice %1 {offsets = [8, 0], sizes = [1, 128], strides = [1, 1]} : vector<10x128xf32> to vector<1x128xf32>
    %104 = vector.extract_strided_slice %6 {offsets = [0, 8], sizes = [10, 1], strides = [1, 1]} : vector<10x11xf32> to vector<10x1xf32>
    %105 = vector.broadcast %104 : vector<10x1xf32> to vector<10x128xf32>
    %106 = vector.broadcast %103 : vector<1x128xf32> to vector<10x128xf32>
    %107 = arith.mulf %105, %106 : vector<10x128xf32>
    %108 = arith.addf %97, %107 : vector<10x128xf32>
    %109 = vector.extract_strided_slice %8 {offsets = [0, 8], sizes = [10, 1], strides = [1, 1]} : vector<10x11xf32> to vector<10x1xf32>
    %110 = vector.broadcast %109 : vector<10x1xf32> to vector<10x128xf32>
    %111 = vector.broadcast %103 : vector<1x128xf32> to vector<10x128xf32>
    %112 = arith.mulf %110, %111 : vector<10x128xf32>
    %113 = arith.addf %102, %112 : vector<10x128xf32>
    %114 = vector.extract_strided_slice %1 {offsets = [9, 0], sizes = [1, 128], strides = [1, 1]} : vector<10x128xf32> to vector<1x128xf32>
    %115 = vector.extract_strided_slice %6 {offsets = [0, 9], sizes = [10, 1], strides = [1, 1]} : vector<10x11xf32> to vector<10x1xf32>
    %116 = vector.broadcast %115 : vector<10x1xf32> to vector<10x128xf32>
    %117 = vector.broadcast %114 : vector<1x128xf32> to vector<10x128xf32>
    %118 = arith.mulf %116, %117 : vector<10x128xf32>
    %119 = arith.addf %108, %118 : vector<10x128xf32>
    %120 = vector.extract_strided_slice %8 {offsets = [0, 9], sizes = [10, 1], strides = [1, 1]} : vector<10x11xf32> to vector<10x1xf32>
    %121 = vector.broadcast %120 : vector<10x1xf32> to vector<10x128xf32>
    %122 = vector.broadcast %114 : vector<1x128xf32> to vector<10x128xf32>
    %123 = arith.mulf %121, %122 : vector<10x128xf32>
    %124 = arith.addf %113, %123 : vector<10x128xf32>
    %125 = vector.broadcast %3 : vector<1x128xf32> to vector<10x128xf32>
    %126 = arith.addf %125, %119 : vector<10x128xf32>
    %cst = arith.constant 0.000000e+00 : f32
    %cst_15 = arith.constant 7.000000e+00 : f32
    %127 = vector.broadcast %cst : f32 to vector<10x128xf32>
    %128 = arith.maximumf %127, %126 : vector<10x128xf32>
    %129 = vector.broadcast %cst_15 : f32 to vector<10x128xf32>
    %130 = arith.minimumf %129, %128 : vector<10x128xf32>
    %131 = vector.broadcast %4 : vector<1x128xf32> to vector<10x128xf32>
    %132 = arith.addf %131, %124 : vector<10x128xf32>
    %cst_16 = arith.constant 0.000000e+00 : f32
    %cst_17 = arith.constant 1.500000e+01 : f32
    %133 = vector.broadcast %cst_16 : f32 to vector<10x128xf32>
    %134 = arith.maximumf %133, %132 : vector<10x128xf32>
    %135 = vector.broadcast %cst_17 : f32 to vector<10x128xf32>
    %136 = arith.minimumf %135, %134 : vector<10x128xf32>
    %137 = math.floor %130 : vector<10x128xf32>
    %138 = math.floor %136 : vector<10x128xf32>
    %139 = arith.subf %130, %137 : vector<10x128xf32>
    %140 = arith.subf %136, %138 : vector<10x128xf32>
    %cst_18 = arith.constant 1.000000e+00 : f32
    %141 = vector.broadcast %cst_18 : f32 to vector<10x128xf32>
    %142 = arith.subf %141, %139 : vector<10x128xf32>
    %cst_19 = arith.constant 1.000000e+00 : f32
    %143 = vector.broadcast %cst_19 : f32 to vector<10x128xf32>
    %144 = arith.subf %143, %140 : vector<10x128xf32>
    %145 = arith.fptosi %137 : vector<10x128xf32> to vector<10x128xi32>
    %146 = arith.fptosi %138 : vector<10x128xf32> to vector<10x128xi32>
    %c1_i32 = arith.constant 1 : i32
    %147 = vector.broadcast %c1_i32 : i32 to vector<10x128xi32>
    %148 = arith.addi %145, %147 : vector<10x128xi32>
    %c7_i32 = arith.constant 7 : i32
    %149 = vector.broadcast %c7_i32 : i32 to vector<10x128xi32>
    %150 = arith.minsi %148, %149 : vector<10x128xi32>
    %c1_i32_20 = arith.constant 1 : i32
    %151 = vector.broadcast %c1_i32_20 : i32 to vector<10x128xi32>
    %152 = arith.addi %146, %151 : vector<10x128xi32>
    %c15_i32 = arith.constant 15 : i32
    %153 = vector.broadcast %c15_i32 : i32 to vector<10x128xi32>
    %154 = arith.minsi %152, %153 : vector<10x128xi32>
    %c8_i32 = arith.constant 8 : i32
    %155 = vector.broadcast %c8_i32 : i32 to vector<10x128xi32>
    %156 = arith.muli %146, %155 : vector<10x128xi32>
    %157 = arith.addi %156, %145 : vector<10x128xi32>
    %c0_i32 = arith.constant 0 : i32
    %158 = vector.broadcast %c0_i32 : i32 to vector<10x128xi32>
    %159 = arith.cmpi slt, %157, %158 : vector<10x128xi32>
    %c128_i32 = arith.constant 128 : i32
    %160 = vector.broadcast %c128_i32 : i32 to vector<10x128xi32>
    %161 = arith.addi %157, %160 : vector<10x128xi32>
    %162 = arith.select %159, %161, %157 : vector<10x128xi1>, vector<10x128xi32>
    %163 = vector.shape_cast %162 : vector<10x128xi32> to vector<10x128x1xi32>
    %164 = vector.shape_cast %163 : vector<10x128x1xi32> to vector<10x128xi32>
    %165 = tpu.dynamic_gather %1[%164] in [1] : vector<10x128xf32>, vector<10x128xi32> -> vector<10x128xf32>
    %166 = arith.mulf %144, %142 : vector<10x128xf32>
    %167 = arith.mulf %165, %166 : vector<10x128xf32>
    %c8_i32_21 = arith.constant 8 : i32
    %168 = vector.broadcast %c8_i32_21 : i32 to vector<10x128xi32>
    %169 = arith.muli %146, %168 : vector<10x128xi32>
    %170 = arith.addi %169, %150 : vector<10x128xi32>
    %c0_i32_22 = arith.constant 0 : i32
    %171 = vector.broadcast %c0_i32_22 : i32 to vector<10x128xi32>
    %172 = arith.cmpi slt, %170, %171 : vector<10x128xi32>
    %c128_i32_23 = arith.constant 128 : i32
    %173 = vector.broadcast %c128_i32_23 : i32 to vector<10x128xi32>
    %174 = arith.addi %170, %173 : vector<10x128xi32>
    %175 = arith.select %172, %174, %170 : vector<10x128xi1>, vector<10x128xi32>
    %176 = vector.shape_cast %175 : vector<10x128xi32> to vector<10x128x1xi32>
    %177 = vector.shape_cast %176 : vector<10x128x1xi32> to vector<10x128xi32>
    %178 = tpu.dynamic_gather %1[%177] in [1] : vector<10x128xf32>, vector<10x128xi32> -> vector<10x128xf32>
    %179 = arith.mulf %144, %139 : vector<10x128xf32>
    %180 = arith.mulf %178, %179 : vector<10x128xf32>
    %181 = arith.addf %167, %180 : vector<10x128xf32>
    %c8_i32_24 = arith.constant 8 : i32
    %182 = vector.broadcast %c8_i32_24 : i32 to vector<10x128xi32>
    %183 = arith.muli %154, %182 : vector<10x128xi32>
    %184 = arith.addi %183, %145 : vector<10x128xi32>
    %c0_i32_25 = arith.constant 0 : i32
    %185 = vector.broadcast %c0_i32_25 : i32 to vector<10x128xi32>
    %186 = arith.cmpi slt, %184, %185 : vector<10x128xi32>
    %c128_i32_26 = arith.constant 128 : i32
    %187 = vector.broadcast %c128_i32_26 : i32 to vector<10x128xi32>
    %188 = arith.addi %184, %187 : vector<10x128xi32>
    %189 = arith.select %186, %188, %184 : vector<10x128xi1>, vector<10x128xi32>
    %190 = vector.shape_cast %189 : vector<10x128xi32> to vector<10x128x1xi32>
    %191 = vector.shape_cast %190 : vector<10x128x1xi32> to vector<10x128xi32>
    %192 = tpu.dynamic_gather %1[%191] in [1] : vector<10x128xf32>, vector<10x128xi32> -> vector<10x128xf32>
    %193 = arith.mulf %140, %142 : vector<10x128xf32>
    %194 = arith.mulf %192, %193 : vector<10x128xf32>
    %195 = arith.addf %181, %194 : vector<10x128xf32>
    %c8_i32_27 = arith.constant 8 : i32
    %196 = vector.broadcast %c8_i32_27 : i32 to vector<10x128xi32>
    %197 = arith.muli %154, %196 : vector<10x128xi32>
    %198 = arith.addi %197, %150 : vector<10x128xi32>
    %c0_i32_28 = arith.constant 0 : i32
    %199 = vector.broadcast %c0_i32_28 : i32 to vector<10x128xi32>
    %200 = arith.cmpi slt, %198, %199 : vector<10x128xi32>
    %c128_i32_29 = arith.constant 128 : i32
    %201 = vector.broadcast %c128_i32_29 : i32 to vector<10x128xi32>
    %202 = arith.addi %198, %201 : vector<10x128xi32>
    %203 = arith.select %200, %202, %198 : vector<10x128xi1>, vector<10x128xi32>
    %204 = vector.shape_cast %203 : vector<10x128xi32> to vector<10x128x1xi32>
    %205 = vector.shape_cast %204 : vector<10x128x1xi32> to vector<10x128xi32>
    %206 = tpu.dynamic_gather %1[%205] in [1] : vector<10x128xf32>, vector<10x128xi32> -> vector<10x128xf32>
    %207 = arith.mulf %140, %139 : vector<10x128xf32>
    %208 = arith.mulf %206, %207 : vector<10x128xf32>
    %209 = arith.addf %195, %208 : vector<10x128xf32>
    %210 = vector.extract_strided_slice %2 {offsets = [0, 0], sizes = [8, 1], strides = [1, 1]} : vector<8x10xf32> to vector<8x1xf32>
    %211 = vector.extract_strided_slice %209 {offsets = [0, 0], sizes = [1, 128], strides = [1, 1]} : vector<10x128xf32> to vector<1x128xf32>
    %212 = vector.broadcast %210 : vector<8x1xf32> to vector<8x128xf32>
    %213 = vector.broadcast %211 : vector<1x128xf32> to vector<8x128xf32>
    %214 = arith.mulf %212, %213 : vector<8x128xf32>
    %215 = vector.extract_strided_slice %2 {offsets = [0, 1], sizes = [8, 1], strides = [1, 1]} : vector<8x10xf32> to vector<8x1xf32>
    %216 = vector.extract_strided_slice %209 {offsets = [1, 0], sizes = [1, 128], strides = [1, 1]} : vector<10x128xf32> to vector<1x128xf32>
    %217 = vector.broadcast %215 : vector<8x1xf32> to vector<8x128xf32>
    %218 = vector.broadcast %216 : vector<1x128xf32> to vector<8x128xf32>
    %219 = arith.mulf %217, %218 : vector<8x128xf32>
    %220 = arith.addf %214, %219 : vector<8x128xf32>
    %221 = vector.extract_strided_slice %2 {offsets = [0, 2], sizes = [8, 1], strides = [1, 1]} : vector<8x10xf32> to vector<8x1xf32>
    %222 = vector.extract_strided_slice %209 {offsets = [2, 0], sizes = [1, 128], strides = [1, 1]} : vector<10x128xf32> to vector<1x128xf32>
    %223 = vector.broadcast %221 : vector<8x1xf32> to vector<8x128xf32>
    %224 = vector.broadcast %222 : vector<1x128xf32> to vector<8x128xf32>
    %225 = arith.mulf %223, %224 : vector<8x128xf32>
    %226 = arith.addf %220, %225 : vector<8x128xf32>
    %227 = vector.extract_strided_slice %2 {offsets = [0, 3], sizes = [8, 1], strides = [1, 1]} : vector<8x10xf32> to vector<8x1xf32>
    %228 = vector.extract_strided_slice %209 {offsets = [3, 0], sizes = [1, 128], strides = [1, 1]} : vector<10x128xf32> to vector<1x128xf32>
    %229 = vector.broadcast %227 : vector<8x1xf32> to vector<8x128xf32>
    %230 = vector.broadcast %228 : vector<1x128xf32> to vector<8x128xf32>
    %231 = arith.mulf %229, %230 : vector<8x128xf32>
    %232 = arith.addf %226, %231 : vector<8x128xf32>
    %233 = vector.extract_strided_slice %2 {offsets = [0, 4], sizes = [8, 1], strides = [1, 1]} : vector<8x10xf32> to vector<8x1xf32>
    %234 = vector.extract_strided_slice %209 {offsets = [4, 0], sizes = [1, 128], strides = [1, 1]} : vector<10x128xf32> to vector<1x128xf32>
    %235 = vector.broadcast %233 : vector<8x1xf32> to vector<8x128xf32>
    %236 = vector.broadcast %234 : vector<1x128xf32> to vector<8x128xf32>
    %237 = arith.mulf %235, %236 : vector<8x128xf32>
    %238 = arith.addf %232, %237 : vector<8x128xf32>
    %239 = vector.extract_strided_slice %2 {offsets = [0, 5], sizes = [8, 1], strides = [1, 1]} : vector<8x10xf32> to vector<8x1xf32>
    %240 = vector.extract_strided_slice %209 {offsets = [5, 0], sizes = [1, 128], strides = [1, 1]} : vector<10x128xf32> to vector<1x128xf32>
    %241 = vector.broadcast %239 : vector<8x1xf32> to vector<8x128xf32>
    %242 = vector.broadcast %240 : vector<1x128xf32> to vector<8x128xf32>
    %243 = arith.mulf %241, %242 : vector<8x128xf32>
    %244 = arith.addf %238, %243 : vector<8x128xf32>
    %245 = vector.extract_strided_slice %2 {offsets = [0, 6], sizes = [8, 1], strides = [1, 1]} : vector<8x10xf32> to vector<8x1xf32>
    %246 = vector.extract_strided_slice %209 {offsets = [6, 0], sizes = [1, 128], strides = [1, 1]} : vector<10x128xf32> to vector<1x128xf32>
    %247 = vector.broadcast %245 : vector<8x1xf32> to vector<8x128xf32>
    %248 = vector.broadcast %246 : vector<1x128xf32> to vector<8x128xf32>
    %249 = arith.mulf %247, %248 : vector<8x128xf32>
    %250 = arith.addf %244, %249 : vector<8x128xf32>
    %251 = vector.extract_strided_slice %2 {offsets = [0, 7], sizes = [8, 1], strides = [1, 1]} : vector<8x10xf32> to vector<8x1xf32>
    %252 = vector.extract_strided_slice %209 {offsets = [7, 0], sizes = [1, 128], strides = [1, 1]} : vector<10x128xf32> to vector<1x128xf32>
    %253 = vector.broadcast %251 : vector<8x1xf32> to vector<8x128xf32>
    %254 = vector.broadcast %252 : vector<1x128xf32> to vector<8x128xf32>
    %255 = arith.mulf %253, %254 : vector<8x128xf32>
    %256 = arith.addf %250, %255 : vector<8x128xf32>
    %257 = vector.extract_strided_slice %2 {offsets = [0, 8], sizes = [8, 1], strides = [1, 1]} : vector<8x10xf32> to vector<8x1xf32>
    %258 = vector.extract_strided_slice %209 {offsets = [8, 0], sizes = [1, 128], strides = [1, 1]} : vector<10x128xf32> to vector<1x128xf32>
    %259 = vector.broadcast %257 : vector<8x1xf32> to vector<8x128xf32>
    %260 = vector.broadcast %258 : vector<1x128xf32> to vector<8x128xf32>
    %261 = arith.mulf %259, %260 : vector<8x128xf32>
    %262 = arith.addf %256, %261 : vector<8x128xf32>
    %263 = vector.extract_strided_slice %2 {offsets = [0, 9], sizes = [8, 1], strides = [1, 1]} : vector<8x10xf32> to vector<8x1xf32>
    %264 = vector.extract_strided_slice %209 {offsets = [9, 0], sizes = [1, 128], strides = [1, 1]} : vector<10x128xf32> to vector<1x128xf32>
    %265 = vector.broadcast %263 : vector<8x1xf32> to vector<8x128xf32>
    %266 = vector.broadcast %264 : vector<1x128xf32> to vector<8x128xf32>
    %267 = arith.mulf %265, %266 : vector<8x128xf32>
    %268 = arith.addf %262, %267 : vector<8x128xf32>
    %c0_30 = arith.constant 0 : index
    %c0_31 = arith.constant 0 : index
    %c0_32 = arith.constant 0 : index
    %c0_33 = arith.constant 0 : index
    %269 = vector.load %arg5[%c0_30, %c0_31, %c0_32, %c0_33] : memref<1x4x8x128xf32, #tpu.memory_space<vmem>>, vector<1x1x8x128xf32>
    %270 = vector.shape_cast %269 : vector<1x1x8x128xf32> to vector<8x128xf32>
    %271 = vector.shape_cast %268 : vector<8x128xf32> to vector<1x1x8x128xf32>
    tpu.vector_store %arg5[%c0_30, %c0_31, %c0_32, %c0_33], %271 {strides = array<i32>} : memref<1x4x8x128xf32, #tpu.memory_space<vmem>>, vector<1x1x8x128xf32>,
    %c1_34 = arith.constant 1 : index
    %c0_35 = arith.constant 0 : index
    %c0_36 = arith.constant 0 : index
    %c0_37 = arith.constant 0 : index
    %272 = vector.load %arg3[%c1_34, %c0_35, %c0_36, %c0_37] : memref<4x2x10x11xf32, #tpu.memory_space<vmem>>, vector<1x1x10x11xf32>
    %273 = vector.shape_cast %272 : vector<1x1x10x11xf32> to vector<10x11xf32>
    %c1_38 = arith.constant 1 : index
    %c1_39 = arith.constant 1 : index
    %c0_40 = arith.constant 0 : index
    %c0_41 = arith.constant 0 : index
    %274 = vector.load %arg3[%c1_38, %c1_39, %c0_40, %c0_41] : memref<4x2x10x11xf32, #tpu.memory_space<vmem>>, vector<1x1x10x11xf32>
    %275 = vector.shape_cast %274 : vector<1x1x10x11xf32> to vector<10x11xf32>
    %276 = vector.extract_strided_slice %273 {offsets = [0, 10], sizes = [10, 1], strides = [1, 1]} : vector<10x11xf32> to vector<10x1xf32>
    %277 = vector.shape_cast %276 : vector<10x1xf32> to vector<10x1xf32>
    %278 = vector.broadcast %277 : vector<10x1xf32> to vector<10x128xf32>
    %279 = vector.extract_strided_slice %275 {offsets = [0, 10], sizes = [10, 1], strides = [1, 1]} : vector<10x11xf32> to vector<10x1xf32>
    %280 = vector.shape_cast %279 : vector<10x1xf32> to vector<10x1xf32>
    %281 = vector.broadcast %280 : vector<10x1xf32> to vector<10x128xf32>
    %282 = vector.extract_strided_slice %1 {offsets = [0, 0], sizes = [1, 128], strides = [1, 1]} : vector<10x128xf32> to vector<1x128xf32>
    %283 = vector.extract_strided_slice %273 {offsets = [0, 0], sizes = [10, 1], strides = [1, 1]} : vector<10x11xf32> to vector<10x1xf32>
    %284 = vector.broadcast %283 : vector<10x1xf32> to vector<10x128xf32>
    %285 = vector.broadcast %282 : vector<1x128xf32> to vector<10x128xf32>
    %286 = arith.mulf %284, %285 : vector<10x128xf32>
    %287 = arith.addf %278, %286 : vector<10x128xf32>
    %288 = vector.extract_strided_slice %275 {offsets = [0, 0], sizes = [10, 1], strides = [1, 1]} : vector<10x11xf32> to vector<10x1xf32>
    %289 = vector.broadcast %288 : vector<10x1xf32> to vector<10x128xf32>
    %290 = vector.broadcast %282 : vector<1x128xf32> to vector<10x128xf32>
    %291 = arith.mulf %289, %290 : vector<10x128xf32>
    %292 = arith.addf %281, %291 : vector<10x128xf32>
    %293 = vector.extract_strided_slice %1 {offsets = [1, 0], sizes = [1, 128], strides = [1, 1]} : vector<10x128xf32> to vector<1x128xf32>
    %294 = vector.extract_strided_slice %273 {offsets = [0, 1], sizes = [10, 1], strides = [1, 1]} : vector<10x11xf32> to vector<10x1xf32>
    %295 = vector.broadcast %294 : vector<10x1xf32> to vector<10x128xf32>
    %296 = vector.broadcast %293 : vector<1x128xf32> to vector<10x128xf32>
    %297 = arith.mulf %295, %296 : vector<10x128xf32>
    %298 = arith.addf %287, %297 : vector<10x128xf32>
    %299 = vector.extract_strided_slice %275 {offsets = [0, 1], sizes = [10, 1], strides = [1, 1]} : vector<10x11xf32> to vector<10x1xf32>
    %300 = vector.broadcast %299 : vector<10x1xf32> to vector<10x128xf32>
    %301 = vector.broadcast %293 : vector<1x128xf32> to vector<10x128xf32>
    %302 = arith.mulf %300, %301 : vector<10x128xf32>
    %303 = arith.addf %292, %302 : vector<10x128xf32>
    %304 = vector.extract_strided_slice %1 {offsets = [2, 0], sizes = [1, 128], strides = [1, 1]} : vector<10x128xf32> to vector<1x128xf32>
    %305 = vector.extract_strided_slice %273 {offsets = [0, 2], sizes = [10, 1], strides = [1, 1]} : vector<10x11xf32> to vector<10x1xf32>
    %306 = vector.broadcast %305 : vector<10x1xf32> to vector<10x128xf32>
    %307 = vector.broadcast %304 : vector<1x128xf32> to vector<10x128xf32>
    %308 = arith.mulf %306, %307 : vector<10x128xf32>
    %309 = arith.addf %298, %308 : vector<10x128xf32>
    %310 = vector.extract_strided_slice %275 {offsets = [0, 2], sizes = [10, 1], strides = [1, 1]} : vector<10x11xf32> to vector<10x1xf32>
    %311 = vector.broadcast %310 : vector<10x1xf32> to vector<10x128xf32>
    %312 = vector.broadcast %304 : vector<1x128xf32> to vector<10x128xf32>
    %313 = arith.mulf %311, %312 : vector<10x128xf32>
    %314 = arith.addf %303, %313 : vector<10x128xf32>
    %315 = vector.extract_strided_slice %1 {offsets = [3, 0], sizes = [1, 128], strides = [1, 1]} : vector<10x128xf32> to vector<1x128xf32>
    %316 = vector.extract_strided_slice %273 {offsets = [0, 3], sizes = [10, 1], strides = [1, 1]} : vector<10x11xf32> to vector<10x1xf32>
    %317 = vector.broadcast %316 : vector<10x1xf32> to vector<10x128xf32>
    %318 = vector.broadcast %315 : vector<1x128xf32> to vector<10x128xf32>
    %319 = arith.mulf %317, %318 : vector<10x128xf32>
    %320 = arith.addf %309, %319 : vector<10x128xf32>
    %321 = vector.extract_strided_slice %275 {offsets = [0, 3], sizes = [10, 1], strides = [1, 1]} : vector<10x11xf32> to vector<10x1xf32>
    %322 = vector.broadcast %321 : vector<10x1xf32> to vector<10x128xf32>
    %323 = vector.broadcast %315 : vector<1x128xf32> to vector<10x128xf32>
    %324 = arith.mulf %322, %323 : vector<10x128xf32>
    %325 = arith.addf %314, %324 : vector<10x128xf32>
    %326 = vector.extract_strided_slice %1 {offsets = [4, 0], sizes = [1, 128], strides = [1, 1]} : vector<10x128xf32> to vector<1x128xf32>
    %327 = vector.extract_strided_slice %273 {offsets = [0, 4], sizes = [10, 1], strides = [1, 1]} : vector<10x11xf32> to vector<10x1xf32>
    %328 = vector.broadcast %327 : vector<10x1xf32> to vector<10x128xf32>
    %329 = vector.broadcast %326 : vector<1x128xf32> to vector<10x128xf32>
    %330 = arith.mulf %328, %329 : vector<10x128xf32>
    %331 = arith.addf %320, %330 : vector<10x128xf32>
    %332 = vector.extract_strided_slice %275 {offsets = [0, 4], sizes = [10, 1], strides = [1, 1]} : vector<10x11xf32> to vector<10x1xf32>
    %333 = vector.broadcast %332 : vector<10x1xf32> to vector<10x128xf32>
    %334 = vector.broadcast %326 : vector<1x128xf32> to vector<10x128xf32>
    %335 = arith.mulf %333, %334 : vector<10x128xf32>
    %336 = arith.addf %325, %335 : vector<10x128xf32>
    %337 = vector.extract_strided_slice %1 {offsets = [5, 0], sizes = [1, 128], strides = [1, 1]} : vector<10x128xf32> to vector<1x128xf32>
    %338 = vector.extract_strided_slice %273 {offsets = [0, 5], sizes = [10, 1], strides = [1, 1]} : vector<10x11xf32> to vector<10x1xf32>
    %339 = vector.broadcast %338 : vector<10x1xf32> to vector<10x128xf32>
    %340 = vector.broadcast %337 : vector<1x128xf32> to vector<10x128xf32>
    %341 = arith.mulf %339, %340 : vector<10x128xf32>
    %342 = arith.addf %331, %341 : vector<10x128xf32>
    %343 = vector.extract_strided_slice %275 {offsets = [0, 5], sizes = [10, 1], strides = [1, 1]} : vector<10x11xf32> to vector<10x1xf32>
    %344 = vector.broadcast %343 : vector<10x1xf32> to vector<10x128xf32>
    %345 = vector.broadcast %337 : vector<1x128xf32> to vector<10x128xf32>
    %346 = arith.mulf %344, %345 : vector<10x128xf32>
    %347 = arith.addf %336, %346 : vector<10x128xf32>
    %348 = vector.extract_strided_slice %1 {offsets = [6, 0], sizes = [1, 128], strides = [1, 1]} : vector<10x128xf32> to vector<1x128xf32>
    %349 = vector.extract_strided_slice %273 {offsets = [0, 6], sizes = [10, 1], strides = [1, 1]} : vector<10x11xf32> to vector<10x1xf32>
    %350 = vector.broadcast %349 : vector<10x1xf32> to vector<10x128xf32>
    %351 = vector.broadcast %348 : vector<1x128xf32> to vector<10x128xf32>
    %352 = arith.mulf %350, %351 : vector<10x128xf32>
    %353 = arith.addf %342, %352 : vector<10x128xf32>
    %354 = vector.extract_strided_slice %275 {offsets = [0, 6], sizes = [10, 1], strides = [1, 1]} : vector<10x11xf32> to vector<10x1xf32>
    %355 = vector.broadcast %354 : vector<10x1xf32> to vector<10x128xf32>
    %356 = vector.broadcast %348 : vector<1x128xf32> to vector<10x128xf32>
    %357 = arith.mulf %355, %356 : vector<10x128xf32>
    %358 = arith.addf %347, %357 : vector<10x128xf32>
    %359 = vector.extract_strided_slice %1 {offsets = [7, 0], sizes = [1, 128], strides = [1, 1]} : vector<10x128xf32> to vector<1x128xf32>
    %360 = vector.extract_strided_slice %273 {offsets = [0, 7], sizes = [10, 1], strides = [1, 1]} : vector<10x11xf32> to vector<10x1xf32>
    %361 = vector.broadcast %360 : vector<10x1xf32> to vector<10x128xf32>
    %362 = vector.broadcast %359 : vector<1x128xf32> to vector<10x128xf32>
    %363 = arith.mulf %361, %362 : vector<10x128xf32>
    %364 = arith.addf %353, %363 : vector<10x128xf32>
    %365 = vector.extract_strided_slice %275 {offsets = [0, 7], sizes = [10, 1], strides = [1, 1]} : vector<10x11xf32> to vector<10x1xf32>
    %366 = vector.broadcast %365 : vector<10x1xf32> to vector<10x128xf32>
    %367 = vector.broadcast %359 : vector<1x128xf32> to vector<10x128xf32>
    %368 = arith.mulf %366, %367 : vector<10x128xf32>
    %369 = arith.addf %358, %368 : vector<10x128xf32>
    %370 = vector.extract_strided_slice %1 {offsets = [8, 0], sizes = [1, 128], strides = [1, 1]} : vector<10x128xf32> to vector<1x128xf32>
    %371 = vector.extract_strided_slice %273 {offsets = [0, 8], sizes = [10, 1], strides = [1, 1]} : vector<10x11xf32> to vector<10x1xf32>
    %372 = vector.broadcast %371 : vector<10x1xf32> to vector<10x128xf32>
    %373 = vector.broadcast %370 : vector<1x128xf32> to vector<10x128xf32>
    %374 = arith.mulf %372, %373 : vector<10x128xf32>
    %375 = arith.addf %364, %374 : vector<10x128xf32>
    %376 = vector.extract_strided_slice %275 {offsets = [0, 8], sizes = [10, 1], strides = [1, 1]} : vector<10x11xf32> to vector<10x1xf32>
    %377 = vector.broadcast %376 : vector<10x1xf32> to vector<10x128xf32>
    %378 = vector.broadcast %370 : vector<1x128xf32> to vector<10x128xf32>
    %379 = arith.mulf %377, %378 : vector<10x128xf32>
    %380 = arith.addf %369, %379 : vector<10x128xf32>
    %381 = vector.extract_strided_slice %1 {offsets = [9, 0], sizes = [1, 128], strides = [1, 1]} : vector<10x128xf32> to vector<1x128xf32>
    %382 = vector.extract_strided_slice %273 {offsets = [0, 9], sizes = [10, 1], strides = [1, 1]} : vector<10x11xf32> to vector<10x1xf32>
    %383 = vector.broadcast %382 : vector<10x1xf32> to vector<10x128xf32>
    %384 = vector.broadcast %381 : vector<1x128xf32> to vector<10x128xf32>
    %385 = arith.mulf %383, %384 : vector<10x128xf32>
    %386 = arith.addf %375, %385 : vector<10x128xf32>
    %387 = vector.extract_strided_slice %275 {offsets = [0, 9], sizes = [10, 1], strides = [1, 1]} : vector<10x11xf32> to vector<10x1xf32>
    %388 = vector.broadcast %387 : vector<10x1xf32> to vector<10x128xf32>
    %389 = vector.broadcast %381 : vector<1x128xf32> to vector<10x128xf32>
    %390 = arith.mulf %388, %389 : vector<10x128xf32>
    %391 = arith.addf %380, %390 : vector<10x128xf32>
    %392 = vector.broadcast %3 : vector<1x128xf32> to vector<10x128xf32>
    %393 = arith.addf %392, %386 : vector<10x128xf32>
    %cst_42 = arith.constant 0.000000e+00 : f32
    %cst_43 = arith.constant 7.000000e+00 : f32
    %394 = vector.broadcast %cst_42 : f32 to vector<10x128xf32>
    %395 = arith.maximumf %394, %393 : vector<10x128xf32>
    %396 = vector.broadcast %cst_43 : f32 to vector<10x128xf32>
    %397 = arith.minimumf %396, %395 : vector<10x128xf32>
    %398 = vector.broadcast %4 : vector<1x128xf32> to vector<10x128xf32>
    %399 = arith.addf %398, %391 : vector<10x128xf32>
    %cst_44 = arith.constant 0.000000e+00 : f32
    %cst_45 = arith.constant 1.500000e+01 : f32
    %400 = vector.broadcast %cst_44 : f32 to vector<10x128xf32>
    %401 = arith.maximumf %400, %399 : vector<10x128xf32>
    %402 = vector.broadcast %cst_45 : f32 to vector<10x128xf32>
    %403 = arith.minimumf %402, %401 : vector<10x128xf32>
    %404 = math.floor %397 : vector<10x128xf32>
    %405 = math.floor %403 : vector<10x128xf32>
    %406 = arith.subf %397, %404 : vector<10x128xf32>
    %407 = arith.subf %403, %405 : vector<10x128xf32>
    %cst_46 = arith.constant 1.000000e+00 : f32
    %408 = vector.broadcast %cst_46 : f32 to vector<10x128xf32>
    %409 = arith.subf %408, %406 : vector<10x128xf32>
    %cst_47 = arith.constant 1.000000e+00 : f32
    %410 = vector.broadcast %cst_47 : f32 to vector<10x128xf32>
    %411 = arith.subf %410, %407 : vector<10x128xf32>
    %412 = arith.fptosi %404 : vector<10x128xf32> to vector<10x128xi32>
    %413 = arith.fptosi %405 : vector<10x128xf32> to vector<10x128xi32>
    %c1_i32_48 = arith.constant 1 : i32
    %414 = vector.broadcast %c1_i32_48 : i32 to vector<10x128xi32>
    %415 = arith.addi %412, %414 : vector<10x128xi32>
    %c7_i32_49 = arith.constant 7 : i32
    %416 = vector.broadcast %c7_i32_49 : i32 to vector<10x128xi32>
    %417 = arith.minsi %415, %416 : vector<10x128xi32>
    %c1_i32_50 = arith.constant 1 : i32
    %418 = vector.broadcast %c1_i32_50 : i32 to vector<10x128xi32>
    %419 = arith.addi %413, %418 : vector<10x128xi32>
    %c15_i32_51 = arith.constant 15 : i32
    %420 = vector.broadcast %c15_i32_51 : i32 to vector<10x128xi32>
    %421 = arith.minsi %419, %420 : vector<10x128xi32>
    %c8_i32_52 = arith.constant 8 : i32
    %422 = vector.broadcast %c8_i32_52 : i32 to vector<10x128xi32>
    %423 = arith.muli %413, %422 : vector<10x128xi32>
    %424 = arith.addi %423, %412 : vector<10x128xi32>
    %c0_i32_53 = arith.constant 0 : i32
    %425 = vector.broadcast %c0_i32_53 : i32 to vector<10x128xi32>
    %426 = arith.cmpi slt, %424, %425 : vector<10x128xi32>
    %c128_i32_54 = arith.constant 128 : i32
    %427 = vector.broadcast %c128_i32_54 : i32 to vector<10x128xi32>
    %428 = arith.addi %424, %427 : vector<10x128xi32>
    %429 = arith.select %426, %428, %424 : vector<10x128xi1>, vector<10x128xi32>
    %430 = vector.shape_cast %429 : vector<10x128xi32> to vector<10x128x1xi32>
    %431 = vector.shape_cast %430 : vector<10x128x1xi32> to vector<10x128xi32>
    %432 = tpu.dynamic_gather %1[%431] in [1] : vector<10x128xf32>, vector<10x128xi32> -> vector<10x128xf32>
    %433 = arith.mulf %411, %409 : vector<10x128xf32>
    %434 = arith.mulf %432, %433 : vector<10x128xf32>
    %c8_i32_55 = arith.constant 8 : i32
    %435 = vector.broadcast %c8_i32_55 : i32 to vector<10x128xi32>
    %436 = arith.muli %413, %435 : vector<10x128xi32>
    %437 = arith.addi %436, %417 : vector<10x128xi32>
    %c0_i32_56 = arith.constant 0 : i32
    %438 = vector.broadcast %c0_i32_56 : i32 to vector<10x128xi32>
    %439 = arith.cmpi slt, %437, %438 : vector<10x128xi32>
    %c128_i32_57 = arith.constant 128 : i32
    %440 = vector.broadcast %c128_i32_57 : i32 to vector<10x128xi32>
    %441 = arith.addi %437, %440 : vector<10x128xi32>
    %442 = arith.select %439, %441, %437 : vector<10x128xi1>, vector<10x128xi32>
    %443 = vector.shape_cast %442 : vector<10x128xi32> to vector<10x128x1xi32>
    %444 = vector.shape_cast %443 : vector<10x128x1xi32> to vector<10x128xi32>
    %445 = tpu.dynamic_gather %1[%444] in [1] : vector<10x128xf32>, vector<10x128xi32> -> vector<10x128xf32>
    %446 = arith.mulf %411, %406 : vector<10x128xf32>
    %447 = arith.mulf %445, %446 : vector<10x128xf32>
    %448 = arith.addf %434, %447 : vector<10x128xf32>
    %c8_i32_58 = arith.constant 8 : i32
    %449 = vector.broadcast %c8_i32_58 : i32 to vector<10x128xi32>
    %450 = arith.muli %421, %449 : vector<10x128xi32>
    %451 = arith.addi %450, %412 : vector<10x128xi32>
    %c0_i32_59 = arith.constant 0 : i32
    %452 = vector.broadcast %c0_i32_59 : i32 to vector<10x128xi32>
    %453 = arith.cmpi slt, %451, %452 : vector<10x128xi32>
    %c128_i32_60 = arith.constant 128 : i32
    %454 = vector.broadcast %c128_i32_60 : i32 to vector<10x128xi32>
    %455 = arith.addi %451, %454 : vector<10x128xi32>
    %456 = arith.select %453, %455, %451 : vector<10x128xi1>, vector<10x128xi32>
    %457 = vector.shape_cast %456 : vector<10x128xi32> to vector<10x128x1xi32>
    %458 = vector.shape_cast %457 : vector<10x128x1xi32> to vector<10x128xi32>
    %459 = tpu.dynamic_gather %1[%458] in [1] : vector<10x128xf32>, vector<10x128xi32> -> vector<10x128xf32>
    %460 = arith.mulf %407, %409 : vector<10x128xf32>
    %461 = arith.mulf %459, %460 : vector<10x128xf32>
    %462 = arith.addf %448, %461 : vector<10x128xf32>
    %c8_i32_61 = arith.constant 8 : i32
    %463 = vector.broadcast %c8_i32_61 : i32 to vector<10x128xi32>
    %464 = arith.muli %421, %463 : vector<10x128xi32>
    %465 = arith.addi %464, %417 : vector<10x128xi32>
    %c0_i32_62 = arith.constant 0 : i32
    %466 = vector.broadcast %c0_i32_62 : i32 to vector<10x128xi32>
    %467 = arith.cmpi slt, %465, %466 : vector<10x128xi32>
    %c128_i32_63 = arith.constant 128 : i32
    %468 = vector.broadcast %c128_i32_63 : i32 to vector<10x128xi32>
    %469 = arith.addi %465, %468 : vector<10x128xi32>
    %470 = arith.select %467, %469, %465 : vector<10x128xi1>, vector<10x128xi32>
    %471 = vector.shape_cast %470 : vector<10x128xi32> to vector<10x128x1xi32>
    %472 = vector.shape_cast %471 : vector<10x128x1xi32> to vector<10x128xi32>
    %473 = tpu.dynamic_gather %1[%472] in [1] : vector<10x128xf32>, vector<10x128xi32> -> vector<10x128xf32>
    %474 = arith.mulf %407, %406 : vector<10x128xf32>
    %475 = arith.mulf %473, %474 : vector<10x128xf32>
    %476 = arith.addf %462, %475 : vector<10x128xf32>
    %477 = vector.extract_strided_slice %2 {offsets = [0, 0], sizes = [8, 1], strides = [1, 1]} : vector<8x10xf32> to vector<8x1xf32>
    %478 = vector.extract_strided_slice %476 {offsets = [0, 0], sizes = [1, 128], strides = [1, 1]} : vector<10x128xf32> to vector<1x128xf32>
    %479 = vector.broadcast %477 : vector<8x1xf32> to vector<8x128xf32>
    %480 = vector.broadcast %478 : vector<1x128xf32> to vector<8x128xf32>
    %481 = arith.mulf %479, %480 : vector<8x128xf32>
    %482 = vector.extract_strided_slice %2 {offsets = [0, 1], sizes = [8, 1], strides = [1, 1]} : vector<8x10xf32> to vector<8x1xf32>
    %483 = vector.extract_strided_slice %476 {offsets = [1, 0], sizes = [1, 128], strides = [1, 1]} : vector<10x128xf32> to vector<1x128xf32>
    %484 = vector.broadcast %482 : vector<8x1xf32> to vector<8x128xf32>
    %485 = vector.broadcast %483 : vector<1x128xf32> to vector<8x128xf32>
    %486 = arith.mulf %484, %485 : vector<8x128xf32>
    %487 = arith.addf %481, %486 : vector<8x128xf32>
    %488 = vector.extract_strided_slice %2 {offsets = [0, 2], sizes = [8, 1], strides = [1, 1]} : vector<8x10xf32> to vector<8x1xf32>
    %489 = vector.extract_strided_slice %476 {offsets = [2, 0], sizes = [1, 128], strides = [1, 1]} : vector<10x128xf32> to vector<1x128xf32>
    %490 = vector.broadcast %488 : vector<8x1xf32> to vector<8x128xf32>
    %491 = vector.broadcast %489 : vector<1x128xf32> to vector<8x128xf32>
    %492 = arith.mulf %490, %491 : vector<8x128xf32>
    %493 = arith.addf %487, %492 : vector<8x128xf32>
    %494 = vector.extract_strided_slice %2 {offsets = [0, 3], sizes = [8, 1], strides = [1, 1]} : vector<8x10xf32> to vector<8x1xf32>
    %495 = vector.extract_strided_slice %476 {offsets = [3, 0], sizes = [1, 128], strides = [1, 1]} : vector<10x128xf32> to vector<1x128xf32>
    %496 = vector.broadcast %494 : vector<8x1xf32> to vector<8x128xf32>
    %497 = vector.broadcast %495 : vector<1x128xf32> to vector<8x128xf32>
    %498 = arith.mulf %496, %497 : vector<8x128xf32>
    %499 = arith.addf %493, %498 : vector<8x128xf32>
    %500 = vector.extract_strided_slice %2 {offsets = [0, 4], sizes = [8, 1], strides = [1, 1]} : vector<8x10xf32> to vector<8x1xf32>
    %501 = vector.extract_strided_slice %476 {offsets = [4, 0], sizes = [1, 128], strides = [1, 1]} : vector<10x128xf32> to vector<1x128xf32>
    %502 = vector.broadcast %500 : vector<8x1xf32> to vector<8x128xf32>
    %503 = vector.broadcast %501 : vector<1x128xf32> to vector<8x128xf32>
    %504 = arith.mulf %502, %503 : vector<8x128xf32>
    %505 = arith.addf %499, %504 : vector<8x128xf32>
    %506 = vector.extract_strided_slice %2 {offsets = [0, 5], sizes = [8, 1], strides = [1, 1]} : vector<8x10xf32> to vector<8x1xf32>
    %507 = vector.extract_strided_slice %476 {offsets = [5, 0], sizes = [1, 128], strides = [1, 1]} : vector<10x128xf32> to vector<1x128xf32>
    %508 = vector.broadcast %506 : vector<8x1xf32> to vector<8x128xf32>
    %509 = vector.broadcast %507 : vector<1x128xf32> to vector<8x128xf32>
    %510 = arith.mulf %508, %509 : vector<8x128xf32>
    %511 = arith.addf %505, %510 : vector<8x128xf32>
    %512 = vector.extract_strided_slice %2 {offsets = [0, 6], sizes = [8, 1], strides = [1, 1]} : vector<8x10xf32> to vector<8x1xf32>
    %513 = vector.extract_strided_slice %476 {offsets = [6, 0], sizes = [1, 128], strides = [1, 1]} : vector<10x128xf32> to vector<1x128xf32>
    %514 = vector.broadcast %512 : vector<8x1xf32> to vector<8x128xf32>
    %515 = vector.broadcast %513 : vector<1x128xf32> to vector<8x128xf32>
    %516 = arith.mulf %514, %515 : vector<8x128xf32>
    %517 = arith.addf %511, %516 : vector<8x128xf32>
    %518 = vector.extract_strided_slice %2 {offsets = [0, 7], sizes = [8, 1], strides = [1, 1]} : vector<8x10xf32> to vector<8x1xf32>
    %519 = vector.extract_strided_slice %476 {offsets = [7, 0], sizes = [1, 128], strides = [1, 1]} : vector<10x128xf32> to vector<1x128xf32>
    %520 = vector.broadcast %518 : vector<8x1xf32> to vector<8x128xf32>
    %521 = vector.broadcast %519 : vector<1x128xf32> to vector<8x128xf32>
    %522 = arith.mulf %520, %521 : vector<8x128xf32>
    %523 = arith.addf %517, %522 : vector<8x128xf32>
    %524 = vector.extract_strided_slice %2 {offsets = [0, 8], sizes = [8, 1], strides = [1, 1]} : vector<8x10xf32> to vector<8x1xf32>
    %525 = vector.extract_strided_slice %476 {offsets = [8, 0], sizes = [1, 128], strides = [1, 1]} : vector<10x128xf32> to vector<1x128xf32>
    %526 = vector.broadcast %524 : vector<8x1xf32> to vector<8x128xf32>
    %527 = vector.broadcast %525 : vector<1x128xf32> to vector<8x128xf32>
    %528 = arith.mulf %526, %527 : vector<8x128xf32>
    %529 = arith.addf %523, %528 : vector<8x128xf32>
    %530 = vector.extract_strided_slice %2 {offsets = [0, 9], sizes = [8, 1], strides = [1, 1]} : vector<8x10xf32> to vector<8x1xf32>
    %531 = vector.extract_strided_slice %476 {offsets = [9, 0], sizes = [1, 128], strides = [1, 1]} : vector<10x128xf32> to vector<1x128xf32>
    %532 = vector.broadcast %530 : vector<8x1xf32> to vector<8x128xf32>
    %533 = vector.broadcast %531 : vector<1x128xf32> to vector<8x128xf32>
    %534 = arith.mulf %532, %533 : vector<8x128xf32>
    %535 = arith.addf %529, %534 : vector<8x128xf32>
    %c0_64 = arith.constant 0 : index
    %c1_65 = arith.constant 1 : index
    %c0_66 = arith.constant 0 : index
    %c0_67 = arith.constant 0 : index
    %536 = vector.load %arg5[%c0_64, %c1_65, %c0_66, %c0_67] : memref<1x4x8x128xf32, #tpu.memory_space<vmem>>, vector<1x1x8x128xf32>
    %537 = vector.shape_cast %536 : vector<1x1x8x128xf32> to vector<8x128xf32>
    %538 = vector.shape_cast %535 : vector<8x128xf32> to vector<1x1x8x128xf32>
    tpu.vector_store %arg5[%c0_64, %c1_65, %c0_66, %c0_67], %538 {strides = array<i32>} : memref<1x4x8x128xf32, #tpu.memory_space<vmem>>, vector<1x1x8x128xf32>,
    %c2 = arith.constant 2 : index
    %c0_68 = arith.constant 0 : index
    %c0_69 = arith.constant 0 : index
    %c0_70 = arith.constant 0 : index
    %539 = vector.load %arg3[%c2, %c0_68, %c0_69, %c0_70] : memref<4x2x10x11xf32, #tpu.memory_space<vmem>>, vector<1x1x10x11xf32>
    %540 = vector.shape_cast %539 : vector<1x1x10x11xf32> to vector<10x11xf32>
    %c2_71 = arith.constant 2 : index
    %c1_72 = arith.constant 1 : index
    %c0_73 = arith.constant 0 : index
    %c0_74 = arith.constant 0 : index
    %541 = vector.load %arg3[%c2_71, %c1_72, %c0_73, %c0_74] : memref<4x2x10x11xf32, #tpu.memory_space<vmem>>, vector<1x1x10x11xf32>
    %542 = vector.shape_cast %541 : vector<1x1x10x11xf32> to vector<10x11xf32>
    %543 = vector.extract_strided_slice %540 {offsets = [0, 10], sizes = [10, 1], strides = [1, 1]} : vector<10x11xf32> to vector<10x1xf32>
    %544 = vector.shape_cast %543 : vector<10x1xf32> to vector<10x1xf32>
    %545 = vector.broadcast %544 : vector<10x1xf32> to vector<10x128xf32>
    %546 = vector.extract_strided_slice %542 {offsets = [0, 10], sizes = [10, 1], strides = [1, 1]} : vector<10x11xf32> to vector<10x1xf32>
    %547 = vector.shape_cast %546 : vector<10x1xf32> to vector<10x1xf32>
    %548 = vector.broadcast %547 : vector<10x1xf32> to vector<10x128xf32>
    %549 = vector.extract_strided_slice %1 {offsets = [0, 0], sizes = [1, 128], strides = [1, 1]} : vector<10x128xf32> to vector<1x128xf32>
    %550 = vector.extract_strided_slice %540 {offsets = [0, 0], sizes = [10, 1], strides = [1, 1]} : vector<10x11xf32> to vector<10x1xf32>
    %551 = vector.broadcast %550 : vector<10x1xf32> to vector<10x128xf32>
    %552 = vector.broadcast %549 : vector<1x128xf32> to vector<10x128xf32>
    %553 = arith.mulf %551, %552 : vector<10x128xf32>
    %554 = arith.addf %545, %553 : vector<10x128xf32>
    %555 = vector.extract_strided_slice %542 {offsets = [0, 0], sizes = [10, 1], strides = [1, 1]} : vector<10x11xf32> to vector<10x1xf32>
    %556 = vector.broadcast %555 : vector<10x1xf32> to vector<10x128xf32>
    %557 = vector.broadcast %549 : vector<1x128xf32> to vector<10x128xf32>
    %558 = arith.mulf %556, %557 : vector<10x128xf32>
    %559 = arith.addf %548, %558 : vector<10x128xf32>
    %560 = vector.extract_strided_slice %1 {offsets = [1, 0], sizes = [1, 128], strides = [1, 1]} : vector<10x128xf32> to vector<1x128xf32>
    %561 = vector.extract_strided_slice %540 {offsets = [0, 1], sizes = [10, 1], strides = [1, 1]} : vector<10x11xf32> to vector<10x1xf32>
    %562 = vector.broadcast %561 : vector<10x1xf32> to vector<10x128xf32>
    %563 = vector.broadcast %560 : vector<1x128xf32> to vector<10x128xf32>
    %564 = arith.mulf %562, %563 : vector<10x128xf32>
    %565 = arith.addf %554, %564 : vector<10x128xf32>
    %566 = vector.extract_strided_slice %542 {offsets = [0, 1], sizes = [10, 1], strides = [1, 1]} : vector<10x11xf32> to vector<10x1xf32>
    %567 = vector.broadcast %566 : vector<10x1xf32> to vector<10x128xf32>
    %568 = vector.broadcast %560 : vector<1x128xf32> to vector<10x128xf32>
    %569 = arith.mulf %567, %568 : vector<10x128xf32>
    %570 = arith.addf %559, %569 : vector<10x128xf32>
    %571 = vector.extract_strided_slice %1 {offsets = [2, 0], sizes = [1, 128], strides = [1, 1]} : vector<10x128xf32> to vector<1x128xf32>
    %572 = vector.extract_strided_slice %540 {offsets = [0, 2], sizes = [10, 1], strides = [1, 1]} : vector<10x11xf32> to vector<10x1xf32>
    %573 = vector.broadcast %572 : vector<10x1xf32> to vector<10x128xf32>
    %574 = vector.broadcast %571 : vector<1x128xf32> to vector<10x128xf32>
    %575 = arith.mulf %573, %574 : vector<10x128xf32>
    %576 = arith.addf %565, %575 : vector<10x128xf32>
    %577 = vector.extract_strided_slice %542 {offsets = [0, 2], sizes = [10, 1], strides = [1, 1]} : vector<10x11xf32> to vector<10x1xf32>
    %578 = vector.broadcast %577 : vector<10x1xf32> to vector<10x128xf32>
    %579 = vector.broadcast %571 : vector<1x128xf32> to vector<10x128xf32>
    %580 = arith.mulf %578, %579 : vector<10x128xf32>
    %581 = arith.addf %570, %580 : vector<10x128xf32>
    %582 = vector.extract_strided_slice %1 {offsets = [3, 0], sizes = [1, 128], strides = [1, 1]} : vector<10x128xf32> to vector<1x128xf32>
    %583 = vector.extract_strided_slice %540 {offsets = [0, 3], sizes = [10, 1], strides = [1, 1]} : vector<10x11xf32> to vector<10x1xf32>
    %584 = vector.broadcast %583 : vector<10x1xf32> to vector<10x128xf32>
    %585 = vector.broadcast %582 : vector<1x128xf32> to vector<10x128xf32>
    %586 = arith.mulf %584, %585 : vector<10x128xf32>
    %587 = arith.addf %576, %586 : vector<10x128xf32>
    %588 = vector.extract_strided_slice %542 {offsets = [0, 3], sizes = [10, 1], strides = [1, 1]} : vector<10x11xf32> to vector<10x1xf32>
    %589 = vector.broadcast %588 : vector<10x1xf32> to vector<10x128xf32>
    %590 = vector.broadcast %582 : vector<1x128xf32> to vector<10x128xf32>
    %591 = arith.mulf %589, %590 : vector<10x128xf32>
    %592 = arith.addf %581, %591 : vector<10x128xf32>
    %593 = vector.extract_strided_slice %1 {offsets = [4, 0], sizes = [1, 128], strides = [1, 1]} : vector<10x128xf32> to vector<1x128xf32>
    %594 = vector.extract_strided_slice %540 {offsets = [0, 4], sizes = [10, 1], strides = [1, 1]} : vector<10x11xf32> to vector<10x1xf32>
    %595 = vector.broadcast %594 : vector<10x1xf32> to vector<10x128xf32>
    %596 = vector.broadcast %593 : vector<1x128xf32> to vector<10x128xf32>
    %597 = arith.mulf %595, %596 : vector<10x128xf32>
    %598 = arith.addf %587, %597 : vector<10x128xf32>
    %599 = vector.extract_strided_slice %542 {offsets = [0, 4], sizes = [10, 1], strides = [1, 1]} : vector<10x11xf32> to vector<10x1xf32>
    %600 = vector.broadcast %599 : vector<10x1xf32> to vector<10x128xf32>
    %601 = vector.broadcast %593 : vector<1x128xf32> to vector<10x128xf32>
    %602 = arith.mulf %600, %601 : vector<10x128xf32>
    %603 = arith.addf %592, %602 : vector<10x128xf32>
    %604 = vector.extract_strided_slice %1 {offsets = [5, 0], sizes = [1, 128], strides = [1, 1]} : vector<10x128xf32> to vector<1x128xf32>
    %605 = vector.extract_strided_slice %540 {offsets = [0, 5], sizes = [10, 1], strides = [1, 1]} : vector<10x11xf32> to vector<10x1xf32>
    %606 = vector.broadcast %605 : vector<10x1xf32> to vector<10x128xf32>
    %607 = vector.broadcast %604 : vector<1x128xf32> to vector<10x128xf32>
    %608 = arith.mulf %606, %607 : vector<10x128xf32>
    %609 = arith.addf %598, %608 : vector<10x128xf32>
    %610 = vector.extract_strided_slice %542 {offsets = [0, 5], sizes = [10, 1], strides = [1, 1]} : vector<10x11xf32> to vector<10x1xf32>
    %611 = vector.broadcast %610 : vector<10x1xf32> to vector<10x128xf32>
    %612 = vector.broadcast %604 : vector<1x128xf32> to vector<10x128xf32>
    %613 = arith.mulf %611, %612 : vector<10x128xf32>
    %614 = arith.addf %603, %613 : vector<10x128xf32>
    %615 = vector.extract_strided_slice %1 {offsets = [6, 0], sizes = [1, 128], strides = [1, 1]} : vector<10x128xf32> to vector<1x128xf32>
    %616 = vector.extract_strided_slice %540 {offsets = [0, 6], sizes = [10, 1], strides = [1, 1]} : vector<10x11xf32> to vector<10x1xf32>
    %617 = vector.broadcast %616 : vector<10x1xf32> to vector<10x128xf32>
    %618 = vector.broadcast %615 : vector<1x128xf32> to vector<10x128xf32>
    %619 = arith.mulf %617, %618 : vector<10x128xf32>
    %620 = arith.addf %609, %619 : vector<10x128xf32>
    %621 = vector.extract_strided_slice %542 {offsets = [0, 6], sizes = [10, 1], strides = [1, 1]} : vector<10x11xf32> to vector<10x1xf32>
    %622 = vector.broadcast %621 : vector<10x1xf32> to vector<10x128xf32>
    %623 = vector.broadcast %615 : vector<1x128xf32> to vector<10x128xf32>
    %624 = arith.mulf %622, %623 : vector<10x128xf32>
    %625 = arith.addf %614, %624 : vector<10x128xf32>
    %626 = vector.extract_strided_slice %1 {offsets = [7, 0], sizes = [1, 128], strides = [1, 1]} : vector<10x128xf32> to vector<1x128xf32>
    %627 = vector.extract_strided_slice %540 {offsets = [0, 7], sizes = [10, 1], strides = [1, 1]} : vector<10x11xf32> to vector<10x1xf32>
    %628 = vector.broadcast %627 : vector<10x1xf32> to vector<10x128xf32>
    %629 = vector.broadcast %626 : vector<1x128xf32> to vector<10x128xf32>
    %630 = arith.mulf %628, %629 : vector<10x128xf32>
    %631 = arith.addf %620, %630 : vector<10x128xf32>
    %632 = vector.extract_strided_slice %542 {offsets = [0, 7], sizes = [10, 1], strides = [1, 1]} : vector<10x11xf32> to vector<10x1xf32>
    %633 = vector.broadcast %632 : vector<10x1xf32> to vector<10x128xf32>
    %634 = vector.broadcast %626 : vector<1x128xf32> to vector<10x128xf32>
    %635 = arith.mulf %633, %634 : vector<10x128xf32>
    %636 = arith.addf %625, %635 : vector<10x128xf32>
    %637 = vector.extract_strided_slice %1 {offsets = [8, 0], sizes = [1, 128], strides = [1, 1]} : vector<10x128xf32> to vector<1x128xf32>
    %638 = vector.extract_strided_slice %540 {offsets = [0, 8], sizes = [10, 1], strides = [1, 1]} : vector<10x11xf32> to vector<10x1xf32>
    %639 = vector.broadcast %638 : vector<10x1xf32> to vector<10x128xf32>
    %640 = vector.broadcast %637 : vector<1x128xf32> to vector<10x128xf32>
    %641 = arith.mulf %639, %640 : vector<10x128xf32>
    %642 = arith.addf %631, %641 : vector<10x128xf32>
    %643 = vector.extract_strided_slice %542 {offsets = [0, 8], sizes = [10, 1], strides = [1, 1]} : vector<10x11xf32> to vector<10x1xf32>
    %644 = vector.broadcast %643 : vector<10x1xf32> to vector<10x128xf32>
    %645 = vector.broadcast %637 : vector<1x128xf32> to vector<10x128xf32>
    %646 = arith.mulf %644, %645 : vector<10x128xf32>
    %647 = arith.addf %636, %646 : vector<10x128xf32>
    %648 = vector.extract_strided_slice %1 {offsets = [9, 0], sizes = [1, 128], strides = [1, 1]} : vector<10x128xf32> to vector<1x128xf32>
    %649 = vector.extract_strided_slice %540 {offsets = [0, 9], sizes = [10, 1], strides = [1, 1]} : vector<10x11xf32> to vector<10x1xf32>
    %650 = vector.broadcast %649 : vector<10x1xf32> to vector<10x128xf32>
    %651 = vector.broadcast %648 : vector<1x128xf32> to vector<10x128xf32>
    %652 = arith.mulf %650, %651 : vector<10x128xf32>
    %653 = arith.addf %642, %652 : vector<10x128xf32>
    %654 = vector.extract_strided_slice %542 {offsets = [0, 9], sizes = [10, 1], strides = [1, 1]} : vector<10x11xf32> to vector<10x1xf32>
    %655 = vector.broadcast %654 : vector<10x1xf32> to vector<10x128xf32>
    %656 = vector.broadcast %648 : vector<1x128xf32> to vector<10x128xf32>
    %657 = arith.mulf %655, %656 : vector<10x128xf32>
    %658 = arith.addf %647, %657 : vector<10x128xf32>
    %659 = vector.broadcast %3 : vector<1x128xf32> to vector<10x128xf32>
    %660 = arith.addf %659, %653 : vector<10x128xf32>
    %cst_75 = arith.constant 0.000000e+00 : f32
    %cst_76 = arith.constant 7.000000e+00 : f32
    %661 = vector.broadcast %cst_75 : f32 to vector<10x128xf32>
    %662 = arith.maximumf %661, %660 : vector<10x128xf32>
    %663 = vector.broadcast %cst_76 : f32 to vector<10x128xf32>
    %664 = arith.minimumf %663, %662 : vector<10x128xf32>
    %665 = vector.broadcast %4 : vector<1x128xf32> to vector<10x128xf32>
    %666 = arith.addf %665, %658 : vector<10x128xf32>
    %cst_77 = arith.constant 0.000000e+00 : f32
    %cst_78 = arith.constant 1.500000e+01 : f32
    %667 = vector.broadcast %cst_77 : f32 to vector<10x128xf32>
    %668 = arith.maximumf %667, %666 : vector<10x128xf32>
    %669 = vector.broadcast %cst_78 : f32 to vector<10x128xf32>
    %670 = arith.minimumf %669, %668 : vector<10x128xf32>
    %671 = math.floor %664 : vector<10x128xf32>
    %672 = math.floor %670 : vector<10x128xf32>
    %673 = arith.subf %664, %671 : vector<10x128xf32>
    %674 = arith.subf %670, %672 : vector<10x128xf32>
    %cst_79 = arith.constant 1.000000e+00 : f32
    %675 = vector.broadcast %cst_79 : f32 to vector<10x128xf32>
    %676 = arith.subf %675, %673 : vector<10x128xf32>
    %cst_80 = arith.constant 1.000000e+00 : f32
    %677 = vector.broadcast %cst_80 : f32 to vector<10x128xf32>
    %678 = arith.subf %677, %674 : vector<10x128xf32>
    %679 = arith.fptosi %671 : vector<10x128xf32> to vector<10x128xi32>
    %680 = arith.fptosi %672 : vector<10x128xf32> to vector<10x128xi32>
    %c1_i32_81 = arith.constant 1 : i32
    %681 = vector.broadcast %c1_i32_81 : i32 to vector<10x128xi32>
    %682 = arith.addi %679, %681 : vector<10x128xi32>
    %c7_i32_82 = arith.constant 7 : i32
    %683 = vector.broadcast %c7_i32_82 : i32 to vector<10x128xi32>
    %684 = arith.minsi %682, %683 : vector<10x128xi32>
    %c1_i32_83 = arith.constant 1 : i32
    %685 = vector.broadcast %c1_i32_83 : i32 to vector<10x128xi32>
    %686 = arith.addi %680, %685 : vector<10x128xi32>
    %c15_i32_84 = arith.constant 15 : i32
    %687 = vector.broadcast %c15_i32_84 : i32 to vector<10x128xi32>
    %688 = arith.minsi %686, %687 : vector<10x128xi32>
    %c8_i32_85 = arith.constant 8 : i32
    %689 = vector.broadcast %c8_i32_85 : i32 to vector<10x128xi32>
    %690 = arith.muli %680, %689 : vector<10x128xi32>
    %691 = arith.addi %690, %679 : vector<10x128xi32>
    %c0_i32_86 = arith.constant 0 : i32
    %692 = vector.broadcast %c0_i32_86 : i32 to vector<10x128xi32>
    %693 = arith.cmpi slt, %691, %692 : vector<10x128xi32>
    %c128_i32_87 = arith.constant 128 : i32
    %694 = vector.broadcast %c128_i32_87 : i32 to vector<10x128xi32>
    %695 = arith.addi %691, %694 : vector<10x128xi32>
    %696 = arith.select %693, %695, %691 : vector<10x128xi1>, vector<10x128xi32>
    %697 = vector.shape_cast %696 : vector<10x128xi32> to vector<10x128x1xi32>
    %698 = vector.shape_cast %697 : vector<10x128x1xi32> to vector<10x128xi32>
    %699 = tpu.dynamic_gather %1[%698] in [1] : vector<10x128xf32>, vector<10x128xi32> -> vector<10x128xf32>
    %700 = arith.mulf %678, %676 : vector<10x128xf32>
    %701 = arith.mulf %699, %700 : vector<10x128xf32>
    %c8_i32_88 = arith.constant 8 : i32
    %702 = vector.broadcast %c8_i32_88 : i32 to vector<10x128xi32>
    %703 = arith.muli %680, %702 : vector<10x128xi32>
    %704 = arith.addi %703, %684 : vector<10x128xi32>
    %c0_i32_89 = arith.constant 0 : i32
    %705 = vector.broadcast %c0_i32_89 : i32 to vector<10x128xi32>
    %706 = arith.cmpi slt, %704, %705 : vector<10x128xi32>
    %c128_i32_90 = arith.constant 128 : i32
    %707 = vector.broadcast %c128_i32_90 : i32 to vector<10x128xi32>
    %708 = arith.addi %704, %707 : vector<10x128xi32>
    %709 = arith.select %706, %708, %704 : vector<10x128xi1>, vector<10x128xi32>
    %710 = vector.shape_cast %709 : vector<10x128xi32> to vector<10x128x1xi32>
    %711 = vector.shape_cast %710 : vector<10x128x1xi32> to vector<10x128xi32>
    %712 = tpu.dynamic_gather %1[%711] in [1] : vector<10x128xf32>, vector<10x128xi32> -> vector<10x128xf32>
    %713 = arith.mulf %678, %673 : vector<10x128xf32>
    %714 = arith.mulf %712, %713 : vector<10x128xf32>
    %715 = arith.addf %701, %714 : vector<10x128xf32>
    %c8_i32_91 = arith.constant 8 : i32
    %716 = vector.broadcast %c8_i32_91 : i32 to vector<10x128xi32>
    %717 = arith.muli %688, %716 : vector<10x128xi32>
    %718 = arith.addi %717, %679 : vector<10x128xi32>
    %c0_i32_92 = arith.constant 0 : i32
    %719 = vector.broadcast %c0_i32_92 : i32 to vector<10x128xi32>
    %720 = arith.cmpi slt, %718, %719 : vector<10x128xi32>
    %c128_i32_93 = arith.constant 128 : i32
    %721 = vector.broadcast %c128_i32_93 : i32 to vector<10x128xi32>
    %722 = arith.addi %718, %721 : vector<10x128xi32>
    %723 = arith.select %720, %722, %718 : vector<10x128xi1>, vector<10x128xi32>
    %724 = vector.shape_cast %723 : vector<10x128xi32> to vector<10x128x1xi32>
    %725 = vector.shape_cast %724 : vector<10x128x1xi32> to vector<10x128xi32>
    %726 = tpu.dynamic_gather %1[%725] in [1] : vector<10x128xf32>, vector<10x128xi32> -> vector<10x128xf32>
    %727 = arith.mulf %674, %676 : vector<10x128xf32>
    %728 = arith.mulf %726, %727 : vector<10x128xf32>
    %729 = arith.addf %715, %728 : vector<10x128xf32>
    %c8_i32_94 = arith.constant 8 : i32
    %730 = vector.broadcast %c8_i32_94 : i32 to vector<10x128xi32>
    %731 = arith.muli %688, %730 : vector<10x128xi32>
    %732 = arith.addi %731, %684 : vector<10x128xi32>
    %c0_i32_95 = arith.constant 0 : i32
    %733 = vector.broadcast %c0_i32_95 : i32 to vector<10x128xi32>
    %734 = arith.cmpi slt, %732, %733 : vector<10x128xi32>
    %c128_i32_96 = arith.constant 128 : i32
    %735 = vector.broadcast %c128_i32_96 : i32 to vector<10x128xi32>
    %736 = arith.addi %732, %735 : vector<10x128xi32>
    %737 = arith.select %734, %736, %732 : vector<10x128xi1>, vector<10x128xi32>
    %738 = vector.shape_cast %737 : vector<10x128xi32> to vector<10x128x1xi32>
    %739 = vector.shape_cast %738 : vector<10x128x1xi32> to vector<10x128xi32>
    %740 = tpu.dynamic_gather %1[%739] in [1] : vector<10x128xf32>, vector<10x128xi32> -> vector<10x128xf32>
    %741 = arith.mulf %674, %673 : vector<10x128xf32>
    %742 = arith.mulf %740, %741 : vector<10x128xf32>
    %743 = arith.addf %729, %742 : vector<10x128xf32>
    %744 = vector.extract_strided_slice %2 {offsets = [0, 0], sizes = [8, 1], strides = [1, 1]} : vector<8x10xf32> to vector<8x1xf32>
    %745 = vector.extract_strided_slice %743 {offsets = [0, 0], sizes = [1, 128], strides = [1, 1]} : vector<10x128xf32> to vector<1x128xf32>
    %746 = vector.broadcast %744 : vector<8x1xf32> to vector<8x128xf32>
    %747 = vector.broadcast %745 : vector<1x128xf32> to vector<8x128xf32>
    %748 = arith.mulf %746, %747 : vector<8x128xf32>
    %749 = vector.extract_strided_slice %2 {offsets = [0, 1], sizes = [8, 1], strides = [1, 1]} : vector<8x10xf32> to vector<8x1xf32>
    %750 = vector.extract_strided_slice %743 {offsets = [1, 0], sizes = [1, 128], strides = [1, 1]} : vector<10x128xf32> to vector<1x128xf32>
    %751 = vector.broadcast %749 : vector<8x1xf32> to vector<8x128xf32>
    %752 = vector.broadcast %750 : vector<1x128xf32> to vector<8x128xf32>
    %753 = arith.mulf %751, %752 : vector<8x128xf32>
    %754 = arith.addf %748, %753 : vector<8x128xf32>
    %755 = vector.extract_strided_slice %2 {offsets = [0, 2], sizes = [8, 1], strides = [1, 1]} : vector<8x10xf32> to vector<8x1xf32>
    %756 = vector.extract_strided_slice %743 {offsets = [2, 0], sizes = [1, 128], strides = [1, 1]} : vector<10x128xf32> to vector<1x128xf32>
    %757 = vector.broadcast %755 : vector<8x1xf32> to vector<8x128xf32>
    %758 = vector.broadcast %756 : vector<1x128xf32> to vector<8x128xf32>
    %759 = arith.mulf %757, %758 : vector<8x128xf32>
    %760 = arith.addf %754, %759 : vector<8x128xf32>
    %761 = vector.extract_strided_slice %2 {offsets = [0, 3], sizes = [8, 1], strides = [1, 1]} : vector<8x10xf32> to vector<8x1xf32>
    %762 = vector.extract_strided_slice %743 {offsets = [3, 0], sizes = [1, 128], strides = [1, 1]} : vector<10x128xf32> to vector<1x128xf32>
    %763 = vector.broadcast %761 : vector<8x1xf32> to vector<8x128xf32>
    %764 = vector.broadcast %762 : vector<1x128xf32> to vector<8x128xf32>
    %765 = arith.mulf %763, %764 : vector<8x128xf32>
    %766 = arith.addf %760, %765 : vector<8x128xf32>
    %767 = vector.extract_strided_slice %2 {offsets = [0, 4], sizes = [8, 1], strides = [1, 1]} : vector<8x10xf32> to vector<8x1xf32>
    %768 = vector.extract_strided_slice %743 {offsets = [4, 0], sizes = [1, 128], strides = [1, 1]} : vector<10x128xf32> to vector<1x128xf32>
    %769 = vector.broadcast %767 : vector<8x1xf32> to vector<8x128xf32>
    %770 = vector.broadcast %768 : vector<1x128xf32> to vector<8x128xf32>
    %771 = arith.mulf %769, %770 : vector<8x128xf32>
    %772 = arith.addf %766, %771 : vector<8x128xf32>
    %773 = vector.extract_strided_slice %2 {offsets = [0, 5], sizes = [8, 1], strides = [1, 1]} : vector<8x10xf32> to vector<8x1xf32>
    %774 = vector.extract_strided_slice %743 {offsets = [5, 0], sizes = [1, 128], strides = [1, 1]} : vector<10x128xf32> to vector<1x128xf32>
    %775 = vector.broadcast %773 : vector<8x1xf32> to vector<8x128xf32>
    %776 = vector.broadcast %774 : vector<1x128xf32> to vector<8x128xf32>
    %777 = arith.mulf %775, %776 : vector<8x128xf32>
    %778 = arith.addf %772, %777 : vector<8x128xf32>
    %779 = vector.extract_strided_slice %2 {offsets = [0, 6], sizes = [8, 1], strides = [1, 1]} : vector<8x10xf32> to vector<8x1xf32>
    %780 = vector.extract_strided_slice %743 {offsets = [6, 0], sizes = [1, 128], strides = [1, 1]} : vector<10x128xf32> to vector<1x128xf32>
    %781 = vector.broadcast %779 : vector<8x1xf32> to vector<8x128xf32>
    %782 = vector.broadcast %780 : vector<1x128xf32> to vector<8x128xf32>
    %783 = arith.mulf %781, %782 : vector<8x128xf32>
    %784 = arith.addf %778, %783 : vector<8x128xf32>
    %785 = vector.extract_strided_slice %2 {offsets = [0, 7], sizes = [8, 1], strides = [1, 1]} : vector<8x10xf32> to vector<8x1xf32>
    %786 = vector.extract_strided_slice %743 {offsets = [7, 0], sizes = [1, 128], strides = [1, 1]} : vector<10x128xf32> to vector<1x128xf32>
    %787 = vector.broadcast %785 : vector<8x1xf32> to vector<8x128xf32>
    %788 = vector.broadcast %786 : vector<1x128xf32> to vector<8x128xf32>
    %789 = arith.mulf %787, %788 : vector<8x128xf32>
    %790 = arith.addf %784, %789 : vector<8x128xf32>
    %791 = vector.extract_strided_slice %2 {offsets = [0, 8], sizes = [8, 1], strides = [1, 1]} : vector<8x10xf32> to vector<8x1xf32>
    %792 = vector.extract_strided_slice %743 {offsets = [8, 0], sizes = [1, 128], strides = [1, 1]} : vector<10x128xf32> to vector<1x128xf32>
    %793 = vector.broadcast %791 : vector<8x1xf32> to vector<8x128xf32>
    %794 = vector.broadcast %792 : vector<1x128xf32> to vector<8x128xf32>
    %795 = arith.mulf %793, %794 : vector<8x128xf32>
    %796 = arith.addf %790, %795 : vector<8x128xf32>
    %797 = vector.extract_strided_slice %2 {offsets = [0, 9], sizes = [8, 1], strides = [1, 1]} : vector<8x10xf32> to vector<8x1xf32>
    %798 = vector.extract_strided_slice %743 {offsets = [9, 0], sizes = [1, 128], strides = [1, 1]} : vector<10x128xf32> to vector<1x128xf32>
    %799 = vector.broadcast %797 : vector<8x1xf32> to vector<8x128xf32>
    %800 = vector.broadcast %798 : vector<1x128xf32> to vector<8x128xf32>
    %801 = arith.mulf %799, %800 : vector<8x128xf32>
    %802 = arith.addf %796, %801 : vector<8x128xf32>
    %c0_97 = arith.constant 0 : index
    %c2_98 = arith.constant 2 : index
    %c0_99 = arith.constant 0 : index
    %c0_100 = arith.constant 0 : index
    %803 = vector.load %arg5[%c0_97, %c2_98, %c0_99, %c0_100] : memref<1x4x8x128xf32, #tpu.memory_space<vmem>>, vector<1x1x8x128xf32>
    %804 = vector.shape_cast %803 : vector<1x1x8x128xf32> to vector<8x128xf32>
    %805 = vector.shape_cast %802 : vector<8x128xf32> to vector<1x1x8x128xf32>
    tpu.vector_store %arg5[%c0_97, %c2_98, %c0_99, %c0_100], %805 {strides = array<i32>} : memref<1x4x8x128xf32, #tpu.memory_space<vmem>>, vector<1x1x8x128xf32>,
    %c3 = arith.constant 3 : index
    %c0_101 = arith.constant 0 : index
    %c0_102 = arith.constant 0 : index
    %c0_103 = arith.constant 0 : index
    %806 = vector.load %arg3[%c3, %c0_101, %c0_102, %c0_103] : memref<4x2x10x11xf32, #tpu.memory_space<vmem>>, vector<1x1x10x11xf32>
    %807 = vector.shape_cast %806 : vector<1x1x10x11xf32> to vector<10x11xf32>
    %c3_104 = arith.constant 3 : index
    %c1_105 = arith.constant 1 : index
    %c0_106 = arith.constant 0 : index
    %c0_107 = arith.constant 0 : index
    %808 = vector.load %arg3[%c3_104, %c1_105, %c0_106, %c0_107] : memref<4x2x10x11xf32, #tpu.memory_space<vmem>>, vector<1x1x10x11xf32>
    %809 = vector.shape_cast %808 : vector<1x1x10x11xf32> to vector<10x11xf32>
    %810 = vector.extract_strided_slice %807 {offsets = [0, 10], sizes = [10, 1], strides = [1, 1]} : vector<10x11xf32> to vector<10x1xf32>
    %811 = vector.shape_cast %810 : vector<10x1xf32> to vector<10x1xf32>
    %812 = vector.broadcast %811 : vector<10x1xf32> to vector<10x128xf32>
    %813 = vector.extract_strided_slice %809 {offsets = [0, 10], sizes = [10, 1], strides = [1, 1]} : vector<10x11xf32> to vector<10x1xf32>
    %814 = vector.shape_cast %813 : vector<10x1xf32> to vector<10x1xf32>
    %815 = vector.broadcast %814 : vector<10x1xf32> to vector<10x128xf32>
    %816 = vector.extract_strided_slice %1 {offsets = [0, 0], sizes = [1, 128], strides = [1, 1]} : vector<10x128xf32> to vector<1x128xf32>
    %817 = vector.extract_strided_slice %807 {offsets = [0, 0], sizes = [10, 1], strides = [1, 1]} : vector<10x11xf32> to vector<10x1xf32>
    %818 = vector.broadcast %817 : vector<10x1xf32> to vector<10x128xf32>
    %819 = vector.broadcast %816 : vector<1x128xf32> to vector<10x128xf32>
    %820 = arith.mulf %818, %819 : vector<10x128xf32>
    %821 = arith.addf %812, %820 : vector<10x128xf32>
    %822 = vector.extract_strided_slice %809 {offsets = [0, 0], sizes = [10, 1], strides = [1, 1]} : vector<10x11xf32> to vector<10x1xf32>
    %823 = vector.broadcast %822 : vector<10x1xf32> to vector<10x128xf32>
    %824 = vector.broadcast %816 : vector<1x128xf32> to vector<10x128xf32>
    %825 = arith.mulf %823, %824 : vector<10x128xf32>
    %826 = arith.addf %815, %825 : vector<10x128xf32>
    %827 = vector.extract_strided_slice %1 {offsets = [1, 0], sizes = [1, 128], strides = [1, 1]} : vector<10x128xf32> to vector<1x128xf32>
    %828 = vector.extract_strided_slice %807 {offsets = [0, 1], sizes = [10, 1], strides = [1, 1]} : vector<10x11xf32> to vector<10x1xf32>
    %829 = vector.broadcast %828 : vector<10x1xf32> to vector<10x128xf32>
    %830 = vector.broadcast %827 : vector<1x128xf32> to vector<10x128xf32>
    %831 = arith.mulf %829, %830 : vector<10x128xf32>
    %832 = arith.addf %821, %831 : vector<10x128xf32>
    %833 = vector.extract_strided_slice %809 {offsets = [0, 1], sizes = [10, 1], strides = [1, 1]} : vector<10x11xf32> to vector<10x1xf32>
    %834 = vector.broadcast %833 : vector<10x1xf32> to vector<10x128xf32>
    %835 = vector.broadcast %827 : vector<1x128xf32> to vector<10x128xf32>
    %836 = arith.mulf %834, %835 : vector<10x128xf32>
    %837 = arith.addf %826, %836 : vector<10x128xf32>
    %838 = vector.extract_strided_slice %1 {offsets = [2, 0], sizes = [1, 128], strides = [1, 1]} : vector<10x128xf32> to vector<1x128xf32>
    %839 = vector.extract_strided_slice %807 {offsets = [0, 2], sizes = [10, 1], strides = [1, 1]} : vector<10x11xf32> to vector<10x1xf32>
    %840 = vector.broadcast %839 : vector<10x1xf32> to vector<10x128xf32>
    %841 = vector.broadcast %838 : vector<1x128xf32> to vector<10x128xf32>
    %842 = arith.mulf %840, %841 : vector<10x128xf32>
    %843 = arith.addf %832, %842 : vector<10x128xf32>
    %844 = vector.extract_strided_slice %809 {offsets = [0, 2], sizes = [10, 1], strides = [1, 1]} : vector<10x11xf32> to vector<10x1xf32>
    %845 = vector.broadcast %844 : vector<10x1xf32> to vector<10x128xf32>
    %846 = vector.broadcast %838 : vector<1x128xf32> to vector<10x128xf32>
    %847 = arith.mulf %845, %846 : vector<10x128xf32>
    %848 = arith.addf %837, %847 : vector<10x128xf32>
    %849 = vector.extract_strided_slice %1 {offsets = [3, 0], sizes = [1, 128], strides = [1, 1]} : vector<10x128xf32> to vector<1x128xf32>
    %850 = vector.extract_strided_slice %807 {offsets = [0, 3], sizes = [10, 1], strides = [1, 1]} : vector<10x11xf32> to vector<10x1xf32>
    %851 = vector.broadcast %850 : vector<10x1xf32> to vector<10x128xf32>
    %852 = vector.broadcast %849 : vector<1x128xf32> to vector<10x128xf32>
    %853 = arith.mulf %851, %852 : vector<10x128xf32>
    %854 = arith.addf %843, %853 : vector<10x128xf32>
    %855 = vector.extract_strided_slice %809 {offsets = [0, 3], sizes = [10, 1], strides = [1, 1]} : vector<10x11xf32> to vector<10x1xf32>
    %856 = vector.broadcast %855 : vector<10x1xf32> to vector<10x128xf32>
    %857 = vector.broadcast %849 : vector<1x128xf32> to vector<10x128xf32>
    %858 = arith.mulf %856, %857 : vector<10x128xf32>
    %859 = arith.addf %848, %858 : vector<10x128xf32>
    %860 = vector.extract_strided_slice %1 {offsets = [4, 0], sizes = [1, 128], strides = [1, 1]} : vector<10x128xf32> to vector<1x128xf32>
    %861 = vector.extract_strided_slice %807 {offsets = [0, 4], sizes = [10, 1], strides = [1, 1]} : vector<10x11xf32> to vector<10x1xf32>
    %862 = vector.broadcast %861 : vector<10x1xf32> to vector<10x128xf32>
    %863 = vector.broadcast %860 : vector<1x128xf32> to vector<10x128xf32>
    %864 = arith.mulf %862, %863 : vector<10x128xf32>
    %865 = arith.addf %854, %864 : vector<10x128xf32>
    %866 = vector.extract_strided_slice %809 {offsets = [0, 4], sizes = [10, 1], strides = [1, 1]} : vector<10x11xf32> to vector<10x1xf32>
    %867 = vector.broadcast %866 : vector<10x1xf32> to vector<10x128xf32>
    %868 = vector.broadcast %860 : vector<1x128xf32> to vector<10x128xf32>
    %869 = arith.mulf %867, %868 : vector<10x128xf32>
    %870 = arith.addf %859, %869 : vector<10x128xf32>
    %871 = vector.extract_strided_slice %1 {offsets = [5, 0], sizes = [1, 128], strides = [1, 1]} : vector<10x128xf32> to vector<1x128xf32>
    %872 = vector.extract_strided_slice %807 {offsets = [0, 5], sizes = [10, 1], strides = [1, 1]} : vector<10x11xf32> to vector<10x1xf32>
    %873 = vector.broadcast %872 : vector<10x1xf32> to vector<10x128xf32>
    %874 = vector.broadcast %871 : vector<1x128xf32> to vector<10x128xf32>
    %875 = arith.mulf %873, %874 : vector<10x128xf32>
    %876 = arith.addf %865, %875 : vector<10x128xf32>
    %877 = vector.extract_strided_slice %809 {offsets = [0, 5], sizes = [10, 1], strides = [1, 1]} : vector<10x11xf32> to vector<10x1xf32>
    %878 = vector.broadcast %877 : vector<10x1xf32> to vector<10x128xf32>
    %879 = vector.broadcast %871 : vector<1x128xf32> to vector<10x128xf32>
    %880 = arith.mulf %878, %879 : vector<10x128xf32>
    %881 = arith.addf %870, %880 : vector<10x128xf32>
    %882 = vector.extract_strided_slice %1 {offsets = [6, 0], sizes = [1, 128], strides = [1, 1]} : vector<10x128xf32> to vector<1x128xf32>
    %883 = vector.extract_strided_slice %807 {offsets = [0, 6], sizes = [10, 1], strides = [1, 1]} : vector<10x11xf32> to vector<10x1xf32>
    %884 = vector.broadcast %883 : vector<10x1xf32> to vector<10x128xf32>
    %885 = vector.broadcast %882 : vector<1x128xf32> to vector<10x128xf32>
    %886 = arith.mulf %884, %885 : vector<10x128xf32>
    %887 = arith.addf %876, %886 : vector<10x128xf32>
    %888 = vector.extract_strided_slice %809 {offsets = [0, 6], sizes = [10, 1], strides = [1, 1]} : vector<10x11xf32> to vector<10x1xf32>
    %889 = vector.broadcast %888 : vector<10x1xf32> to vector<10x128xf32>
    %890 = vector.broadcast %882 : vector<1x128xf32> to vector<10x128xf32>
    %891 = arith.mulf %889, %890 : vector<10x128xf32>
    %892 = arith.addf %881, %891 : vector<10x128xf32>
    %893 = vector.extract_strided_slice %1 {offsets = [7, 0], sizes = [1, 128], strides = [1, 1]} : vector<10x128xf32> to vector<1x128xf32>
    %894 = vector.extract_strided_slice %807 {offsets = [0, 7], sizes = [10, 1], strides = [1, 1]} : vector<10x11xf32> to vector<10x1xf32>
    %895 = vector.broadcast %894 : vector<10x1xf32> to vector<10x128xf32>
    %896 = vector.broadcast %893 : vector<1x128xf32> to vector<10x128xf32>
    %897 = arith.mulf %895, %896 : vector<10x128xf32>
    %898 = arith.addf %887, %897 : vector<10x128xf32>
    %899 = vector.extract_strided_slice %809 {offsets = [0, 7], sizes = [10, 1], strides = [1, 1]} : vector<10x11xf32> to vector<10x1xf32>
    %900 = vector.broadcast %899 : vector<10x1xf32> to vector<10x128xf32>
    %901 = vector.broadcast %893 : vector<1x128xf32> to vector<10x128xf32>
    %902 = arith.mulf %900, %901 : vector<10x128xf32>
    %903 = arith.addf %892, %902 : vector<10x128xf32>
    %904 = vector.extract_strided_slice %1 {offsets = [8, 0], sizes = [1, 128], strides = [1, 1]} : vector<10x128xf32> to vector<1x128xf32>
    %905 = vector.extract_strided_slice %807 {offsets = [0, 8], sizes = [10, 1], strides = [1, 1]} : vector<10x11xf32> to vector<10x1xf32>
    %906 = vector.broadcast %905 : vector<10x1xf32> to vector<10x128xf32>
    %907 = vector.broadcast %904 : vector<1x128xf32> to vector<10x128xf32>
    %908 = arith.mulf %906, %907 : vector<10x128xf32>
    %909 = arith.addf %898, %908 : vector<10x128xf32>
    %910 = vector.extract_strided_slice %809 {offsets = [0, 8], sizes = [10, 1], strides = [1, 1]} : vector<10x11xf32> to vector<10x1xf32>
    %911 = vector.broadcast %910 : vector<10x1xf32> to vector<10x128xf32>
    %912 = vector.broadcast %904 : vector<1x128xf32> to vector<10x128xf32>
    %913 = arith.mulf %911, %912 : vector<10x128xf32>
    %914 = arith.addf %903, %913 : vector<10x128xf32>
    %915 = vector.extract_strided_slice %1 {offsets = [9, 0], sizes = [1, 128], strides = [1, 1]} : vector<10x128xf32> to vector<1x128xf32>
    %916 = vector.extract_strided_slice %807 {offsets = [0, 9], sizes = [10, 1], strides = [1, 1]} : vector<10x11xf32> to vector<10x1xf32>
    %917 = vector.broadcast %916 : vector<10x1xf32> to vector<10x128xf32>
    %918 = vector.broadcast %915 : vector<1x128xf32> to vector<10x128xf32>
    %919 = arith.mulf %917, %918 : vector<10x128xf32>
    %920 = arith.addf %909, %919 : vector<10x128xf32>
    %921 = vector.extract_strided_slice %809 {offsets = [0, 9], sizes = [10, 1], strides = [1, 1]} : vector<10x11xf32> to vector<10x1xf32>
    %922 = vector.broadcast %921 : vector<10x1xf32> to vector<10x128xf32>
    %923 = vector.broadcast %915 : vector<1x128xf32> to vector<10x128xf32>
    %924 = arith.mulf %922, %923 : vector<10x128xf32>
    %925 = arith.addf %914, %924 : vector<10x128xf32>
    %926 = vector.broadcast %3 : vector<1x128xf32> to vector<10x128xf32>
    %927 = arith.addf %926, %920 : vector<10x128xf32>
    %cst_108 = arith.constant 0.000000e+00 : f32
    %cst_109 = arith.constant 7.000000e+00 : f32
    %928 = vector.broadcast %cst_108 : f32 to vector<10x128xf32>
    %929 = arith.maximumf %928, %927 : vector<10x128xf32>
    %930 = vector.broadcast %cst_109 : f32 to vector<10x128xf32>
    %931 = arith.minimumf %930, %929 : vector<10x128xf32>
    %932 = vector.broadcast %4 : vector<1x128xf32> to vector<10x128xf32>
    %933 = arith.addf %932, %925 : vector<10x128xf32>
    %cst_110 = arith.constant 0.000000e+00 : f32
    %cst_111 = arith.constant 1.500000e+01 : f32
    %934 = vector.broadcast %cst_110 : f32 to vector<10x128xf32>
    %935 = arith.maximumf %934, %933 : vector<10x128xf32>
    %936 = vector.broadcast %cst_111 : f32 to vector<10x128xf32>
    %937 = arith.minimumf %936, %935 : vector<10x128xf32>
    %938 = math.floor %931 : vector<10x128xf32>
    %939 = math.floor %937 : vector<10x128xf32>
    %940 = arith.subf %931, %938 : vector<10x128xf32>
    %941 = arith.subf %937, %939 : vector<10x128xf32>
    %cst_112 = arith.constant 1.000000e+00 : f32
    %942 = vector.broadcast %cst_112 : f32 to vector<10x128xf32>
    %943 = arith.subf %942, %940 : vector<10x128xf32>
    %cst_113 = arith.constant 1.000000e+00 : f32
    %944 = vector.broadcast %cst_113 : f32 to vector<10x128xf32>
    %945 = arith.subf %944, %941 : vector<10x128xf32>
    %946 = arith.fptosi %938 : vector<10x128xf32> to vector<10x128xi32>
    %947 = arith.fptosi %939 : vector<10x128xf32> to vector<10x128xi32>
    %c1_i32_114 = arith.constant 1 : i32
    %948 = vector.broadcast %c1_i32_114 : i32 to vector<10x128xi32>
    %949 = arith.addi %946, %948 : vector<10x128xi32>
    %c7_i32_115 = arith.constant 7 : i32
    %950 = vector.broadcast %c7_i32_115 : i32 to vector<10x128xi32>
    %951 = arith.minsi %949, %950 : vector<10x128xi32>
    %c1_i32_116 = arith.constant 1 : i32
    %952 = vector.broadcast %c1_i32_116 : i32 to vector<10x128xi32>
    %953 = arith.addi %947, %952 : vector<10x128xi32>
    %c15_i32_117 = arith.constant 15 : i32
    %954 = vector.broadcast %c15_i32_117 : i32 to vector<10x128xi32>
    %955 = arith.minsi %953, %954 : vector<10x128xi32>
    %c8_i32_118 = arith.constant 8 : i32
    %956 = vector.broadcast %c8_i32_118 : i32 to vector<10x128xi32>
    %957 = arith.muli %947, %956 : vector<10x128xi32>
    %958 = arith.addi %957, %946 : vector<10x128xi32>
    %c0_i32_119 = arith.constant 0 : i32
    %959 = vector.broadcast %c0_i32_119 : i32 to vector<10x128xi32>
    %960 = arith.cmpi slt, %958, %959 : vector<10x128xi32>
    %c128_i32_120 = arith.constant 128 : i32
    %961 = vector.broadcast %c128_i32_120 : i32 to vector<10x128xi32>
    %962 = arith.addi %958, %961 : vector<10x128xi32>
    %963 = arith.select %960, %962, %958 : vector<10x128xi1>, vector<10x128xi32>
    %964 = vector.shape_cast %963 : vector<10x128xi32> to vector<10x128x1xi32>
    %965 = vector.shape_cast %964 : vector<10x128x1xi32> to vector<10x128xi32>
    %966 = tpu.dynamic_gather %1[%965] in [1] : vector<10x128xf32>, vector<10x128xi32> -> vector<10x128xf32>
    %967 = arith.mulf %945, %943 : vector<10x128xf32>
    %968 = arith.mulf %966, %967 : vector<10x128xf32>
    %c8_i32_121 = arith.constant 8 : i32
    %969 = vector.broadcast %c8_i32_121 : i32 to vector<10x128xi32>
    %970 = arith.muli %947, %969 : vector<10x128xi32>
    %971 = arith.addi %970, %951 : vector<10x128xi32>
    %c0_i32_122 = arith.constant 0 : i32
    %972 = vector.broadcast %c0_i32_122 : i32 to vector<10x128xi32>
    %973 = arith.cmpi slt, %971, %972 : vector<10x128xi32>
    %c128_i32_123 = arith.constant 128 : i32
    %974 = vector.broadcast %c128_i32_123 : i32 to vector<10x128xi32>
    %975 = arith.addi %971, %974 : vector<10x128xi32>
    %976 = arith.select %973, %975, %971 : vector<10x128xi1>, vector<10x128xi32>
    %977 = vector.shape_cast %976 : vector<10x128xi32> to vector<10x128x1xi32>
    %978 = vector.shape_cast %977 : vector<10x128x1xi32> to vector<10x128xi32>
    %979 = tpu.dynamic_gather %1[%978] in [1] : vector<10x128xf32>, vector<10x128xi32> -> vector<10x128xf32>
    %980 = arith.mulf %945, %940 : vector<10x128xf32>
    %981 = arith.mulf %979, %980 : vector<10x128xf32>
    %982 = arith.addf %968, %981 : vector<10x128xf32>
    %c8_i32_124 = arith.constant 8 : i32
    %983 = vector.broadcast %c8_i32_124 : i32 to vector<10x128xi32>
    %984 = arith.muli %955, %983 : vector<10x128xi32>
    %985 = arith.addi %984, %946 : vector<10x128xi32>
    %c0_i32_125 = arith.constant 0 : i32
    %986 = vector.broadcast %c0_i32_125 : i32 to vector<10x128xi32>
    %987 = arith.cmpi slt, %985, %986 : vector<10x128xi32>
    %c128_i32_126 = arith.constant 128 : i32
    %988 = vector.broadcast %c128_i32_126 : i32 to vector<10x128xi32>
    %989 = arith.addi %985, %988 : vector<10x128xi32>
    %990 = arith.select %987, %989, %985 : vector<10x128xi1>, vector<10x128xi32>
    %991 = vector.shape_cast %990 : vector<10x128xi32> to vector<10x128x1xi32>
    %992 = vector.shape_cast %991 : vector<10x128x1xi32> to vector<10x128xi32>
    %993 = tpu.dynamic_gather %1[%992] in [1] : vector<10x128xf32>, vector<10x128xi32> -> vector<10x128xf32>
    %994 = arith.mulf %941, %943 : vector<10x128xf32>
    %995 = arith.mulf %993, %994 : vector<10x128xf32>
    %996 = arith.addf %982, %995 : vector<10x128xf32>
    %c8_i32_127 = arith.constant 8 : i32
    %997 = vector.broadcast %c8_i32_127 : i32 to vector<10x128xi32>
    %998 = arith.muli %955, %997 : vector<10x128xi32>
    %999 = arith.addi %998, %951 : vector<10x128xi32>
    %c0_i32_128 = arith.constant 0 : i32
    %1000 = vector.broadcast %c0_i32_128 : i32 to vector<10x128xi32>
    %1001 = arith.cmpi slt, %999, %1000 : vector<10x128xi32>
    %c128_i32_129 = arith.constant 128 : i32
    %1002 = vector.broadcast %c128_i32_129 : i32 to vector<10x128xi32>
    %1003 = arith.addi %999, %1002 : vector<10x128xi32>
    %1004 = arith.select %1001, %1003, %999 : vector<10x128xi1>, vector<10x128xi32>
    %1005 = vector.shape_cast %1004 : vector<10x128xi32> to vector<10x128x1xi32>
    %1006 = vector.shape_cast %1005 : vector<10x128x1xi32> to vector<10x128xi32>
    %1007 = tpu.dynamic_gather %1[%1006] in [1] : vector<10x128xf32>, vector<10x128xi32> -> vector<10x128xf32>
    %1008 = arith.mulf %941, %940 : vector<10x128xf32>
    %1009 = arith.mulf %1007, %1008 : vector<10x128xf32>
    %1010 = arith.addf %996, %1009 : vector<10x128xf32>
    %1011 = vector.extract_strided_slice %2 {offsets = [0, 0], sizes = [8, 1], strides = [1, 1]} : vector<8x10xf32> to vector<8x1xf32>
    %1012 = vector.extract_strided_slice %1010 {offsets = [0, 0], sizes = [1, 128], strides = [1, 1]} : vector<10x128xf32> to vector<1x128xf32>
    %1013 = vector.broadcast %1011 : vector<8x1xf32> to vector<8x128xf32>
    %1014 = vector.broadcast %1012 : vector<1x128xf32> to vector<8x128xf32>
    %1015 = arith.mulf %1013, %1014 : vector<8x128xf32>
    %1016 = vector.extract_strided_slice %2 {offsets = [0, 1], sizes = [8, 1], strides = [1, 1]} : vector<8x10xf32> to vector<8x1xf32>
    %1017 = vector.extract_strided_slice %1010 {offsets = [1, 0], sizes = [1, 128], strides = [1, 1]} : vector<10x128xf32> to vector<1x128xf32>
    %1018 = vector.broadcast %1016 : vector<8x1xf32> to vector<8x128xf32>
    %1019 = vector.broadcast %1017 : vector<1x128xf32> to vector<8x128xf32>
    %1020 = arith.mulf %1018, %1019 : vector<8x128xf32>
    %1021 = arith.addf %1015, %1020 : vector<8x128xf32>
    %1022 = vector.extract_strided_slice %2 {offsets = [0, 2], sizes = [8, 1], strides = [1, 1]} : vector<8x10xf32> to vector<8x1xf32>
    %1023 = vector.extract_strided_slice %1010 {offsets = [2, 0], sizes = [1, 128], strides = [1, 1]} : vector<10x128xf32> to vector<1x128xf32>
    %1024 = vector.broadcast %1022 : vector<8x1xf32> to vector<8x128xf32>
    %1025 = vector.broadcast %1023 : vector<1x128xf32> to vector<8x128xf32>
    %1026 = arith.mulf %1024, %1025 : vector<8x128xf32>
    %1027 = arith.addf %1021, %1026 : vector<8x128xf32>
    %1028 = vector.extract_strided_slice %2 {offsets = [0, 3], sizes = [8, 1], strides = [1, 1]} : vector<8x10xf32> to vector<8x1xf32>
    %1029 = vector.extract_strided_slice %1010 {offsets = [3, 0], sizes = [1, 128], strides = [1, 1]} : vector<10x128xf32> to vector<1x128xf32>
    %1030 = vector.broadcast %1028 : vector<8x1xf32> to vector<8x128xf32>
    %1031 = vector.broadcast %1029 : vector<1x128xf32> to vector<8x128xf32>
    %1032 = arith.mulf %1030, %1031 : vector<8x128xf32>
    %1033 = arith.addf %1027, %1032 : vector<8x128xf32>
    %1034 = vector.extract_strided_slice %2 {offsets = [0, 4], sizes = [8, 1], strides = [1, 1]} : vector<8x10xf32> to vector<8x1xf32>
    %1035 = vector.extract_strided_slice %1010 {offsets = [4, 0], sizes = [1, 128], strides = [1, 1]} : vector<10x128xf32> to vector<1x128xf32>
    %1036 = vector.broadcast %1034 : vector<8x1xf32> to vector<8x128xf32>
    %1037 = vector.broadcast %1035 : vector<1x128xf32> to vector<8x128xf32>
    %1038 = arith.mulf %1036, %1037 : vector<8x128xf32>
    %1039 = arith.addf %1033, %1038 : vector<8x128xf32>
    %1040 = vector.extract_strided_slice %2 {offsets = [0, 5], sizes = [8, 1], strides = [1, 1]} : vector<8x10xf32> to vector<8x1xf32>
    %1041 = vector.extract_strided_slice %1010 {offsets = [5, 0], sizes = [1, 128], strides = [1, 1]} : vector<10x128xf32> to vector<1x128xf32>
    %1042 = vector.broadcast %1040 : vector<8x1xf32> to vector<8x128xf32>
    %1043 = vector.broadcast %1041 : vector<1x128xf32> to vector<8x128xf32>
    %1044 = arith.mulf %1042, %1043 : vector<8x128xf32>
    %1045 = arith.addf %1039, %1044 : vector<8x128xf32>
    %1046 = vector.extract_strided_slice %2 {offsets = [0, 6], sizes = [8, 1], strides = [1, 1]} : vector<8x10xf32> to vector<8x1xf32>
    %1047 = vector.extract_strided_slice %1010 {offsets = [6, 0], sizes = [1, 128], strides = [1, 1]} : vector<10x128xf32> to vector<1x128xf32>
    %1048 = vector.broadcast %1046 : vector<8x1xf32> to vector<8x128xf32>
    %1049 = vector.broadcast %1047 : vector<1x128xf32> to vector<8x128xf32>
    %1050 = arith.mulf %1048, %1049 : vector<8x128xf32>
    %1051 = arith.addf %1045, %1050 : vector<8x128xf32>
    %1052 = vector.extract_strided_slice %2 {offsets = [0, 7], sizes = [8, 1], strides = [1, 1]} : vector<8x10xf32> to vector<8x1xf32>
    %1053 = vector.extract_strided_slice %1010 {offsets = [7, 0], sizes = [1, 128], strides = [1, 1]} : vector<10x128xf32> to vector<1x128xf32>
    %1054 = vector.broadcast %1052 : vector<8x1xf32> to vector<8x128xf32>
    %1055 = vector.broadcast %1053 : vector<1x128xf32> to vector<8x128xf32>
    %1056 = arith.mulf %1054, %1055 : vector<8x128xf32>
    %1057 = arith.addf %1051, %1056 : vector<8x128xf32>
    %1058 = vector.extract_strided_slice %2 {offsets = [0, 8], sizes = [8, 1], strides = [1, 1]} : vector<8x10xf32> to vector<8x1xf32>
    %1059 = vector.extract_strided_slice %1010 {offsets = [8, 0], sizes = [1, 128], strides = [1, 1]} : vector<10x128xf32> to vector<1x128xf32>
    %1060 = vector.broadcast %1058 : vector<8x1xf32> to vector<8x128xf32>
    %1061 = vector.broadcast %1059 : vector<1x128xf32> to vector<8x128xf32>
    %1062 = arith.mulf %1060, %1061 : vector<8x128xf32>
    %1063 = arith.addf %1057, %1062 : vector<8x128xf32>
    %1064 = vector.extract_strided_slice %2 {offsets = [0, 9], sizes = [8, 1], strides = [1, 1]} : vector<8x10xf32> to vector<8x1xf32>
    %1065 = vector.extract_strided_slice %1010 {offsets = [9, 0], sizes = [1, 128], strides = [1, 1]} : vector<10x128xf32> to vector<1x128xf32>
    %1066 = vector.broadcast %1064 : vector<8x1xf32> to vector<8x128xf32>
    %1067 = vector.broadcast %1065 : vector<1x128xf32> to vector<8x128xf32>
    %1068 = arith.mulf %1066, %1067 : vector<8x128xf32>
    %1069 = arith.addf %1063, %1068 : vector<8x128xf32>
    %c0_130 = arith.constant 0 : index
    %c3_131 = arith.constant 3 : index
    %c0_132 = arith.constant 0 : index
    %c0_133 = arith.constant 0 : index
    %1070 = vector.load %arg5[%c0_130, %c3_131, %c0_132, %c0_133] : memref<1x4x8x128xf32, #tpu.memory_space<vmem>>, vector<1x1x8x128xf32>
    %1071 = vector.shape_cast %1070 : vector<1x1x8x128xf32> to vector<8x128xf32>
    %1072 = vector.shape_cast %1069 : vector<8x128xf32> to vector<1x1x8x128xf32>
    tpu.vector_store %arg5[%c0_130, %c3_131, %c0_132, %c0_133], %1072 {strides = array<i32>} : memref<1x4x8x128xf32, #tpu.memory_space<vmem>>, vector<1x1x8x128xf32>,
    return
  }
  func.func @transform_0(%arg0: i32) -> (i32, i32, i32) {
    %c0_i32 = arith.constant 0 : i32
    %c0_i32_0 = arith.constant 0 : i32
    %c0_i32_1 = arith.constant 0 : i32
    return %arg0, %c0_i32, %c0_i32_0 : i32, i32, i32
  }
  func.func @transform_1(%arg0: i32) -> (i32, i32) {
    %c0_i32 = arith.constant 0 : i32
    %c0_i32_0 = arith.constant 0 : i32
    %c0_i32_1 = arith.constant 0 : i32
    return %c0_i32, %c0_i32_0 : i32, i32
  }
  func.func @transform_2(%arg0: i32) -> (i32, i32, i32, i32) {
    %c0_i32 = arith.constant 0 : i32
    %c0_i32_0 = arith.constant 0 : i32
    %c0_i32_1 = arith.constant 0 : i32
    %c0_i32_2 = arith.constant 0 : i32
    %c0_i32_3 = arith.constant 0 : i32
    return %c0_i32, %c0_i32_0, %c0_i32_1, %c0_i32_2 : i32, i32, i32, i32
  }
  func.func @transform_3(%arg0: i32) -> (i32, i32) {
    %c0_i32 = arith.constant 0 : i32
    %c0_i32_0 = arith.constant 0 : i32
    %c0_i32_1 = arith.constant 0 : i32
    return %c0_i32, %c0_i32_0 : i32, i32
  }
  func.func @transform_4(%arg0: i32) -> (i32, i32, i32, i32) {
    %c0_i32 = arith.constant 0 : i32
    %c0_i32_0 = arith.constant 0 : i32
    %c0_i32_1 = arith.constant 0 : i32
    %c0_i32_2 = arith.constant 0 : i32
    return %arg0, %c0_i32, %c0_i32_0, %c0_i32_1 : i32, i32, i32, i32
  }
}

</mosaic_0001>

<llo_original>
// kernel: skip_upsample.1
$region0: #{skip_upsample.1}
  #allocation0 [shape = 'u32[]', space=smem, size = 0x4, offset = 0x4, fixed_abs, tag = 'smem constant byte address 0x4 - core index']
  #allocation1 [shape = 'u32[72,128]{1,0:T(1,128)}', space=vmem, size = 0x9000, scoped, tag = 'internal scratch']
  %s0 = inlined_call_operand.vmem [shape: f32[2,10,128], index: 0, kind: input, shape index: {}]
  %s1 = inlined_call_operand.vmem [shape: f32[2,128], index: 1, kind: input, shape index: {}]
  %s2 = inlined_call_operand.vmem [shape: f32[4,2,10,11], index: 2, kind: input, shape index: {}]
  %s3 = inlined_call_operand.vmem [shape: f32[8,10], index: 3, kind: input, shape index: {}]
  %s4 = inlined_call_operand.vmem [shape: f32[2,4,8,128], index: 4, kind: output, shape index: {}]
  %s5 = sld [smem:[#allocation0]]
  $region49: #{skip_upsample.1} parent=0
    _
  %s7 = ssub.s32 1, %s5
  %s8 = scalar_select 0, %s7, %s5
  loop: start=0, step=1, limit=4
  $region2: #{skip_upsample.1} parent=0 // loop_pre_header
    _
  $region3: #{skip_upsample.1} parent=0 // loop_header
    %s10 = sphi 0, %s14
    %p11 = scmp.ge.s32.totalorder %s10, 4
    %s20 = sphi 0, %s22
    %s23 = sphi 0, %s20
    %s24 = sphi 0, %s23
    %s40 = sphi 0, %s24
    %s44 = sphi 0, %s44
    %s46 = sphi 0, %s44
    %s47 = sphi 0, %s46
    %s61 = sphi 0, %s47
    %s65 = sphi 0, %s65
    %s67 = sphi 0, %s65
    %s68 = sphi 0, %s67
    %s82 = sphi 0, %s68
    %s86 = sphi 0, %s86
    %s88 = sphi 0, %s86
    %s89 = sphi 0, %s88
    %s103 = sphi 0, %s89
    %s109 = sphi 0, %s111
    %s112 = sphi 0, %s109
    %s113 = sphi 0, %s112
    %s129 = sphi 0, %s113
  $region4: #{skip_upsample.1} parent=0 // loop_header_branch
    %13 = sbr.rel (%p11) target = $region8
  $region5: #{skip_upsample.1} parent=0 // loop_body
    %s15 = ssub.s32 %s10, 1
    %s16 = ssub.s32 %s10, 2
    %s17 = sadd.s32 %s10, 1
    %s18 = ssub.s32 %s10, %s17
    %p19 = scmp.eq.s32.totalorder %s18, 0
    %s21 = sadd.s32 %s20, 1
    %s22 = scalar_select %p19, %s20, %s21
    %p25 = pneg %p19
    %p26 = scmp.eq.s32.totalorder %s10, 1
    %p27 = por %p25, %p26
    %p28 = scmp.ne.s32.totalorder %s20, %s23
    %p29 = scmp.eq.s32.totalorder %s10, 0
    %p30 = por %p28, %p29
    %p31 = scmp.ne.s32.totalorder %s20, %s23
    %p32 = scmp.eq.s32.totalorder %s15, 1
    %p33 = por %p31, %p32
    %p34 = scmp.ne.s32.totalorder %s23, %s24
    %p35 = scmp.eq.s32.totalorder %s15, 0
    %p36 = por %p34, %p35
    %p37 = scmp.ne.s32.totalorder %s23, %s24
    %p38 = scmp.eq.s32.totalorder %s16, 1
    %p39 = por %p37, %p38
    %p41 = scmp.ne.s32.totalorder %s24, %s40
    %p42 = scmp.eq.s32.totalorder %s16, 0
    %p43 = por %p41, %p42
    %s45 = sadd.s32 %s44, 1
    %p48 = scmp.eq.s32.totalorder %s10, 1
    %p49 = scmp.ne.s32.totalorder %s44, %s46
    %p50 = scmp.eq.s32.totalorder %s10, 0
    %p51 = por %p49, %p50
    %p52 = scmp.ne.s32.totalorder %s44, %s46
    %p53 = scmp.eq.s32.totalorder %s15, 1
    %p54 = por %p52, %p53
    %p55 = scmp.ne.s32.totalorder %s46, %s47
    %p56 = scmp.eq.s32.totalorder %s15, 0
    %p57 = por %p55, %p56
    %p58 = scmp.ne.s32.totalorder %s46, %s47
    %p59 = scmp.eq.s32.totalorder %s16, 1
    %p60 = por %p58, %p59
    %p62 = scmp.ne.s32.totalorder %s47, %s61
    %p63 = scmp.eq.s32.totalorder %s16, 0
    %p64 = por %p62, %p63
    %s66 = sadd.s32 %s65, 1
    %p69 = scmp.eq.s32.totalorder %s10, 1
    %p70 = scmp.ne.s32.totalorder %s65, %s67
    %p71 = scmp.eq.s32.totalorder %s10, 0
    %p72 = por %p70, %p71
    %p73 = scmp.ne.s32.totalorder %s65, %s67
    %p74 = scmp.eq.s32.totalorder %s15, 1
    %p75 = por %p73, %p74
    %p76 = scmp.ne.s32.totalorder %s67, %s68
    %p77 = scmp.eq.s32.totalorder %s15, 0
    %p78 = por %p76, %p77
    %p79 = scmp.ne.s32.totalorder %s67, %s68
    %p80 = scmp.eq.s32.totalorder %s16, 1
    %p81 = por %p79, %p80
    %p83 = scmp.ne.s32.totalorder %s68, %s82
    %p84 = scmp.eq.s32.totalorder %s16, 0
    %p85 = por %p83, %p84
    %s87 = sadd.s32 %s86, 1
    %p90 = scmp.eq.s32.totalorder %s10, 1
    %p91 = scmp.ne.s32.totalorder %s86, %s88
    %p92 = scmp.eq.s32.totalorder %s10, 0
    %p93 = por %p91, %p92
    %p94 = scmp.ne.s32.totalorder %s86, %s88
    %p95 = scmp.eq.s32.totalorder %s15, 1
    %p96 = por %p94, %p95
    %p97 = scmp.ne.s32.totalorder %s88, %s89
    %p98 = scmp.eq.s32.totalorder %s15, 0
    %p99 = por %p97, %p98
    %p100 = scmp.ne.s32.totalorder %s88, %s89
    %p101 = scmp.eq.s32.totalorder %s16, 1
    %p102 = por %p100, %p101
    %p104 = scmp.ne.s32.totalorder %s89, %s103
    %p105 = scmp.eq.s32.totalorder %s16, 0
    %p106 = por %p104, %p105
    %s107 = ssub.s32 %s10, %s17
    %p108 = scmp.eq.s32.totalorder %s107, 0
    %s110 = sadd.s32 %s109, 1
    %s111 = scalar_select %p108, %s109, %s110
    %p114 = pneg %p108
    %p115 = scmp.eq.s32.totalorder %s10, 1
    %p116 = por %p114, %p115
    %p117 = scmp.ne.s32.totalorder %s109, %s112
    %p118 = scmp.eq.s32.totalorder %s10, 0
    %p119 = por %p117, %p118
    %p120 = scmp.ne.s32.totalorder %s109, %s112
    %p121 = scmp.eq.s32.totalorder %s15, 1
    %p122 = por %p120, %p121
    %p123 = scmp.ne.s32.totalorder %s112, %s113
    %p124 = scmp.eq.s32.totalorder %s15, 0
    %p125 = por %p123, %p124
    %p126 = scmp.ne.s32.totalorder %s112, %s113
    %p127 = scmp.eq.s32.totalorder %s16, 1
    %p128 = por %p126, %p127
    %p130 = scmp.ne.s32.totalorder %s113, %s129
    %p131 = scmp.eq.s32.totalorder %s16, 0
    %p132 = por %p130, %p131
    %p133 = scmp.le.s32.totalorder 1, %s10
    %p134 = scmp.lt.s32.totalorder %s10, 3
    %p135 = pnand %p133, %p134
    %p136 = pneg %p135
    // Predicated region
    $region9: #{skip_upsample.1} parent=5 // pred_check
      _
    $region10: #{skip_upsample.1} parent=5 // pred_check_branch
      %138 = sbr.rel (%p135) target = $region12
    $region11: #{skip_upsample.1} parent=5 // pred_region
      %s139 = ssub.s32 %s10, 1
      // Predicated region
      $region13: #{skip_upsample.1} parent=11 // pred_check
        %p140 = pneg %p57
      $region14: #{skip_upsample.1} parent=11 // pred_check_branch
        %142 = sbr.rel (%p140) target = $region16
      $region15: #{skip_upsample.1} parent=11 // pred_region
        _
      $region16: #{skip_upsample.1} parent=11 // pred_fallthru
        _
      // Predicated region
      $region17: #{skip_upsample.1} parent=11 // pred_check
        %p143 = pneg %p78
      $region18: #{skip_upsample.1} parent=11 // pred_check_branch
        %145 = sbr.rel (%p143) target = $region20
      $region19: #{skip_upsample.1} parent=11 // pred_region
        _
      $region20: #{skip_upsample.1} parent=11 // pred_fallthru
        _
      // Predicated region
      $region21: #{skip_upsample.1} parent=11 // pred_check
        %p146 = pneg %p99
      $region22: #{skip_upsample.1} parent=11 // pred_check_branch
        %148 = sbr.rel (%p146) target = $region24
      $region23: #{skip_upsample.1} parent=11 // pred_region
        _
      $region24: #{skip_upsample.1} parent=11 // pred_fallthru
        _
    $region12: #{skip_upsample.1} parent=5 // pred_fallthru
      _
    %p149 = scmp.lt.s32.totalorder %s10, 2
    // Predicated region
    $region25: #{skip_upsample.1} parent=5 // pred_check
      %p150 = pneg %p149
    $region26: #{skip_upsample.1} parent=5 // pred_check_branch
      %152 = sbr.rel (%p150) target = $region28
    $region27: #{skip_upsample.1} parent=5 // pred_region
      // Predicated region
      $region29: #{skip_upsample.1} parent=27 // pred_check
        %p153 = pneg %p30
      $region30: #{skip_upsample.1} parent=27 // pred_check_branch
        %155 = sbr.rel (%p153) target = $region32
      $region31: #{skip_upsample.1} parent=27 // pred_region
        %p156 = scmp.lt.s32.totalorder %s10, 1
        %s157 = scalar_select %p156, %s10, 1
        %s158 = smul.addr %s157, 2
        %s159 = smul.addr %s158, 8
        %s160 = scalar_lea.vmem %s0, %s159
      $region32: #{skip_upsample.1} parent=27 // pred_fallthru
        _
    $region28: #{skip_upsample.1} parent=5 // pred_fallthru
      _
    %p161 = scmp.le.s32.totalorder 1, %s10
    %p162 = scmp.lt.s32.totalorder %s10, 3
    %p163 = pnand %p161, %p162
    %p164 = pneg %p163
    // Predicated region
    $region33: #{skip_upsample.1} parent=5 // pred_check
      _
    $region34: #{skip_upsample.1} parent=5 // pred_check_branch
      %166 = sbr.rel (%p163) target = $region36
    $region35: #{skip_upsample.1} parent=5 // pred_region
      %s167 = ssub.s32 %s10, 1
      %p168 = scmp.lt.s32.totalorder %s15, 1
      %s169 = scalar_select %p168, %s15, 1
      %s170 = smul.addr %s169, 2
      %s171 = smul.addr %s170, 8
      %s172 = scalar_lea.vmem %s0, %s171
      %p173 = pneg %p36
      %p174 = pneg %p33
      %p175 = pneg %p57
      %p176 = pneg %p54
      %p177 = pneg %p78
      %p178 = pneg %p75
      %p179 = pneg %p99
      %p180 = pneg %p96
      %p181 = pneg %p125
      %p182 = pneg %p122
      %p183 = scmp.lt.s32.totalorder %s15, 1
      %s184 = scalar_select %p183, %s15, 1
      %s185 = smul.addr %s184, 4
      %s186 = smul.addr %s185, 8
      %s187 = scalar_lea.vmem %s4, %s186
      %p188 = scmp.lt.s32.totalorder %s15, 1
      %s189 = scalar_select %p188, %s15, 1
      %s190 = smul.addr %s189, 2
      %s191 = smul.addr %s190, 8
      %s192 = scalar_lea.vmem %s0, %s191
      %p193 = scmp.lt.s32.totalorder %s15, 1
      %s194 = scalar_select %p193, %s15, 1
      %s195 = smul.addr %s194, 4
      %s196 = smul.addr %s195, 8
      %s197 = scalar_lea.vmem %s4, %s196
      %v198 = vld [vmem:[%s192] sm:$0xff]
      %v199 = vld [vmem:[%s192 + $0x8] sm:$0x3]
      %v200 = vld [vmem:[%s3] sm:$0xff]
      %v201 = vld [vmem:[%s1] sm:$0x1]
      %v202 = vld [vmem:[%s1 + $0x1] sm:$0x1]
      %v203 = vld [vmem:[%s2] sm:$0xff]
      %v204 = vld [vmem:[%s2 + $0x8] sm:$0x3]
      %s205 = scalar_lea.vmem %s2, 16
      %v206 = vld [vmem:[%s205] sm:$0xff]
      %v207 = vld [vmem:[%s205 + $0x8] sm:$0x3]
      %209 = vset.pattern.permute.xlu0 10
      %210 = vperm.xlu0 %209, %v203
      %v211 = vpop.permute.xlu0 %210
      %214 = vset.pattern.permute.xlu0 10
      %215 = vperm.xlu0 %214, %v204
      %v216 = vpop.permute.xlu0 %215
      %219 = vset.pattern.permute.xlu0 10
      %220 = vperm.xlu0 %219, %v206
      %v221 = vpop.permute.xlu0 %220
      %224 = vset.pattern.permute.xlu0 10
      %225 = vperm.xlu0 %224, %v207
      %v226 = vpop.permute.xlu0 %225
      %228 = vset.pattern.permute.xlu0 0
      %229 = vperm.xlu0 %228, %v203
      %v230 = vpop.permute.xlu0 %229
      %232 = vset.pattern.permute.xlu0 0
      %233 = vperm.xlu0 %232, %v204
      %v234 = vpop.permute.xlu0 %233
      %v236 = vperm.slane %v198, 0
      %v237 = vmul.f32 %v230, %v236
      %v238 = vmul.f32 %v234, %v236
      %v239 = vadd.f32 %v211, %v237
      %v240 = vadd.f32 %v216, %v238
      %241 = vset.pattern.permute.xlu0 0
      %242 = vperm.xlu0 %241, %v206
      %v243 = vpop.permute.xlu0 %242
      %245 = vset.pattern.permute.xlu0 0
      %246 = vperm.xlu0 %245, %v207
      %v247 = vpop.permute.xlu0 %246
      %v249 = vmul.f32 %v243, %v236
      %v250 = vmul.f32 %v247, %v236
      %v251 = vadd.f32 %v221, %v249
      %v252 = vadd.f32 %v226, %v250
      %253 = vset.pattern.permute.xlu0 1
      %254 = vperm.xlu0 %253, %v203
      %v255 = vpop.permute.xlu0 %254
      %257 = vset.pattern.permute.xlu0 1
      %258 = vperm.xlu0 %257, %v204
      %v259 = vpop.permute.xlu0 %258
      %v261 = vperm.slane %v198, 1
      %v262 = vmul.f32 %v255, %v261
      %v263 = vmul.f32 %v259, %v261
      %v264 = vadd.f32 %v239, %v262
      %v265 = vadd.f32 %v240, %v263
      %266 = vset.pattern.permute.xlu0 1
      %267 = vperm.xlu0 %266, %v206
      %v268 = vpop.permute.xlu0 %267
      %270 = vset.pattern.permute.xlu0 1
      %271 = vperm.xlu0 %270, %v207
      %v272 = vpop.permute.xlu0 %271
      %v274 = vmul.f32 %v268, %v261
      %v275 = vmul.f32 %v272, %v261
      %v276 = vadd.f32 %v251, %v274
      %v277 = vadd.f32 %v252, %v275
      %278 = vset.pattern.permute.xlu0 2
      %279 = vperm.xlu0 %278, %v203
      %v280 = vpop.permute.xlu0 %279
      %282 = vset.pattern.permute.xlu0 2
      %283 = vperm.xlu0 %282, %v204
      %v284 = vpop.permute.xlu0 %283
      %v286 = vperm.slane %v198, 2
      %v287 = vmul.f32 %v280, %v286
      %v288 = vmul.f32 %v284, %v286
      %v289 = vadd.f32 %v264, %v287
      %v290 = vadd.f32 %v265, %v288
      %291 = vset.pattern.permute.xlu0 2
      %292 = vperm.xlu0 %291, %v206
      %v293 = vpop.permute.xlu0 %292
      %295 = vset.pattern.permute.xlu0 2
      %296 = vperm.xlu0 %295, %v207
      %v297 = vpop.permute.xlu0 %296
      %v299 = vmul.f32 %v293, %v286
      %v300 = vmul.f32 %v297, %v286
      %v301 = vadd.f32 %v276, %v299
      %v302 = vadd.f32 %v277, %v300
      %303 = vset.pattern.permute.xlu0 3
      %304 = vperm.xlu0 %303, %v203
      %v305 = vpop.permute.xlu0 %304
      %307 = vset.pattern.permute.xlu0 3
      %308 = vperm.xlu0 %307, %v204
      %v309 = vpop.permute.xlu0 %308
      %v311 = vperm.slane %v198, 3
      %v312 = vmul.f32 %v305, %v311
      %v313 = vmul.f32 %v309, %v311
      %v314 = vadd.f32 %v289, %v312
      %v315 = vadd.f32 %v290, %v313
      %316 = vset.pattern.permute.xlu0 3
      %317 = vperm.xlu0 %316, %v206
      %v318 = vpop.permute.xlu0 %317
      %320 = vset.pattern.permute.xlu0 3
      %321 = vperm.xlu0 %320, %v207
      %v322 = vpop.permute.xlu0 %321
      %v324 = vmul.f32 %v318, %v311
      %v325 = vmul.f32 %v322, %v311
      %v326 = vadd.f32 %v301, %v324
      %v327 = vadd.f32 %v302, %v325
      %328 = vset.pattern.permute.xlu0 4
      %329 = vperm.xlu0 %328, %v203
      %v330 = vpop.permute.xlu0 %329
      %332 = vset.pattern.permute.xlu0 4
      %333 = vperm.xlu0 %332, %v204
      %v334 = vpop.permute.xlu0 %333
      %v336 = vperm.slane %v198, 4
      %v337 = vmul.f32 %v330, %v336
      %v338 = vmul.f32 %v334, %v336
      %v339 = vadd.f32 %v314, %v337
      %v340 = vadd.f32 %v315, %v338
      %341 = vset.pattern.permute.xlu0 4
      %342 = vperm.xlu0 %341, %v206
      %v343 = vpop.permute.xlu0 %342
      %345 = vset.pattern.permute.xlu0 4
      %346 = vperm.xlu0 %345, %v207
      %v347 = vpop.permute.xlu0 %346
      %v349 = vmul.f32 %v343, %v336
      %v350 = vmul.f32 %v347, %v336
      %v351 = vadd.f32 %v326, %v349
      %v352 = vadd.f32 %v327, %v350
      %353 = vset.pattern.permute.xlu0 5
      %354 = vperm.xlu0 %353, %v203
      %v355 = vpop.permute.xlu0 %354
      %357 = vset.pattern.permute.xlu0 5
      %358 = vperm.xlu0 %357, %v204
      %v359 = vpop.permute.xlu0 %358
      %v361 = vperm.slane %v198, 5
      %v362 = vmul.f32 %v355, %v361
      %v363 = vmul.f32 %v359, %v361
      %v364 = vadd.f32 %v339, %v362
      %v365 = vadd.f32 %v340, %v363
      %366 = vset.pattern.permute.xlu0 5
      %367 = vperm.xlu0 %366, %v206
      %v368 = vpop.permute.xlu0 %367
      %370 = vset.pattern.permute.xlu0 5
      %371 = vperm.xlu0 %370, %v207
      %v372 = vpop.permute.xlu0 %371
      %v374 = vmul.f32 %v368, %v361
      %v375 = vmul.f32 %v372, %v361
      %v376 = vadd.f32 %v351, %v374
      %v377 = vadd.f32 %v352, %v375
      %378 = vset.pattern.permute.xlu0 6
      %379 = vperm.xlu0 %378, %v203
      %v380 = vpop.permute.xlu0 %379
      %382 = vset.pattern.permute.xlu0 6
      %383 = vperm.xlu0 %382, %v204
      %v384 = vpop.permute.xlu0 %383
      %v386 = vperm.slane %v198, 6
      %v387 = vmul.f32 %v380, %v386
      %v388 = vmul.f32 %v384, %v386
      %v389 = vadd.f32 %v364, %v387
      %v390 = vadd.f32 %v365, %v388
      %391 = vset.pattern.permute.xlu0 6
      %392 = vperm.xlu0 %391, %v206
      %v393 = vpop.permute.xlu0 %392
      %395 = vset.pattern.permute.xlu0 6
      %396 = vperm.xlu0 %395, %v207
      %v397 = vpop.permute.xlu0 %396
      %v399 = vmul.f32 %v393, %v386
      %v400 = vmul.f32 %v397, %v386
      %v401 = vadd.f32 %v376, %v399
      %v402 = vadd.f32 %v377, %v400
      %403 = vset.pattern.permute.xlu0 7
      %404 = vperm.xlu0 %403, %v203
      %v405 = vpop.permute.xlu0 %404
      %407 = vset.pattern.permute.xlu0 7
      %408 = vperm.xlu0 %407, %v204
      %v409 = vpop.permute.xlu0 %408
      %v411 = vperm.slane %v198, 7
      %v412 = vmul.f32 %v405, %v411
      %v413 = vmul.f32 %v409, %v411
      %v414 = vadd.f32 %v389, %v412
      %v415 = vadd.f32 %v390, %v413
      %416 = vset.pattern.permute.xlu0 7
      %417 = vperm.xlu0 %416, %v206
      %v418 = vpop.permute.xlu0 %417
      %420 = vset.pattern.permute.xlu0 7
      %421 = vperm.xlu0 %420, %v207
      %v422 = vpop.permute.xlu0 %421
      %v424 = vmul.f32 %v418, %v411
      %v425 = vmul.f32 %v422, %v411
      %v426 = vadd.f32 %v401, %v424
      %v427 = vadd.f32 %v402, %v425
      %428 = vset.pattern.permute.xlu0 8
      %429 = vperm.xlu0 %428, %v203
      %v430 = vpop.permute.xlu0 %429
      %432 = vset.pattern.permute.xlu0 8
      %433 = vperm.xlu0 %432, %v204
      %v434 = vpop.permute.xlu0 %433
      %v436 = vperm.slane %v199, 0
      %v437 = vmul.f32 %v430, %v436
      %v438 = vmul.f32 %v434, %v436
      %v439 = vadd.f32 %v414, %v437
      %v440 = vadd.f32 %v415, %v438
      %441 = vset.pattern.permute.xlu0 8
      %442 = vperm.xlu0 %441, %v206
      %v443 = vpop.permute.xlu0 %442
      %445 = vset.pattern.permute.xlu0 8
      %446 = vperm.xlu0 %445, %v207
      %v447 = vpop.permute.xlu0 %446
      %v449 = vmul.f32 %v443, %v436
      %v450 = vmul.f32 %v447, %v436
      %v451 = vadd.f32 %v426, %v449
      %v452 = vadd.f32 %v427, %v450
      %453 = vset.pattern.permute.xlu0 9
      %454 = vperm.xlu0 %453, %v203
      %v455 = vpop.permute.xlu0 %454
      %457 = vset.pattern.permute.xlu0 9
      %458 = vperm.xlu0 %457, %v204
      %v459 = vpop.permute.xlu0 %458
      %v461 = vperm.slane %v199, 1
      %v462 = vmul.f32 %v455, %v461
      %v463 = vmul.f32 %v459, %v461
      %v464 = vadd.f32 %v439, %v462
      %v465 = vadd.f32 %v440, %v463
      %466 = vset.pattern.permute.xlu0 9
      %467 = vperm.xlu0 %466, %v206
      %v468 = vpop.permute.xlu0 %467
      %470 = vset.pattern.permute.xlu0 9
      %471 = vperm.xlu0 %470, %v207
      %v472 = vpop.permute.xlu0 %471
      %v474 = vmul.f32 %v468, %v461
      %v475 = vmul.f32 %v472, %v461
      %v476 = vadd.f32 %v451, %v474
      %v477 = vadd.f32 %v452, %v475
      %v478 = vperm.slane %v201, 0
      %v479 = vadd.f32 %v478, %v464
      %v480 = vadd.f32 %v478, %v465
      %v481 = vmax.f32 %v479, 0.0
      %v482 = vmax.f32 %v480, 0.0
      %v483 = vmin.f32 %v481, 7.0
      %v484 = vmin.f32 %v482, 7.0
      %v485 = vperm.slane %v202, 0
      %v486 = vadd.f32 %v485, %v476
      %v487 = vadd.f32 %v485, %v477
      %v488 = vmax.f32 %v486, 0.0
      %v489 = vmax.f32 %v487, 0.0
      %v490 = vmin.f32 %v488, 15.0
      %v491 = vmin.f32 %v489, 15.0
      %v492 = vfloor.f32 %v483
      %v493 = vfloor.f32 %v484
      %v494 = vfloor.f32 %v490
      %v495 = vfloor.f32 %v491
      %v496 = vsub.f32 %v483, %v492
      %v497 = vsub.f32 %v484, %v493
      %v498 = vsub.f32 %v490, %v494
      %v499 = vsub.f32 %v491, %v495
      %v500 = vsub.f32 1.0, %v496
      %v501 = vsub.f32 1.0, %v497
      %v502 = vsub.f32 1.0, %v498
      %v503 = vsub.f32 1.0, %v499
      %v504 = vcvt.f32.s32.to.zero.pseudo %v492
      %v505 = vcvt.f32.s32.to.zero.pseudo %v493
      %v506 = vcvt.f32.s32.to.zero.pseudo %v494
      %v507 = vcvt.f32.s32.to.zero.pseudo %v495
      %v508 = vadd.s32 %v504, 1
      %v509 = vadd.s32 %v505, 1
      %vm510 = vcmp.lt.s32.totalorder %v508, 7
      %v511 = vsel %vm510, %v508, 7
      %vm512 = vcmp.lt.s32.totalorder %v509, 7
      %v513 = vsel %vm512, %v509, 7
      %v514 = vadd.s32 %v506, 1
      %v515 = vadd.s32 %v507, 1
      %vm516 = vcmp.lt.s32.totalorder %v514, 15
      %v517 = vsel %vm516, %v514, 15
      %vm518 = vcmp.lt.s32.totalorder %v515, 15
      %v519 = vsel %vm518, %v515, 15
      %v520 = vmul.u32 %v506, 8
      %v521 = vmul.u32 %v507, 8
      %v522 = vadd.s32 %v520, %v504
      %v523 = vadd.s32 %v521, %v505
      %vm524 = vcmp.lt.s32.totalorder %v522, 0
      %vm525 = vcmp.lt.s32.totalorder %v523, 0
      %v526 = vadd.s32 %v522, 128
      %v527 = vadd.s32 %v523, 128
      %v528 = vsel %vm524, %v526, %v522
      %v529 = vsel %vm525, %v527, %v523
      %530 = vset.pattern.permute.xlu0 %v528
      %531 = vperm.xlu0 %530, %v198
      %v532 = vpop.permute.xlu0 %531
      %533 = vset.pattern.permute.xlu0 %v529
      %534 = vperm.xlu0 %533, %v199
      %v535 = vpop.permute.xlu0 %534
      %v536 = vmul.f32 %v502, %v500
      %v537 = vmul.f32 %v503, %v501
      %v538 = vmul.f32 %v532, %v536
      %v539 = vmul.f32 %v535, %v537
      %v540 = vadd.s32 %v520, %v511
      %v541 = vadd.s32 %v521, %v513
      %vm542 = vcmp.lt.s32.totalorder %v540, 0
      %vm543 = vcmp.lt.s32.totalorder %v541, 0
      %v544 = vadd.s32 %v540, 128
      %v545 = vadd.s32 %v541, 128
      %v546 = vsel %vm542, %v544, %v540
      %v547 = vsel %vm543, %v545, %v541
      %548 = vset.pattern.permute.xlu0 %v546
      %549 = vperm.xlu0 %548, %v198
      %v550 = vpop.permute.xlu0 %549
      %551 = vset.pattern.permute.xlu0 %v547
      %552 = vperm.xlu0 %551, %v199
      %v553 = vpop.permute.xlu0 %552
      %v554 = vmul.f32 %v502, %v496
      %v555 = vmul.f32 %v503, %v497
      %v556 = vmul.f32 %v550, %v554
      %v557 = vmul.f32 %v553, %v555
      %v558 = vadd.f32 %v538, %v556
      %v559 = vadd.f32 %v539, %v557
      %v560 = vmul.u32 %v517, 8
      %v561 = vmul.u32 %v519, 8
      %v562 = vadd.s32 %v560, %v504
      %v563 = vadd.s32 %v561, %v505
      %vm564 = vcmp.lt.s32.totalorder %v562, 0
      %vm565 = vcmp.lt.s32.totalorder %v563, 0
      %v566 = vadd.s32 %v562, 128
      %v567 = vadd.s32 %v563, 128
      %v568 = vsel %vm564, %v566, %v562
      %v569 = vsel %vm565, %v567, %v563
      %570 = vset.pattern.permute.xlu0 %v568
      %571 = vperm.xlu0 %570, %v198
      %v572 = vpop.permute.xlu0 %571
      %573 = vset.pattern.permute.xlu0 %v569
      %574 = vperm.xlu0 %573, %v199
      %v575 = vpop.permute.xlu0 %574
      %v576 = vmul.f32 %v498, %v500
      %v577 = vmul.f32 %v499, %v501
      %v578 = vmul.f32 %v572, %v576
      %v579 = vmul.f32 %v575, %v577
      %v580 = vadd.f32 %v558, %v578
      %v581 = vadd.f32 %v559, %v579
      %v582 = vadd.s32 %v560, %v511
      %v583 = vadd.s32 %v561, %v513
      %vm584 = vcmp.lt.s32.totalorder %v582, 0
      %vm585 = vcmp.lt.s32.totalorder %v583, 0
      %v586 = vadd.s32 %v582, 128
      %v587 = vadd.s32 %v583, 128
      %v588 = vsel %vm584, %v586, %v582
      %v589 = vsel %vm585, %v587, %v583
      %590 = vset.pattern.permute.xlu0 %v588
      %591 = vperm.xlu0 %590, %v198
      %v592 = vpop.permute.xlu0 %591
      %593 = vset.pattern.permute.xlu0 %v589
      %594 = vperm.xlu0 %593, %v199
      %v595 = vpop.permute.xlu0 %594
      %v596 = vmul.f32 %v498, %v496
      %v597 = vmul.f32 %v499, %v497
      %v598 = vmul.f32 %v592, %v596
      %v599 = vmul.f32 %v595, %v597
      %v600 = vadd.f32 %v580, %v598
      %v601 = vadd.f32 %v581, %v599
      %603 = vset.pattern.permute.xlu0 0
      %604 = vperm.xlu0 %603, %v200
      %v605 = vpop.permute.xlu0 %604
      %v607 = vperm.slane %v600, 0
      %v608 = vmul.f32 %v605, %v607
      %609 = vset.pattern.permute.xlu0 1
      %610 = vperm.xlu0 %609, %v200
      %v611 = vpop.permute.xlu0 %610
      %v613 = vperm.slane %v600, 1
      %v614 = vmul.f32 %v611, %v613
      %v615 = vadd.f32 %v608, %v614
      %616 = vset.pattern.permute.xlu0 2
      %617 = vperm.xlu0 %616, %v200
      %v618 = vpop.permute.xlu0 %617
      %v620 = vperm.slane %v600, 2
      %v621 = vmul.f32 %v618, %v620
      %v622 = vadd.f32 %v615, %v621
      %623 = vset.pattern.permute.xlu0 3
      %624 = vperm.xlu0 %623, %v200
      %v625 = vpop.permute.xlu0 %624
      %v627 = vperm.slane %v600, 3
      %v628 = vmul.f32 %v625, %v627
      %v629 = vadd.f32 %v622, %v628
      %630 = vset.pattern.permute.xlu0 4
      %631 = vperm.xlu0 %630, %v200
      %v632 = vpop.permute.xlu0 %631
      %v634 = vperm.slane %v600, 4
      %v635 = vmul.f32 %v632, %v634
      %v636 = vadd.f32 %v629, %v635
      %637 = vset.pattern.permute.xlu0 5
      %638 = vperm.xlu0 %637, %v200
      %v639 = vpop.permute.xlu0 %638
      %v641 = vperm.slane %v600, 5
      %v642 = vmul.f32 %v639, %v641
      %v643 = vadd.f32 %v636, %v642
      %644 = vset.pattern.permute.xlu0 6
      %645 = vperm.xlu0 %644, %v200
      %v646 = vpop.permute.xlu0 %645
      %v648 = vperm.slane %v600, 6
      %v649 = vmul.f32 %v646, %v648
      %v650 = vadd.f32 %v643, %v649
      %651 = vset.pattern.permute.xlu0 7
      %652 = vperm.xlu0 %651, %v200
      %v653 = vpop.permute.xlu0 %652
      %v655 = vperm.slane %v600, 7
      %v656 = vmul.f32 %v653, %v655
      %v657 = vadd.f32 %v650, %v656
      %658 = vset.pattern.permute.xlu0 8
      %659 = vperm.xlu0 %658, %v200
      %v660 = vpop.permute.xlu0 %659
      %v662 = vperm.slane %v601, 0
      %v663 = vmul.f32 %v660, %v662
      %v664 = vadd.f32 %v657, %v663
      %665 = vset.pattern.permute.xlu0 9
      %666 = vperm.xlu0 %665, %v200
      %v667 = vpop.permute.xlu0 %666
      %v669 = vperm.slane %v601, 1
      %v670 = vmul.f32 %v667, %v669
      %v671 = vadd.f32 %v664, %v670
      %672 = vst [vmem:[%s197] sm:$0xff] %v671
      %s673 = scalar_lea.vmem %s2, 32
      %v674 = vld [vmem:[%s673] sm:$0xff]
      %v675 = vld [vmem:[%s673 + $0x8] sm:$0x3]
      %s676 = scalar_lea.vmem %s2, 48
      %v677 = vld [vmem:[%s676] sm:$0xff]
      %v678 = vld [vmem:[%s676 + $0x8] sm:$0x3]
      %680 = vset.pattern.permute.xlu0 10
      %681 = vperm.xlu0 %680, %v674
      %v682 = vpop.permute.xlu0 %681
      %685 = vset.pattern.permute.xlu0 10
      %686 = vperm.xlu0 %685, %v675
      %v687 = vpop.permute.xlu0 %686
      %690 = vset.pattern.permute.xlu0 10
      %691 = vperm.xlu0 %690, %v677
      %v692 = vpop.permute.xlu0 %691
      %695 = vset.pattern.permute.xlu0 10
      %696 = vperm.xlu0 %695, %v678
      %v697 = vpop.permute.xlu0 %696
      %699 = vset.pattern.permute.xlu0 0
      %700 = vperm.xlu0 %699, %v674
      %v701 = vpop.permute.xlu0 %700
      %703 = vset.pattern.permute.xlu0 0
      %704 = vperm.xlu0 %703, %v675
      %v705 = vpop.permute.xlu0 %704
      %v707 = vmul.f32 %v701, %v236
      %v708 = vmul.f32 %v705, %v236
      %v709 = vadd.f32 %v682, %v707
      %v710 = vadd.f32 %v687, %v708
      %711 = vset.pattern.permute.xlu0 0
      %712 = vperm.xlu0 %711, %v677
      %v713 = vpop.permute.xlu0 %712
      %715 = vset.pattern.permute.xlu0 0
      %716 = vperm.xlu0 %715, %v678
      %v717 = vpop.permute.xlu0 %716
      %v719 = vmul.f32 %v713, %v236
      %v720 = vmul.f32 %v717, %v236
      %v721 = vadd.f32 %v692, %v719
      %v722 = vadd.f32 %v697, %v720
      %723 = vset.pattern.permute.xlu0 1
      %724 = vperm.xlu0 %723, %v674
      %v725 = vpop.permute.xlu0 %724
      %727 = vset.pattern.permute.xlu0 1
      %728 = vperm.xlu0 %727, %v675
      %v729 = vpop.permute.xlu0 %728
      %v731 = vmul.f32 %v725, %v261
      %v732 = vmul.f32 %v729, %v261
      %v733 = vadd.f32 %v709, %v731
      %v734 = vadd.f32 %v710, %v732
      %735 = vset.pattern.permute.xlu0 1
      %736 = vperm.xlu0 %735, %v677
      %v737 = vpop.permute.xlu0 %736
      %739 = vset.pattern.permute.xlu0 1
      %740 = vperm.xlu0 %739, %v678
      %v741 = vpop.permute.xlu0 %740
      %v743 = vmul.f32 %v737, %v261
      %v744 = vmul.f32 %v741, %v261
      %v745 = vadd.f32 %v721, %v743
      %v746 = vadd.f32 %v722, %v744
      %747 = vset.pattern.permute.xlu0 2
      %748 = vperm.xlu0 %747, %v674
      %v749 = vpop.permute.xlu0 %748
      %751 = vset.pattern.permute.xlu0 2
      %752 = vperm.xlu0 %751, %v675
      %v753 = vpop.permute.xlu0 %752
      %v755 = vmul.f32 %v749, %v286
      %v756 = vmul.f32 %v753, %v286
      %v757 = vadd.f32 %v733, %v755
      %v758 = vadd.f32 %v734, %v756
      %759 = vset.pattern.permute.xlu0 2
      %760 = vperm.xlu0 %759, %v677
      %v761 = vpop.permute.xlu0 %760
      %763 = vset.pattern.permute.xlu0 2
      %764 = vperm.xlu0 %763, %v678
      %v765 = vpop.permute.xlu0 %764
      %v767 = vmul.f32 %v761, %v286
      %v768 = vmul.f32 %v765, %v286
      %v769 = vadd.f32 %v745, %v767
      %v770 = vadd.f32 %v746, %v768
      %771 = vset.pattern.permute.xlu0 3
      %772 = vperm.xlu0 %771, %v674
      %v773 = vpop.permute.xlu0 %772
      %775 = vset.pattern.permute.xlu0 3
      %776 = vperm.xlu0 %775, %v675
      %v777 = vpop.permute.xlu0 %776
      %v779 = vmul.f32 %v773, %v311
      %v780 = vmul.f32 %v777, %v311
      %v781 = vadd.f32 %v757, %v779
      %v782 = vadd.f32 %v758, %v780
      %783 = vset.pattern.permute.xlu0 3
      %784 = vperm.xlu0 %783, %v677
      %v785 = vpop.permute.xlu0 %784
      %787 = vset.pattern.permute.xlu0 3
      %788 = vperm.xlu0 %787, %v678
      %v789 = vpop.permute.xlu0 %788
      %v791 = vmul.f32 %v785, %v311
      %v792 = vmul.f32 %v789, %v311
      %v793 = vadd.f32 %v769, %v791
      %v794 = vadd.f32 %v770, %v792
      %795 = vset.pattern.permute.xlu0 4
      %796 = vperm.xlu0 %795, %v674
      %v797 = vpop.permute.xlu0 %796
      %799 = vset.pattern.permute.xlu0 4
      %800 = vperm.xlu0 %799, %v675
      %v801 = vpop.permute.xlu0 %800
      %v803 = vmul.f32 %v797, %v336
      %v804 = vmul.f32 %v801, %v336
      %v805 = vadd.f32 %v781, %v803
      %v806 = vadd.f32 %v782, %v804
      %807 = vset.pattern.permute.xlu0 4
      %808 = vperm.xlu0 %807, %v677
      %v809 = vpop.permute.xlu0 %808
      %811 = vset.pattern.permute.xlu0 4
      %812 = vperm.xlu0 %811, %v678
      %v813 = vpop.permute.xlu0 %812
      %v815 = vmul.f32 %v809, %v336
      %v816 = vmul.f32 %v813, %v336
      %v817 = vadd.f32 %v793, %v815
      %v818 = vadd.f32 %v794, %v816
      %819 = vset.pattern.permute.xlu0 5
      %820 = vperm.xlu0 %819, %v674
      %v821 = vpop.permute.xlu0 %820
      %823 = vset.pattern.permute.xlu0 5
      %824 = vperm.xlu0 %823, %v675
      %v825 = vpop.permute.xlu0 %824
      %v827 = vmul.f32 %v821, %v361
      %v828 = vmul.f32 %v825, %v361
      %v829 = vadd.f32 %v805, %v827
      %v830 = vadd.f32 %v806, %v828
      %831 = vset.pattern.permute.xlu0 5
      %832 = vperm.xlu0 %831, %v677
      %v833 = vpop.permute.xlu0 %832
      %835 = vset.pattern.permute.xlu0 5
      %836 = vperm.xlu0 %835, %v678
      %v837 = vpop.permute.xlu0 %836
      %v839 = vmul.f32 %v833, %v361
      %v840 = vmul.f32 %v837, %v361
      %v841 = vadd.f32 %v817, %v839
      %v842 = vadd.f32 %v818, %v840
      %843 = vset.pattern.permute.xlu0 6
      %844 = vperm.xlu0 %843, %v674
      %v845 = vpop.permute.xlu0 %844
      %847 = vset.pattern.permute.xlu0 6
      %848 = vperm.xlu0 %847, %v675
      %v849 = vpop.permute.xlu0 %848
      %v851 = vmul.f32 %v845, %v386
      %v852 = vmul.f32 %v849, %v386
      %v853 = vadd.f32 %v829, %v851
      %v854 = vadd.f32 %v830, %v852
      %855 = vset.pattern.permute.xlu0 6
      %856 = vperm.xlu0 %855, %v677
      %v857 = vpop.permute.xlu0 %856
      %859 = vset.pattern.permute.xlu0 6
      %860 = vperm.xlu0 %859, %v678
      %v861 = vpop.permute.xlu0 %860
      %v863 = vmul.f32 %v857, %v386
      %v864 = vmul.f32 %v861, %v386
      %v865 = vadd.f32 %v841, %v863
      %v866 = vadd.f32 %v842, %v864
      %867 = vset.pattern.permute.xlu0 7
      %868 = vperm.xlu0 %867, %v674
      %v869 = vpop.permute.xlu0 %868
      %871 = vset.pattern.permute.xlu0 7
      %872 = vperm.xlu0 %871, %v675
      %v873 = vpop.permute.xlu0 %872
      %v875 = vmul.f32 %v869, %v411
      %v876 = vmul.f32 %v873, %v411
      %v877 = vadd.f32 %v853, %v875
      %v878 = vadd.f32 %v854, %v876
      %879 = vset.pattern.permute.xlu0 7
      %880 = vperm.xlu0 %879, %v677
      %v881 = vpop.permute.xlu0 %880
      %883 = vset.pattern.permute.xlu0 7
      %884 = vperm.xlu0 %883, %v678
      %v885 = vpop.permute.xlu0 %884
      %v887 = vmul.f32 %v881, %v411
      %v888 = vmul.f32 %v885, %v411
      %v889 = vadd.f32 %v865, %v887
      %v890 = vadd.f32 %v866, %v888
      %891 = vset.pattern.permute.xlu0 8
      %892 = vperm.xlu0 %891, %v674
      %v893 = vpop.permute.xlu0 %892
      %895 = vset.pattern.permute.xlu0 8
      %896 = vperm.xlu0 %895, %v675
      %v897 = vpop.permute.xlu0 %896
      %v899 = vmul.f32 %v893, %v436
      %v900 = vmul.f32 %v897, %v436
      %v901 = vadd.f32 %v877, %v899
      %v902 = vadd.f32 %v878, %v900
      %903 = vset.pattern.permute.xlu0 8
      %904 = vperm.xlu0 %903, %v677
      %v905 = vpop.permute.xlu0 %904
      %907 = vset.pattern.permute.xlu0 8
      %908 = vperm.xlu0 %907, %v678
      %v909 = vpop.permute.xlu0 %908
      %v911 = vmul.f32 %v905, %v436
      %v912 = vmul.f32 %v909, %v436
      %v913 = vadd.f32 %v889, %v911
      %v914 = vadd.f32 %v890, %v912
      %915 = vset.pattern.permute.xlu0 9
      %916 = vperm.xlu0 %915, %v674
      %v917 = vpop.permute.xlu0 %916
      %919 = vset.pattern.permute.xlu0 9
      %920 = vperm.xlu0 %919, %v675
      %v921 = vpop.permute.xlu0 %920
      %v923 = vmul.f32 %v917, %v461
      %v924 = vmul.f32 %v921, %v461
      %v925 = vadd.f32 %v901, %v923
      %v926 = vadd.f32 %v902, %v924
      %927 = vset.pattern.permute.xlu0 9
      %928 = vperm.xlu0 %927, %v677
      %v929 = vpop.permute.xlu0 %928
      %931 = vset.pattern.permute.xlu0 9
      %932 = vperm.xlu0 %931, %v678
      %v933 = vpop.permute.xlu0 %932
      %v935 = vmul.f32 %v929, %v461
      %v936 = vmul.f32 %v933, %v461
      %v937 = vadd.f32 %v913, %v935
      %v938 = vadd.f32 %v914, %v936
      %v939 = vadd.f32 %v478, %v925
      %v940 = vadd.f32 %v478, %v926
      %v941 = vmax.f32 %v939, 0.0
      %v942 = vmax.f32 %v940, 0.0
      %v943 = vmin.f32 %v941, 7.0
      %v944 = vmin.f32 %v942, 7.0
      %v945 = vadd.f32 %v485, %v937
      %v946 = vadd.f32 %v485, %v938
      %v947 = vmax.f32 %v945, 0.0
      %v948 = vmax.f32 %v946, 0.0
      %v949 = vmin.f32 %v947, 15.0
      %v950 = vmin.f32 %v948, 15.0
      %v951 = vfloor.f32 %v943
      %v952 = vfloor.f32 %v944
      %v953 = vfloor.f32 %v949
      %v954 = vfloor.f32 %v950
      %v955 = vsub.f32 %v943, %v951
      %v956 = vsub.f32 %v944, %v952
      %v957 = vsub.f32 %v949, %v953
      %v958 = vsub.f32 %v950, %v954
      %v959 = vsub.f32 1.0, %v955
      %v960 = vsub.f32 1.0, %v956
      %v961 = vsub.f32 1.0, %v957
      %v962 = vsub.f32 1.0, %v958
      %v963 = vcvt.f32.s32.to.zero.pseudo %v951
      %v964 = vcvt.f32.s32.to.zero.pseudo %v952
      %v965 = vcvt.f32.s32.to.zero.pseudo %v953
      %v966 = vcvt.f32.s32.to.zero.pseudo %v954
      %v967 = vadd.s32 %v963, 1
      %v968 = vadd.s32 %v964, 1
      %vm969 = vcmp.lt.s32.totalorder %v967, 7
      %v970 = vsel %vm969, %v967, 7
      %vm971 = vcmp.lt.s32.totalorder %v968, 7
      %v972 = vsel %vm971, %v968, 7
      %v973 = vadd.s32 %v965, 1
      %v974 = vadd.s32 %v966, 1
      %vm975 = vcmp.lt.s32.totalorder %v973, 15
      %v976 = vsel %vm975, %v973, 15
      %vm977 = vcmp.lt.s32.totalorder %v974, 15
      %v978 = vsel %vm977, %v974, 15
      %v979 = vmul.u32 %v965, 8
      %v980 = vmul.u32 %v966, 8
      %v981 = vadd.s32 %v979, %v963
      %v982 = vadd.s32 %v980, %v964
      %vm983 = vcmp.lt.s32.totalorder %v981, 0
      %vm984 = vcmp.lt.s32.totalorder %v982, 0
      %v985 = vadd.s32 %v981, 128
      %v986 = vadd.s32 %v982, 128
      %v987 = vsel %vm983, %v985, %v981
      %v988 = vsel %vm984, %v986, %v982
      %989 = vset.pattern.permute.xlu0 %v987
      %990 = vperm.xlu0 %989, %v198
      %v991 = vpop.permute.xlu0 %990
      %992 = vset.pattern.permute.xlu0 %v988
      %993 = vperm.xlu0 %992, %v199
      %v994 = vpop.permute.xlu0 %993
      %v995 = vmul.f32 %v961, %v959
      %v996 = vmul.f32 %v962, %v960
      %v997 = vmul.f32 %v991, %v995
      %v998 = vmul.f32 %v994, %v996
      %v999 = vadd.s32 %v979, %v970
      %v1000 = vadd.s32 %v980, %v972
      %vm1001 = vcmp.lt.s32.totalorder %v999, 0
      %vm1002 = vcmp.lt.s32.totalorder %v1000, 0
      %v1003 = vadd.s32 %v999, 128
      %v1004 = vadd.s32 %v1000, 128
      %v1005 = vsel %vm1001, %v1003, %v999
      %v1006 = vsel %vm1002, %v1004, %v1000
      %1007 = vset.pattern.permute.xlu0 %v1005
      %1008 = vperm.xlu0 %1007, %v198
      %v1009 = vpop.permute.xlu0 %1008
      %1010 = vset.pattern.permute.xlu0 %v1006
      %1011 = vperm.xlu0 %1010, %v199
      %v1012 = vpop.permute.xlu0 %1011
      %v1013 = vmul.f32 %v961, %v955
      %v1014 = vmul.f32 %v962, %v956
      %v1015 = vmul.f32 %v1009, %v1013
      %v1016 = vmul.f32 %v1012, %v1014
      %v1017 = vadd.f32 %v997, %v1015
      %v1018 = vadd.f32 %v998, %v1016
      %v1019 = vmul.u32 %v976, 8
      %v1020 = vmul.u32 %v978, 8
      %v1021 = vadd.s32 %v1019, %v963
      %v1022 = vadd.s32 %v1020, %v964
      %vm1023 = vcmp.lt.s32.totalorder %v1021, 0
      %vm1024 = vcmp.lt.s32.totalorder %v1022, 0
      %v1025 = vadd.s32 %v1021, 128
      %v1026 = vadd.s32 %v1022, 128
      %v1027 = vsel %vm1023, %v1025, %v1021
      %v1028 = vsel %vm1024, %v1026, %v1022
      %1029 = vset.pattern.permute.xlu0 %v1027
      %1030 = vperm.xlu0 %1029, %v198
      %v1031 = vpop.permute.xlu0 %1030
      %1032 = vset.pattern.permute.xlu0 %v1028
      %1033 = vperm.xlu0 %1032, %v199
      %v1034 = vpop.permute.xlu0 %1033
      %v1035 = vmul.f32 %v957, %v959
      %v1036 = vmul.f32 %v958, %v960
      %v1037 = vmul.f32 %v1031, %v1035
      %v1038 = vmul.f32 %v1034, %v1036
      %v1039 = vadd.f32 %v1017, %v1037
      %v1040 = vadd.f32 %v1018, %v1038
      %v1041 = vadd.s32 %v1019, %v970
      %v1042 = vadd.s32 %v1020, %v972
      %vm1043 = vcmp.lt.s32.totalorder %v1041, 0
      %vm1044 = vcmp.lt.s32.totalorder %v1042, 0
      %v1045 = vadd.s32 %v1041, 128
      %v1046 = vadd.s32 %v1042, 128
      %v1047 = vsel %vm1043, %v1045, %v1041
      %v1048 = vsel %vm1044, %v1046, %v1042
      %1049 = vset.pattern.permute.xlu0 %v1047
      %1050 = vperm.xlu0 %1049, %v198
      %v1051 = vpop.permute.xlu0 %1050
      %1052 = vset.pattern.permute.xlu0 %v1048
      %1053 = vperm.xlu0 %1052, %v199
      %v1054 = vpop.permute.xlu0 %1053
      %v1055 = vmul.f32 %v957, %v955
      %v1056 = vmul.f32 %v958, %v956
      %v1057 = vmul.f32 %v1051, %v1055
      %v1058 = vmul.f32 %v1054, %v1056
      %v1059 = vadd.f32 %v1039, %v1057
      %v1060 = vadd.f32 %v1040, %v1058
      %v1061 = vperm.slane %v1059, 0
      %v1062 = vmul.f32 %v605, %v1061
      %v1063 = vperm.slane %v1059, 1
      %v1064 = vmul.f32 %v611, %v1063
      %v1065 = vadd.f32 %v1062, %v1064
      %v1066 = vperm.slane %v1059, 2
      %v1067 = vmul.f32 %v618, %v1066
      %v1068 = vadd.f32 %v1065, %v1067
      %v1069 = vperm.slane %v1059, 3
      %v1070 = vmul.f32 %v625, %v1069
      %v1071 = vadd.f32 %v1068, %v1070
      %v1072 = vperm.slane %v1059, 4
      %v1073 = vmul.f32 %v632, %v1072
      %v1074 = vadd.f32 %v1071, %v1073
      %v1075 = vperm.slane %v1059, 5
      %v1076 = vmul.f32 %v639, %v1075
      %v1077 = vadd.f32 %v1074, %v1076
      %v1078 = vperm.slane %v1059, 6
      %v1079 = vmul.f32 %v646, %v1078
      %v1080 = vadd.f32 %v1077, %v1079
      %v1081 = vperm.slane %v1059, 7
      %v1082 = vmul.f32 %v653, %v1081
      %v1083 = vadd.f32 %v1080, %v1082
      %v1084 = vperm.slane %v1060, 0
      %v1085 = vmul.f32 %v660, %v1084
      %v1086 = vadd.f32 %v1083, %v1085
      %v1087 = vperm.slane %v1060, 1
      %v1088 = vmul.f32 %v667, %v1087
      %v1089 = vadd.f32 %v1086, %v1088
      %s1090 = scalar_lea.vmem %s197, 8
      %1091 = vst [vmem:[%s1090] sm:$0xff] %v1089
      %s1092 = scalar_lea.vmem %s2, 64
      %v1093 = vld [vmem:[%s1092] sm:$0xff]
      %v1094 = vld [vmem:[%s1092 + $0x8] sm:$0x3]
      %s1095 = scalar_lea.vmem %s2, 80
      %v1096 = vld [vmem:[%s1095] sm:$0xff]
      %v1097 = vld [vmem:[%s1095 + $0x8] sm:$0x3]
      %1099 = vset.pattern.permute.xlu0 10
      %1100 = vperm.xlu0 %1099, %v1093
      %v1101 = vpop.permute.xlu0 %1100
      %1104 = vset.pattern.permute.xlu0 10
      %1105 = vperm.xlu0 %1104, %v1094
      %v1106 = vpop.permute.xlu0 %1105
      %1109 = vset.pattern.permute.xlu0 10
      %1110 = vperm.xlu0 %1109, %v1096
      %v1111 = vpop.permute.xlu0 %1110
      %1114 = vset.pattern.permute.xlu0 10
      %1115 = vperm.xlu0 %1114, %v1097
      %v1116 = vpop.permute.xlu0 %1115
      %1118 = vset.pattern.permute.xlu0 0
      %1119 = vperm.xlu0 %1118, %v1093
      %v1120 = vpop.permute.xlu0 %1119
      %1122 = vset.pattern.permute.xlu0 0
      %1123 = vperm.xlu0 %1122, %v1094
      %v1124 = vpop.permute.xlu0 %1123
      %v1126 = vmul.f32 %v1120, %v236
      %v1127 = vmul.f32 %v1124, %v236
      %v1128 = vadd.f32 %v1101, %v1126
      %v1129 = vadd.f32 %v1106, %v1127
      %1130 = vset.pattern.permute.xlu0 0
      %1131 = vperm.xlu0 %1130, %v1096
      %v1132 = vpop.permute.xlu0 %1131
      %1134 = vset.pattern.permute.xlu0 0
      %1135 = vperm.xlu0 %1134, %v1097
      %v1136 = vpop.permute.xlu0 %1135
      %v1138 = vmul.f32 %v1132, %v236
      %v1139 = vmul.f32 %v1136, %v236
      %v1140 = vadd.f32 %v1111, %v1138
      %v1141 = vadd.f32 %v1116, %v1139
      %1142 = vset.pattern.permute.xlu0 1
      %1143 = vperm.xlu0 %1142, %v1093
      %v1144 = vpop.permute.xlu0 %1143
      %1146 = vset.pattern.permute.xlu0 1
      %1147 = vperm.xlu0 %1146, %v1094
      %v1148 = vpop.permute.xlu0 %1147
      %v1150 = vmul.f32 %v1144, %v261
      %v1151 = vmul.f32 %v1148, %v261
      %v1152 = vadd.f32 %v1128, %v1150
      %v1153 = vadd.f32 %v1129, %v1151
      %1154 = vset.pattern.permute.xlu0 1
      %1155 = vperm.xlu0 %1154, %v1096
      %v1156 = vpop.permute.xlu0 %1155
      %1158 = vset.pattern.permute.xlu0 1
      %1159 = vperm.xlu0 %1158, %v1097
      %v1160 = vpop.permute.xlu0 %1159
      %v1162 = vmul.f32 %v1156, %v261
      %v1163 = vmul.f32 %v1160, %v261
      %v1164 = vadd.f32 %v1140, %v1162
      %v1165 = vadd.f32 %v1141, %v1163
      %1166 = vset.pattern.permute.xlu0 2
      %1167 = vperm.xlu0 %1166, %v1093
      %v1168 = vpop.permute.xlu0 %1167
      %1170 = vset.pattern.permute.xlu0 2
      %1171 = vperm.xlu0 %1170, %v1094
      %v1172 = vpop.permute.xlu0 %1171
      %v1174 = vmul.f32 %v1168, %v286
      %v1175 = vmul.f32 %v1172, %v286
      %v1176 = vadd.f32 %v1152, %v1174
      %v1177 = vadd.f32 %v1153, %v1175
      %1178 = vset.pattern.permute.xlu0 2
      %1179 = vperm.xlu0 %1178, %v1096
      %v1180 = vpop.permute.xlu0 %1179
      %1182 = vset.pattern.permute.xlu0 2
      %1183 = vperm.xlu0 %1182, %v1097
      %v1184 = vpop.permute.xlu0 %1183
      %v1186 = vmul.f32 %v1180, %v286
      %v1187 = vmul.f32 %v1184, %v286
      %v1188 = vadd.f32 %v1164, %v1186
      %v1189 = vadd.f32 %v1165, %v1187
      %1190 = vset.pattern.permute.xlu0 3
      %1191 = vperm.xlu0 %1190, %v1093
      %v1192 = vpop.permute.xlu0 %1191
      %1194 = vset.pattern.permute.xlu0 3
      %1195 = vperm.xlu0 %1194, %v1094
      %v1196 = vpop.permute.xlu0 %1195
      %v1198 = vmul.f32 %v1192, %v311
      %v1199 = vmul.f32 %v1196, %v311
      %v1200 = vadd.f32 %v1176, %v1198
      %v1201 = vadd.f32 %v1177, %v1199
      %1202 = vset.pattern.permute.xlu0 3
      %1203 = vperm.xlu0 %1202, %v1096
      %v1204 = vpop.permute.xlu0 %1203
      %1206 = vset.pattern.permute.xlu0 3
      %1207 = vperm.xlu0 %1206, %v1097
      %v1208 = vpop.permute.xlu0 %1207
      %v1210 = vmul.f32 %v1204, %v311
      %v1211 = vmul.f32 %v1208, %v311
      %v1212 = vadd.f32 %v1188, %v1210
      %v1213 = vadd.f32 %v1189, %v1211
      %1214 = vset.pattern.permute.xlu0 4
      %1215 = vperm.xlu0 %1214, %v1093
      %v1216 = vpop.permute.xlu0 %1215
      %1218 = vset.pattern.permute.xlu0 4
      %1219 = vperm.xlu0 %1218, %v1094
      %v1220 = vpop.permute.xlu0 %1219
      %v1222 = vmul.f32 %v1216, %v336
      %v1223 = vmul.f32 %v1220, %v336
      %v1224 = vadd.f32 %v1200, %v1222
      %v1225 = vadd.f32 %v1201, %v1223
      %1226 = vset.pattern.permute.xlu0 4
      %1227 = vperm.xlu0 %1226, %v1096
      %v1228 = vpop.permute.xlu0 %1227
      %1230 = vset.pattern.permute.xlu0 4
      %1231 = vperm.xlu0 %1230, %v1097
      %v1232 = vpop.permute.xlu0 %1231
      %v1234 = vmul.f32 %v1228, %v336
      %v1235 = vmul.f32 %v1232, %v336
      %v1236 = vadd.f32 %v1212, %v1234
      %v1237 = vadd.f32 %v1213, %v1235
      %1238 = vset.pattern.permute.xlu0 5
      %1239 = vperm.xlu0 %1238, %v1093
      %v1240 = vpop.permute.xlu0 %1239
      %1242 = vset.pattern.permute.xlu0 5
      %1243 = vperm.xlu0 %1242, %v1094
      %v1244 = vpop.permute.xlu0 %1243
      %v1246 = vmul.f32 %v1240, %v361
      %v1247 = vmul.f32 %v1244, %v361
      %v1248 = vadd.f32 %v1224, %v1246
      %v1249 = vadd.f32 %v1225, %v1247
      %1250 = vset.pattern.permute.xlu0 5
      %1251 = vperm.xlu0 %1250, %v1096
      %v1252 = vpop.permute.xlu0 %1251
      %1254 = vset.pattern.permute.xlu0 5
      %1255 = vperm.xlu0 %1254, %v1097
      %v1256 = vpop.permute.xlu0 %1255
      %v1258 = vmul.f32 %v1252, %v361
      %v1259 = vmul.f32 %v1256, %v361
      %v1260 = vadd.f32 %v1236, %v1258
      %v1261 = vadd.f32 %v1237, %v1259
      %1262 = vset.pattern.permute.xlu0 6
      %1263 = vperm.xlu0 %1262, %v1093
      %v1264 = vpop.permute.xlu0 %1263
      %1266 = vset.pattern.permute.xlu0 6
      %1267 = vperm.xlu0 %1266, %v1094
      %v1268 = vpop.permute.xlu0 %1267
      %v1270 = vmul.f32 %v1264, %v386
      %v1271 = vmul.f32 %v1268, %v386
      %v1272 = vadd.f32 %v1248, %v1270
      %v1273 = vadd.f32 %v1249, %v1271
      %1274 = vset.pattern.permute.xlu0 6
      %1275 = vperm.xlu0 %1274, %v1096
      %v1276 = vpop.permute.xlu0 %1275
      %1278 = vset.pattern.permute.xlu0 6
      %1279 = vperm.xlu0 %1278, %v1097
      %v1280 = vpop.permute.xlu0 %1279
      %v1282 = vmul.f32 %v1276, %v386
      %v1283 = vmul.f32 %v1280, %v386
      %v1284 = vadd.f32 %v1260, %v1282
      %v1285 = vadd.f32 %v1261, %v1283
      %1286 = vset.pattern.permute.xlu0 7
      %1287 = vperm.xlu0 %1286, %v1093
      %v1288 = vpop.permute.xlu0 %1287
      %1290 = vset.pattern.permute.xlu0 7
      %1291 = vperm.xlu0 %1290, %v1094
      %v1292 = vpop.permute.xlu0 %1291
      %v1294 = vmul.f32 %v1288, %v411
      %v1295 = vmul.f32 %v1292, %v411
      %v1296 = vadd.f32 %v1272, %v1294
      %v1297 = vadd.f32 %v1273, %v1295
      %1298 = vset.pattern.permute.xlu0 7
      %1299 = vperm.xlu0 %1298, %v1096
      %v1300 = vpop.permute.xlu0 %1299
      %1302 = vset.pattern.permute.xlu0 7
      %1303 = vperm.xlu0 %1302, %v1097
      %v1304 = vpop.permute.xlu0 %1303
      %v1306 = vmul.f32 %v1300, %v411
      %v1307 = vmul.f32 %v1304, %v411
      %v1308 = vadd.f32 %v1284, %v1306
      %v1309 = vadd.f32 %v1285, %v1307
      %1310 = vset.pattern.permute.xlu0 8
      %1311 = vperm.xlu0 %1310, %v1093
      %v1312 = vpop.permute.xlu0 %1311
      %1314 = vset.pattern.permute.xlu0 8
      %1315 = vperm.xlu0 %1314, %v1094
      %v1316 = vpop.permute.xlu0 %1315
      %v1318 = vmul.f32 %v1312, %v436
      %v1319 = vmul.f32 %v1316, %v436
      %v1320 = vadd.f32 %v1296, %v1318
      %v1321 = vadd.f32 %v1297, %v1319
      %1322 = vset.pattern.permute.xlu0 8
      %1323 = vperm.xlu0 %1322, %v1096
      %v1324 = vpop.permute.xlu0 %1323
      %1326 = vset.pattern.permute.xlu0 8
      %1327 = vperm.xlu0 %1326, %v1097
      %v1328 = vpop.permute.xlu0 %1327
      %v1330 = vmul.f32 %v1324, %v436
      %v1331 = vmul.f32 %v1328, %v436
      %v1332 = vadd.f32 %v1308, %v1330
      %v1333 = vadd.f32 %v1309, %v1331
      %1334 = vset.pattern.permute.xlu0 9
      %1335 = vperm.xlu0 %1334, %v1093
      %v1336 = vpop.permute.xlu0 %1335
      %1338 = vset.pattern.permute.xlu0 9
      %1339 = vperm.xlu0 %1338, %v1094
      %v1340 = vpop.permute.xlu0 %1339
      %v1342 = vmul.f32 %v1336, %v461
      %v1343 = vmul.f32 %v1340, %v461
      %v1344 = vadd.f32 %v1320, %v1342
      %v1345 = vadd.f32 %v1321, %v1343
      %1346 = vset.pattern.permute.xlu0 9
      %1347 = vperm.xlu0 %1346, %v1096
      %v1348 = vpop.permute.xlu0 %1347
      %1350 = vset.pattern.permute.xlu0 9
      %1351 = vperm.xlu0 %1350, %v1097
      %v1352 = vpop.permute.xlu0 %1351
      %v1354 = vmul.f32 %v1348, %v461
      %v1355 = vmul.f32 %v1352, %v461
      %v1356 = vadd.f32 %v1332, %v1354
      %v1357 = vadd.f32 %v1333, %v1355
      %v1358 = vadd.f32 %v478, %v1344
      %v1359 = vadd.f32 %v478, %v1345
      %v1360 = vmax.f32 %v1358, 0.0
      %v1361 = vmax.f32 %v1359, 0.0
      %v1362 = vmin.f32 %v1360, 7.0
      %v1363 = vmin.f32 %v1361, 7.0
      %v1364 = vadd.f32 %v485, %v1356
      %v1365 = vadd.f32 %v485, %v1357
      %v1366 = vmax.f32 %v1364, 0.0
      %v1367 = vmax.f32 %v1365, 0.0
      %v1368 = vmin.f32 %v1366, 15.0
      %v1369 = vmin.f32 %v1367, 15.0
      %v1370 = vfloor.f32 %v1362
      %v1371 = vfloor.f32 %v1363
      %v1372 = vfloor.f32 %v1368
      %v1373 = vfloor.f32 %v1369
      %v1374 = vsub.f32 %v1362, %v1370
      %v1375 = vsub.f32 %v1363, %v1371
      %v1376 = vsub.f32 %v1368, %v1372
      %v1377 = vsub.f32 %v1369, %v1373
      %v1378 = vsub.f32 1.0, %v1374
      %v1379 = vsub.f32 1.0, %v1375
      %v1380 = vsub.f32 1.0, %v1376
      %v1381 = vsub.f32 1.0, %v1377
      %v1382 = vcvt.f32.s32.to.zero.pseudo %v1370
      %v1383 = vcvt.f32.s32.to.zero.pseudo %v1371
      %v1384 = vcvt.f32.s32.to.zero.pseudo %v1372
      %v1385 = vcvt.f32.s32.to.zero.pseudo %v1373
      %v1386 = vadd.s32 %v1382, 1
      %v1387 = vadd.s32 %v1383, 1
      %vm1388 = vcmp.lt.s32.totalorder %v1386, 7
      %v1389 = vsel %vm1388, %v1386, 7
      %vm1390 = vcmp.lt.s32.totalorder %v1387, 7
      %v1391 = vsel %vm1390, %v1387, 7
      %v1392 = vadd.s32 %v1384, 1
      %v1393 = vadd.s32 %v1385, 1
      %vm1394 = vcmp.lt.s32.totalorder %v1392, 15
      %v1395 = vsel %vm1394, %v1392, 15
      %vm1396 = vcmp.lt.s32.totalorder %v1393, 15
      %v1397 = vsel %vm1396, %v1393, 15
      %v1398 = vmul.u32 %v1384, 8
      %v1399 = vmul.u32 %v1385, 8
      %v1400 = vadd.s32 %v1398, %v1382
      %v1401 = vadd.s32 %v1399, %v1383
      %vm1402 = vcmp.lt.s32.totalorder %v1400, 0
      %vm1403 = vcmp.lt.s32.totalorder %v1401, 0
      %v1404 = vadd.s32 %v1400, 128
      %v1405 = vadd.s32 %v1401, 128
      %v1406 = vsel %vm1402, %v1404, %v1400
      %v1407 = vsel %vm1403, %v1405, %v1401
      %1408 = vset.pattern.permute.xlu0 %v1406
      %1409 = vperm.xlu0 %1408, %v198
      %v1410 = vpop.permute.xlu0 %1409
      %1411 = vset.pattern.permute.xlu0 %v1407
      %1412 = vperm.xlu0 %1411, %v199
      %v1413 = vpop.permute.xlu0 %1412
      %v1414 = vmul.f32 %v1380, %v1378
      %v1415 = vmul.f32 %v1381, %v1379
      %v1416 = vmul.f32 %v1410, %v1414
      %v1417 = vmul.f32 %v1413, %v1415
      %v1418 = vadd.s32 %v1398, %v1389
      %v1419 = vadd.s32 %v1399, %v1391
      %vm1420 = vcmp.lt.s32.totalorder %v1418, 0
      %vm1421 = vcmp.lt.s32.totalorder %v1419, 0
      %v1422 = vadd.s32 %v1418, 128
      %v1423 = vadd.s32 %v1419, 128
      %v1424 = vsel %vm1420, %v1422, %v1418
      %v1425 = vsel %vm1421, %v1423, %v1419
      %1426 = vset.pattern.permute.xlu0 %v1424
      %1427 = vperm.xlu0 %1426, %v198
      %v1428 = vpop.permute.xlu0 %1427
      %1429 = vset.pattern.permute.xlu0 %v1425
      %1430 = vperm.xlu0 %1429, %v199
      %v1431 = vpop.permute.xlu0 %1430
      %v1432 = vmul.f32 %v1380, %v1374
      %v1433 = vmul.f32 %v1381, %v1375
      %v1434 = vmul.f32 %v1428, %v1432
      %v1435 = vmul.f32 %v1431, %v1433
      %v1436 = vadd.f32 %v1416, %v1434
      %v1437 = vadd.f32 %v1417, %v1435
      %v1438 = vmul.u32 %v1395, 8
      %v1439 = vmul.u32 %v1397, 8
      %v1440 = vadd.s32 %v1438, %v1382
      %v1441 = vadd.s32 %v1439, %v1383
      %vm1442 = vcmp.lt.s32.totalorder %v1440, 0
      %vm1443 = vcmp.lt.s32.totalorder %v1441, 0
      %v1444 = vadd.s32 %v1440, 128
      %v1445 = vadd.s32 %v1441, 128
      %v1446 = vsel %vm1442, %v1444, %v1440
      %v1447 = vsel %vm1443, %v1445, %v1441
      %1448 = vset.pattern.permute.xlu0 %v1446
      %1449 = vperm.xlu0 %1448, %v198
      %v1450 = vpop.permute.xlu0 %1449
      %1451 = vset.pattern.permute.xlu0 %v1447
      %1452 = vperm.xlu0 %1451, %v199
      %v1453 = vpop.permute.xlu0 %1452
      %v1454 = vmul.f32 %v1376, %v1378
      %v1455 = vmul.f32 %v1377, %v1379
      %v1456 = vmul.f32 %v1450, %v1454
      %v1457 = vmul.f32 %v1453, %v1455
      %v1458 = vadd.f32 %v1436, %v1456
      %v1459 = vadd.f32 %v1437, %v1457
      %v1460 = vadd.s32 %v1438, %v1389
      %v1461 = vadd.s32 %v1439, %v1391
      %vm1462 = vcmp.lt.s32.totalorder %v1460, 0
      %vm1463 = vcmp.lt.s32.totalorder %v1461, 0
      %v1464 = vadd.s32 %v1460, 128
      %v1465 = vadd.s32 %v1461, 128
      %v1466 = vsel %vm1462, %v1464, %v1460
      %v1467 = vsel %vm1463, %v1465, %v1461
      %1468 = vset.pattern.permute.xlu0 %v1466
      %1469 = vperm.xlu0 %1468, %v198
      %v1470 = vpop.permute.xlu0 %1469
      %1471 = vset.pattern.permute.xlu0 %v1467
      %1472 = vperm.xlu0 %1471, %v199
      %v1473 = vpop.permute.xlu0 %1472
      %v1474 = vmul.f32 %v1376, %v1374
      %v1475 = vmul.f32 %v1377, %v1375
      %v1476 = vmul.f32 %v1470, %v1474
      %v1477 = vmul.f32 %v1473, %v1475
      %v1478 = vadd.f32 %v1458, %v1476
      %v1479 = vadd.f32 %v1459, %v1477
      %v1480 = vperm.slane %v1478, 0
      %v1481 = vmul.f32 %v605, %v1480
      %v1482 = vperm.slane %v1478, 1
      %v1483 = vmul.f32 %v611, %v1482
      %v1484 = vadd.f32 %v1481, %v1483
      %v1485 = vperm.slane %v1478, 2
      %v1486 = vmul.f32 %v618, %v1485
      %v1487 = vadd.f32 %v1484, %v1486
      %v1488 = vperm.slane %v1478, 3
      %v1489 = vmul.f32 %v625, %v1488
      %v1490 = vadd.f32 %v1487, %v1489
      %v1491 = vperm.slane %v1478, 4
      %v1492 = vmul.f32 %v632, %v1491
      %v1493 = vadd.f32 %v1490, %v1492
      %v1494 = vperm.slane %v1478, 5
      %v1495 = vmul.f32 %v639, %v1494
      %v1496 = vadd.f32 %v1493, %v1495
      %v1497 = vperm.slane %v1478, 6
      %v1498 = vmul.f32 %v646, %v1497
      %v1499 = vadd.f32 %v1496, %v1498
      %v1500 = vperm.slane %v1478, 7
      %v1501 = vmul.f32 %v653, %v1500
      %v1502 = vadd.f32 %v1499, %v1501
      %v1503 = vperm.slane %v1479, 0
      %v1504 = vmul.f32 %v660, %v1503
      %v1505 = vadd.f32 %v1502, %v1504
      %v1506 = vperm.slane %v1479, 1
      %v1507 = vmul.f32 %v667, %v1506
      %v1508 = vadd.f32 %v1505, %v1507
      %s1509 = scalar_lea.vmem %s197, 16
      %1510 = vst [vmem:[%s1509] sm:$0xff] %v1508
      %s1511 = scalar_lea.vmem %s2, 96
      %v1512 = vld [vmem:[%s1511] sm:$0xff]
      %v1513 = vld [vmem:[%s1511 + $0x8] sm:$0x3]
      %s1514 = scalar_lea.vmem %s2, 112
      %v1515 = vld [vmem:[%s1514] sm:$0xff]
      %v1516 = vld [vmem:[%s1514 + $0x8] sm:$0x3]
      %1518 = vset.pattern.permute.xlu0 10
      %1519 = vperm.xlu0 %1518, %v1512
      %v1520 = vpop.permute.xlu0 %1519
      %1523 = vset.pattern.permute.xlu0 10
      %1524 = vperm.xlu0 %1523, %v1513
      %v1525 = vpop.permute.xlu0 %1524
      %1528 = vset.pattern.permute.xlu0 10
      %1529 = vperm.xlu0 %1528, %v1515
      %v1530 = vpop.permute.xlu0 %1529
      %1533 = vset.pattern.permute.xlu0 10
      %1534 = vperm.xlu0 %1533, %v1516
      %v1535 = vpop.permute.xlu0 %1534
      %1537 = vset.pattern.permute.xlu0 0
      %1538 = vperm.xlu0 %1537, %v1512
      %v1539 = vpop.permute.xlu0 %1538
      %1541 = vset.pattern.permute.xlu0 0
      %1542 = vperm.xlu0 %1541, %v1513
      %v1543 = vpop.permute.xlu0 %1542
      %v1545 = vmul.f32 %v1539, %v236
      %v1546 = vmul.f32 %v1543, %v236
      %v1547 = vadd.f32 %v1520, %v1545
      %v1548 = vadd.f32 %v1525, %v1546
      %1549 = vset.pattern.permute.xlu0 0
      %1550 = vperm.xlu0 %1549, %v1515
      %v1551 = vpop.permute.xlu0 %1550
      %1553 = vset.pattern.permute.xlu0 0
      %1554 = vperm.xlu0 %1553, %v1516
      %v1555 = vpop.permute.xlu0 %1554
      %v1557 = vmul.f32 %v1551, %v236
      %v1558 = vmul.f32 %v1555, %v236
      %v1559 = vadd.f32 %v1530, %v1557
      %v1560 = vadd.f32 %v1535, %v1558
      %1561 = vset.pattern.permute.xlu0 1
      %1562 = vperm.xlu0 %1561, %v1512
      %v1563 = vpop.permute.xlu0 %1562
      %1565 = vset.pattern.permute.xlu0 1
      %1566 = vperm.xlu0 %1565, %v1513
      %v1567 = vpop.permute.xlu0 %1566
      %v1569 = vmul.f32 %v1563, %v261
      %v1570 = vmul.f32 %v1567, %v261
      %v1571 = vadd.f32 %v1547, %v1569
      %v1572 = vadd.f32 %v1548, %v1570
      %1573 = vset.pattern.permute.xlu0 1
      %1574 = vperm.xlu0 %1573, %v1515
      %v1575 = vpop.permute.xlu0 %1574
      %1577 = vset.pattern.permute.xlu0 1
      %1578 = vperm.xlu0 %1577, %v1516
      %v1579 = vpop.permute.xlu0 %1578
      %v1581 = vmul.f32 %v1575, %v261
      %v1582 = vmul.f32 %v1579, %v261
      %v1583 = vadd.f32 %v1559, %v1581
      %v1584 = vadd.f32 %v1560, %v1582
      %1585 = vset.pattern.permute.xlu0 2
      %1586 = vperm.xlu0 %1585, %v1512
      %v1587 = vpop.permute.xlu0 %1586
      %1589 = vset.pattern.permute.xlu0 2
      %1590 = vperm.xlu0 %1589, %v1513
      %v1591 = vpop.permute.xlu0 %1590
      %v1593 = vmul.f32 %v1587, %v286
      %v1594 = vmul.f32 %v1591, %v286
      %v1595 = vadd.f32 %v1571, %v1593
      %v1596 = vadd.f32 %v1572, %v1594
      %1597 = vset.pattern.permute.xlu0 2
      %1598 = vperm.xlu0 %1597, %v1515
      %v1599 = vpop.permute.xlu0 %1598
      %1601 = vset.pattern.permute.xlu0 2
      %1602 = vperm.xlu0 %1601, %v1516
      %v1603 = vpop.permute.xlu0 %1602
      %v1605 = vmul.f32 %v1599, %v286
      %v1606 = vmul.f32 %v1603, %v286
      %v1607 = vadd.f32 %v1583, %v1605
      %v1608 = vadd.f32 %v1584, %v1606
      %1609 = vset.pattern.permute.xlu0 3
      %1610 = vperm.xlu0 %1609, %v1512
      %v1611 = vpop.permute.xlu0 %1610
      %1613 = vset.pattern.permute.xlu0 3
      %1614 = vperm.xlu0 %1613, %v1513
      %v1615 = vpop.permute.xlu0 %1614
      %v1617 = vmul.f32 %v1611, %v311
      %v1618 = vmul.f32 %v1615, %v311
      %v1619 = vadd.f32 %v1595, %v1617
      %v1620 = vadd.f32 %v1596, %v1618
      %1621 = vset.pattern.permute.xlu0 3
      %1622 = vperm.xlu0 %1621, %v1515
      %v1623 = vpop.permute.xlu0 %1622
      %1625 = vset.pattern.permute.xlu0 3
      %1626 = vperm.xlu0 %1625, %v1516
      %v1627 = vpop.permute.xlu0 %1626
      %v1629 = vmul.f32 %v1623, %v311
      %v1630 = vmul.f32 %v1627, %v311
      %v1631 = vadd.f32 %v1607, %v1629
      %v1632 = vadd.f32 %v1608, %v1630
      %1633 = vset.pattern.permute.xlu0 4
      %1634 = vperm.xlu0 %1633, %v1512
      %v1635 = vpop.permute.xlu0 %1634
      %1637 = vset.pattern.permute.xlu0 4
      %1638 = vperm.xlu0 %1637, %v1513
      %v1639 = vpop.permute.xlu0 %1638
      %v1641 = vmul.f32 %v1635, %v336
      %v1642 = vmul.f32 %v1639, %v336
      %v1643 = vadd.f32 %v1619, %v1641
      %v1644 = vadd.f32 %v1620, %v1642
      %1645 = vset.pattern.permute.xlu0 4
      %1646 = vperm.xlu0 %1645, %v1515
      %v1647 = vpop.permute.xlu0 %1646
      %1649 = vset.pattern.permute.xlu0 4
      %1650 = vperm.xlu0 %1649, %v1516
      %v1651 = vpop.permute.xlu0 %1650
      %v1653 = vmul.f32 %v1647, %v336
      %v1654 = vmul.f32 %v1651, %v336
      %v1655 = vadd.f32 %v1631, %v1653
      %v1656 = vadd.f32 %v1632, %v1654
      %1657 = vset.pattern.permute.xlu0 5
      %1658 = vperm.xlu0 %1657, %v1512
      %v1659 = vpop.permute.xlu0 %1658
      %1661 = vset.pattern.permute.xlu0 5
      %1662 = vperm.xlu0 %1661, %v1513
      %v1663 = vpop.permute.xlu0 %1662
      %v1665 = vmul.f32 %v1659, %v361
      %v1666 = vmul.f32 %v1663, %v361
      %v1667 = vadd.f32 %v1643, %v1665
      %v1668 = vadd.f32 %v1644, %v1666
      %1669 = vset.pattern.permute.xlu0 5
      %1670 = vperm.xlu0 %1669, %v1515
      %v1671 = vpop.permute.xlu0 %1670
      %1673 = vset.pattern.permute.xlu0 5
      %1674 = vperm.xlu0 %1673, %v1516
      %v1675 = vpop.permute.xlu0 %1674
      %v1677 = vmul.f32 %v1671, %v361
      %v1678 = vmul.f32 %v1675, %v361
      %v1679 = vadd.f32 %v1655, %v1677
      %v1680 = vadd.f32 %v1656, %v1678
      %1681 = vset.pattern.permute.xlu0 6
      %1682 = vperm.xlu0 %1681, %v1512
      %v1683 = vpop.permute.xlu0 %1682
      %1685 = vset.pattern.permute.xlu0 6
      %1686 = vperm.xlu0 %1685, %v1513
      %v1687 = vpop.permute.xlu0 %1686
      %v1689 = vmul.f32 %v1683, %v386
      %v1690 = vmul.f32 %v1687, %v386
      %v1691 = vadd.f32 %v1667, %v1689
      %v1692 = vadd.f32 %v1668, %v1690
      %1693 = vset.pattern.permute.xlu0 6
      %1694 = vperm.xlu0 %1693, %v1515
      %v1695 = vpop.permute.xlu0 %1694
      %1697 = vset.pattern.permute.xlu0 6
      %1698 = vperm.xlu0 %1697, %v1516
      %v1699 = vpop.permute.xlu0 %1698
      %v1701 = vmul.f32 %v1695, %v386
      %v1702 = vmul.f32 %v1699, %v386
      %v1703 = vadd.f32 %v1679, %v1701
      %v1704 = vadd.f32 %v1680, %v1702
      %1705 = vset.pattern.permute.xlu0 7
      %1706 = vperm.xlu0 %1705, %v1512
      %v1707 = vpop.permute.xlu0 %1706
      %1709 = vset.pattern.permute.xlu0 7
      %1710 = vperm.xlu0 %1709, %v1513
      %v1711 = vpop.permute.xlu0 %1710
      %v1713 = vmul.f32 %v1707, %v411
      %v1714 = vmul.f32 %v1711, %v411
      %v1715 = vadd.f32 %v1691, %v1713
      %v1716 = vadd.f32 %v1692, %v1714
      %1717 = vset.pattern.permute.xlu0 7
      %1718 = vperm.xlu0 %1717, %v1515
      %v1719 = vpop.permute.xlu0 %1718
      %1721 = vset.pattern.permute.xlu0 7
      %1722 = vperm.xlu0 %1721, %v1516
      %v1723 = vpop.permute.xlu0 %1722
      %v1725 = vmul.f32 %v1719, %v411
      %v1726 = vmul.f32 %v1723, %v411
      %v1727 = vadd.f32 %v1703, %v1725
      %v1728 = vadd.f32 %v1704, %v1726
      %1729 = vset.pattern.permute.xlu0 8
      %1730 = vperm.xlu0 %1729, %v1512
      %v1731 = vpop.permute.xlu0 %1730
      %1733 = vset.pattern.permute.xlu0 8
      %1734 = vperm.xlu0 %1733, %v1513
      %v1735 = vpop.permute.xlu0 %1734
      %v1737 = vmul.f32 %v1731, %v436
      %v1738 = vmul.f32 %v1735, %v436
      %v1739 = vadd.f32 %v1715, %v1737
      %v1740 = vadd.f32 %v1716, %v1738
      %1741 = vset.pattern.permute.xlu0 8
      %1742 = vperm.xlu0 %1741, %v1515
      %v1743 = vpop.permute.xlu0 %1742
      %1745 = vset.pattern.permute.xlu0 8
      %1746 = vperm.xlu0 %1745, %v1516
      %v1747 = vpop.permute.xlu0 %1746
      %v1749 = vmul.f32 %v1743, %v436
      %v1750 = vmul.f32 %v1747, %v436
      %v1751 = vadd.f32 %v1727, %v1749
      %v1752 = vadd.f32 %v1728, %v1750
      %1753 = vset.pattern.permute.xlu0 9
      %1754 = vperm.xlu0 %1753, %v1512
      %v1755 = vpop.permute.xlu0 %1754
      %1757 = vset.pattern.permute.xlu0 9
      %1758 = vperm.xlu0 %1757, %v1513
      %v1759 = vpop.permute.xlu0 %1758
      %v1761 = vmul.f32 %v1755, %v461
      %v1762 = vmul.f32 %v1759, %v461
      %v1763 = vadd.f32 %v1739, %v1761
      %v1764 = vadd.f32 %v1740, %v1762
      %1765 = vset.pattern.permute.xlu0 9
      %1766 = vperm.xlu0 %1765, %v1515
      %v1767 = vpop.permute.xlu0 %1766
      %1769 = vset.pattern.permute.xlu0 9
      %1770 = vperm.xlu0 %1769, %v1516
      %v1771 = vpop.permute.xlu0 %1770
      %v1773 = vmul.f32 %v1767, %v461
      %v1774 = vmul.f32 %v1771, %v461
      %v1775 = vadd.f32 %v1751, %v1773
      %v1776 = vadd.f32 %v1752, %v1774
      %v1777 = vadd.f32 %v478, %v1763
      %v1778 = vadd.f32 %v478, %v1764
      %v1779 = vmax.f32 %v1777, 0.0
      %v1780 = vmax.f32 %v1778, 0.0
      %v1781 = vmin.f32 %v1779, 7.0
      %v1782 = vmin.f32 %v1780, 7.0
      %v1783 = vadd.f32 %v485, %v1775
      %v1784 = vadd.f32 %v485, %v1776
      %v1785 = vmax.f32 %v1783, 0.0
      %v1786 = vmax.f32 %v1784, 0.0
      %v1787 = vmin.f32 %v1785, 15.0
      %v1788 = vmin.f32 %v1786, 15.0
      %v1789 = vfloor.f32 %v1781
      %v1790 = vfloor.f32 %v1782
      %v1791 = vfloor.f32 %v1787
      %v1792 = vfloor.f32 %v1788
      %v1793 = vsub.f32 %v1781, %v1789
      %v1794 = vsub.f32 %v1782, %v1790
      %v1795 = vsub.f32 %v1787, %v1791
      %v1796 = vsub.f32 %v1788, %v1792
      %v1797 = vsub.f32 1.0, %v1793
      %v1798 = vsub.f32 1.0, %v1794
      %v1799 = vsub.f32 1.0, %v1795
      %v1800 = vsub.f32 1.0, %v1796
      %v1801 = vcvt.f32.s32.to.zero.pseudo %v1789
      %v1802 = vcvt.f32.s32.to.zero.pseudo %v1790
      %v1803 = vcvt.f32.s32.to.zero.pseudo %v1791
      %v1804 = vcvt.f32.s32.to.zero.pseudo %v1792
      %v1805 = vadd.s32 %v1801, 1
      %v1806 = vadd.s32 %v1802, 1
      %vm1807 = vcmp.lt.s32.totalorder %v1805, 7
      %v1808 = vsel %vm1807, %v1805, 7
      %vm1809 = vcmp.lt.s32.totalorder %v1806, 7
      %v1810 = vsel %vm1809, %v1806, 7
      %v1811 = vadd.s32 %v1803, 1
      %v1812 = vadd.s32 %v1804, 1
      %vm1813 = vcmp.lt.s32.totalorder %v1811, 15
      %v1814 = vsel %vm1813, %v1811, 15
      %vm1815 = vcmp.lt.s32.totalorder %v1812, 15
      %v1816 = vsel %vm1815, %v1812, 15
      %v1817 = vmul.u32 %v1803, 8
      %v1818 = vmul.u32 %v1804, 8
      %v1819 = vadd.s32 %v1817, %v1801
      %v1820 = vadd.s32 %v1818, %v1802
      %vm1821 = vcmp.lt.s32.totalorder %v1819, 0
      %vm1822 = vcmp.lt.s32.totalorder %v1820, 0
      %v1823 = vadd.s32 %v1819, 128
      %v1824 = vadd.s32 %v1820, 128
      %v1825 = vsel %vm1821, %v1823, %v1819
      %v1826 = vsel %vm1822, %v1824, %v1820
      %1827 = vset.pattern.permute.xlu0 %v1825
      %1828 = vperm.xlu0 %1827, %v198
      %v1829 = vpop.permute.xlu0 %1828
      %1830 = vset.pattern.permute.xlu0 %v1826
      %1831 = vperm.xlu0 %1830, %v199
      %v1832 = vpop.permute.xlu0 %1831
      %v1833 = vmul.f32 %v1799, %v1797
      %v1834 = vmul.f32 %v1800, %v1798
      %v1835 = vmul.f32 %v1829, %v1833
      %v1836 = vmul.f32 %v1832, %v1834
      %v1837 = vadd.s32 %v1817, %v1808
      %v1838 = vadd.s32 %v1818, %v1810
      %vm1839 = vcmp.lt.s32.totalorder %v1837, 0
      %vm1840 = vcmp.lt.s32.totalorder %v1838, 0
      %v1841 = vadd.s32 %v1837, 128
      %v1842 = vadd.s32 %v1838, 128
      %v1843 = vsel %vm1839, %v1841, %v1837
      %v1844 = vsel %vm1840, %v1842, %v1838
      %1845 = vset.pattern.permute.xlu0 %v1843
      %1846 = vperm.xlu0 %1845, %v198
      %v1847 = vpop.permute.xlu0 %1846
      %1848 = vset.pattern.permute.xlu0 %v1844
      %1849 = vperm.xlu0 %1848, %v199
      %v1850 = vpop.permute.xlu0 %1849
      %v1851 = vmul.f32 %v1799, %v1793
      %v1852 = vmul.f32 %v1800, %v1794
      %v1853 = vmul.f32 %v1847, %v1851
      %v1854 = vmul.f32 %v1850, %v1852
      %v1855 = vadd.f32 %v1835, %v1853
      %v1856 = vadd.f32 %v1836, %v1854
      %v1857 = vmul.u32 %v1814, 8
      %v1858 = vmul.u32 %v1816, 8
      %v1859 = vadd.s32 %v1857, %v1801
      %v1860 = vadd.s32 %v1858, %v1802
      %vm1861 = vcmp.lt.s32.totalorder %v1859, 0
      %vm1862 = vcmp.lt.s32.totalorder %v1860, 0
      %v1863 = vadd.s32 %v1859, 128
      %v1864 = vadd.s32 %v1860, 128
      %v1865 = vsel %vm1861, %v1863, %v1859
      %v1866 = vsel %vm1862, %v1864, %v1860
      %1867 = vset.pattern.permute.xlu0 %v1865
      %1868 = vperm.xlu0 %1867, %v198
      %v1869 = vpop.permute.xlu0 %1868
      %1870 = vset.pattern.permute.xlu0 %v1866
      %1871 = vperm.xlu0 %1870, %v199
      %v1872 = vpop.permute.xlu0 %1871
      %v1873 = vmul.f32 %v1795, %v1797
      %v1874 = vmul.f32 %v1796, %v1798
      %v1875 = vmul.f32 %v1869, %v1873
      %v1876 = vmul.f32 %v1872, %v1874
      %v1877 = vadd.f32 %v1855, %v1875
      %v1878 = vadd.f32 %v1856, %v1876
      %v1879 = vadd.s32 %v1857, %v1808
      %v1880 = vadd.s32 %v1858, %v1810
      %vm1881 = vcmp.lt.s32.totalorder %v1879, 0
      %vm1882 = vcmp.lt.s32.totalorder %v1880, 0
      %v1883 = vadd.s32 %v1879, 128
      %v1884 = vadd.s32 %v1880, 128
      %v1885 = vsel %vm1881, %v1883, %v1879
      %v1886 = vsel %vm1882, %v1884, %v1880
      %1887 = vset.pattern.permute.xlu0 %v1885
      %1888 = vperm.xlu0 %1887, %v198
      %v1889 = vpop.permute.xlu0 %1888
      %1890 = vset.pattern.permute.xlu0 %v1886
      %1891 = vperm.xlu0 %1890, %v199
      %v1892 = vpop.permute.xlu0 %1891
      %v1893 = vmul.f32 %v1795, %v1793
      %v1894 = vmul.f32 %v1796, %v1794
      %v1895 = vmul.f32 %v1889, %v1893
      %v1896 = vmul.f32 %v1892, %v1894
      %v1897 = vadd.f32 %v1877, %v1895
      %v1898 = vadd.f32 %v1878, %v1896
      %v1899 = vperm.slane %v1897, 0
      %v1900 = vmul.f32 %v605, %v1899
      %v1901 = vperm.slane %v1897, 1
      %v1902 = vmul.f32 %v611, %v1901
      %v1903 = vadd.f32 %v1900, %v1902
      %v1904 = vperm.slane %v1897, 2
      %v1905 = vmul.f32 %v618, %v1904
      %v1906 = vadd.f32 %v1903, %v1905
      %v1907 = vperm.slane %v1897, 3
      %v1908 = vmul.f32 %v625, %v1907
      %v1909 = vadd.f32 %v1906, %v1908
      %v1910 = vperm.slane %v1897, 4
      %v1911 = vmul.f32 %v632, %v1910
      %v1912 = vadd.f32 %v1909, %v1911
      %v1913 = vperm.slane %v1897, 5
      %v1914 = vmul.f32 %v639, %v1913
      %v1915 = vadd.f32 %v1912, %v1914
      %v1916 = vperm.slane %v1897, 6
      %v1917 = vmul.f32 %v646, %v1916
      %v1918 = vadd.f32 %v1915, %v1917
      %v1919 = vperm.slane %v1897, 7
      %v1920 = vmul.f32 %v653, %v1919
      %v1921 = vadd.f32 %v1918, %v1920
      %v1922 = vperm.slane %v1898, 0
      %v1923 = vmul.f32 %v660, %v1922
      %v1924 = vadd.f32 %v1921, %v1923
      %v1925 = vperm.slane %v1898, 1
      %v1926 = vmul.f32 %v667, %v1925
      %v1927 = vadd.f32 %v1924, %v1926
      %s1928 = scalar_lea.vmem %s197, 24
      %1929 = vst [vmem:[%s1928] sm:$0xff] %v1927
      %p1930 = scmp.lt.s32.totalorder %s15, 1
      %s1931 = scalar_select %p1930, %s15, 1
      %s1932 = smul.addr %s1931, 4
      %s1933 = smul.addr %s1932, 8
      %s1934 = scalar_lea.vmem %s4, %s1933
      // Predicated region
      $region37: #{skip_upsample.1} parent=35 // pred_check
        %p1935 = pneg %p122
      $region38: #{skip_upsample.1} parent=35 // pred_check_branch
        %1937 = sbr.rel (%p1935) target = $region40
      $region39: #{skip_upsample.1} parent=35 // pred_region
        _
      $region40: #{skip_upsample.1} parent=35 // pred_fallthru
        _
    $region36: #{skip_upsample.1} parent=5 // pred_fallthru
      _
    %p1938 = scmp.le.s32.totalorder 2, %s10
    // Predicated region
    $region41: #{skip_upsample.1} parent=5 // pred_check
      %p1939 = pneg %p1938
    $region42: #{skip_upsample.1} parent=5 // pred_check_branch
      %1941 = sbr.rel (%p1939) target = $region44
    $region43: #{skip_upsample.1} parent=5 // pred_region
      %s1942 = ssub.s32 %s10, 2
      // Predicated region
      $region45: #{skip_upsample.1} parent=43 // pred_check
        %p1943 = pneg %p128
      $region46: #{skip_upsample.1} parent=43 // pred_check_branch
        %1945 = sbr.rel (%p1943) target = $region48
      $region47: #{skip_upsample.1} parent=43 // pred_region
        %p1946 = scmp.lt.s32.totalorder %s16, 1
        %s1947 = scalar_select %p1946, %s16, 1
        %s1948 = smul.addr %s1947, 4
        %s1949 = smul.addr %s1948, 8
        %s1950 = scalar_lea.vmem %s4, %s1949
      $region48: #{skip_upsample.1} parent=43 // pred_fallthru
        _
    $region44: #{skip_upsample.1} parent=5 // pred_fallthru
      _
  $region6: #{skip_upsample.1} parent=0 // loop_footer
    %s14 = sadd.s32 1, %s10
  $region7: #{skip_upsample.1} parent=0 // loop_footer_branch
    %9 = sbr.rel target = $region3
  $region8: #{skip_upsample.1} parent=0 // loop_exit
    _

</llo_original>
